<compile_context>
chip_gen: v5e
topology: v5e:2x2
jax: 0.10.0
libtpu: 0.0.40
codegen_flags: <defaults>
</compile_context>

<pallas_src>
import functools

import jax
import jax.numpy as jnp
import numpy as np
from jax.experimental import pallas as pl
from jax.experimental.pallas import tpu as pltpu


def _fused_lstm_kernel(*refs, hidden_dim, num_layers, batch, seq_len):
    """Fused multi-layer LSTM over the full sequence (single grid point).

    refs = [x_ref,
            w_ih_0, w_hh_0, b_0, ..., w_ih_{L-1}, w_hh_{L-1}, b_{L-1},
            out_ref, hN_ref, cN_ref]
      x_ref  : (T*B, D)       time-major flattened input (row = t*B + b)
      w_ih_l : (D_in_l, 4H)   input weights (pre-transposed)
      w_hh_l : (H, 4H)        recurrent weights (pre-transposed)
      b_l    : (1, 4H)        combined bias (b_ih + b_hh)
      out    : (B, T*H)       lane-dense per-step hidden of the last layer
      hN/cN  : (L, B, H)      final hidden / cell states per layer
    """
    x_ref = refs[0]
    w_ih_refs = [refs[1 + 3 * l] for l in range(num_layers)]
    w_hh_refs = [refs[2 + 3 * l] for l in range(num_layers)]
    b_refs = [refs[3 + 3 * l] for l in range(num_layers)]
    out_ref, hN_ref, cN_ref = refs[1 + 3 * num_layers: 4 + 3 * num_layers]

    B, T, H = batch, seq_len, hidden_dim
    f32 = jnp.float32
    HIGH = jax.lax.Precision.HIGHEST

    # ---- loop-invariant loads (weights/biases live in vregs afterwards) ----
    x_tb = x_ref[...]                                   # (T*B, D)
    w_ih = [r[...] for r in w_ih_refs]
    w_hh = [r[...] for r in w_hh_refs]
    bias = [r[...] for r in b_refs]

    # ---- hoisted layer-0 input projection (one matmul, bias folded in) ----
    gx0 = jnp.dot(x_tb, w_ih[0], precision=HIGH,
                  preferred_element_type=f32) + bias[0]  # (T*B, 4H)

    def cell(gates, c_prev):
        # One full-width sigmoid + one H-wide tanh -> minimal EUP pushes.
        s = jax.nn.sigmoid(gates)                        # (B, 4H)
        i_g = s[:, 0:H]
        f_g = s[:, H:2 * H]
        o_g = s[:, 3 * H:4 * H]
        g_g = jnp.tanh(gates[:, 2 * H:3 * H])
        c_new = f_g * c_prev + i_g * g_g
        h_new = o_g * jnp.tanh(c_new)
        return h_new, c_new

    h = [jnp.zeros((B, H), f32) for _ in range(num_layers)]
    c = [jnp.zeros((B, H), f32) for _ in range(num_layers)]

    outs = []
    # T is a small compile-time constant -> static unroll, all slices static.
    for t in range(T):
        # Layer 0: only the recurrent half is on the serial chain.
        g0 = gx0[t * B:(t + 1) * B, :] + jnp.dot(
            h[0], w_hh[0], precision=HIGH, preferred_element_type=f32)
        h[0], c[0] = cell(g0, c[0])
        # Layers >= 1: two clean K=H matmuls, no lane concat.
        for l in range(1, num_layers):
            gl = (jnp.dot(h[l - 1], w_ih[l], precision=HIGH,
                          preferred_element_type=f32)
                  + jnp.dot(h[l], w_hh[l], precision=HIGH,
                            preferred_element_type=f32)
                  + bias[l])
            h[l], c[l] = cell(gl, c[l])
        outs.append(h[num_layers - 1])

    # Single lane-dense store: last dim T*H is a multiple of 128 -> unmasked vst.
    out_ref[...] = jnp.concatenate(outs, axis=-1)        # (B, T*H)
    # Final states written exactly once.
    hN_ref[...] = jnp.stack(h, axis=0)                   # (L, B, H)
    cN_ref[...] = jnp.stack(c, axis=0)                   # (L, B, H)


def lstm_encoder_forward(x_btd, params, hidden_dim, num_layers):
    """Mirrors LSTMEncoder.forward: returns (output, (hidden, cell)).

    x_btd: (B, T, D) batch-first.
    output: (B, T, H); hidden, cell: (num_layers, B, H).
    params[l] = (W_ih (D_in,4H), W_hh (H,4H), bias (1,4H)) -- pre-transposed.
    """
    B, T, D = x_btd.shape
    H = hidden_dim

    # Time-major flattened input so the layer-0 projection is one matmul with
    # contiguous static per-step row slices. Pure layout plumbing (wrapper side).
    x_tb = jnp.transpose(x_btd, (1, 0, 2)).reshape(T * B, D)

    kernel = functools.partial(_fused_lstm_kernel, hidden_dim=H,
                               num_layers=num_layers, batch=B, seq_len=T)

    flat_inputs = [x_tb]
    for (w_ih, w_hh, b) in params:
        flat_inputs += [w_ih, w_hh, b]

    out_shapes = (
        jax.ShapeDtypeStruct((B, T * H), jnp.float32),          # lane-dense
        jax.ShapeDtypeStruct((num_layers, B, H), jnp.float32),
        jax.ShapeDtypeStruct((num_layers, B, H), jnp.float32),
    )

    vmem = pl.BlockSpec(memory_space=pltpu.MemorySpace.VMEM)
    out_flat, hidden, cell = pl.pallas_call(
        kernel,
        out_shape=out_shapes,
        in_specs=[vmem] * len(flat_inputs),
        out_specs=(vmem, vmem, vmem),
    )(*flat_inputs)

    # Columns [t*H:(t+1)*H] of out_flat are h_t -> reshape gives exactly (B,T,H).
    output = out_flat.reshape(B, T, H)
    # NOTE: for real workloads, pack many sequences so B is a multiple of 8
    # (ideally >=128) per kernel call -- at B=2 the kernel is pure serial
    # latency on quarter-filled vregs.
    return output, (hidden, cell)


def init_lstm_params(key, input_dim, hidden_dim, num_layers):
    """PyTorch-style uniform(-1/sqrt(H), 1/sqrt(H)) init, deterministic.

    Stored unstacked & pre-transposed: W_ih (D_in, 4H), W_hh (H, 4H),
    combined bias (1, 4H). Gate order i, f, g, o.
    """
    params = []
    bound = 1.0 / np.sqrt(hidden_dim)
    for layer in range(num_layers):
        d_in = input_dim if layer == 0 else hidden_dim
        key, k1, k2, k3, k4 = jax.random.split(key, 5)
        w_ih = jax.random.uniform(k1, (d_in, 4 * hidden_dim),
                                  jnp.float32, -bound, bound)
        w_hh = jax.random.uniform(k2, (hidden_dim, 4 * hidden_dim),
                                  jnp.float32, -bound, bound)
        b_ih = jax.random.uniform(k3, (4 * hidden_dim,),
                                  jnp.float32, -bound, bound)
        b_hh = jax.random.uniform(k4, (4 * hidden_dim,),
                                  jnp.float32, -bound, bound)
        params.append((w_ih, w_hh, (b_ih + b_hh)[None, :]))
    return params


def lstm_reference(x_btd, params, hidden_dim, num_layers):
    """Pure-JAX reference (lax.scan), f32 HIGHEST precision, for correctness."""
    x = jnp.transpose(x_btd, (1, 0, 2))   # (T, B, D)
    B = x.shape[1]
    H = hidden_dim
    HIGH = jax.lax.Precision.HIGHEST
    h_finals, c_finals = [], []
    for layer in range(num_layers):
        w_ih, w_hh, b = params[layer]

        def step(carry, x_t, w_ih=w_ih, w_hh=w_hh, b=b):
            h, c = carry
            g = (jnp.dot(x_t, w_ih, precision=HIGH)
                 + jnp.dot(h, w_hh, precision=HIGH) + b)
            i = jax.nn.sigmoid(g[:, 0 * H:1 * H])
            f = jax.nn.sigmoid(g[:, 1 * H:2 * H])
            gg = jnp.tanh(g[:, 2 * H:3 * H])
            o = jax.nn.sigmoid(g[:, 3 * H:4 * H])
            c = f * c + i * gg
            h = o * jnp.tanh(c)
            return (h, c), h

        init = (jnp.zeros((B, H), jnp.float32), jnp.zeros((B, H), jnp.float32))
        (h_f, c_f), ys = jax.lax.scan(step, init, x)
        x = ys
        h_finals.append(h_f)
        c_finals.append(c_f)
    return (jnp.transpose(x, (1, 0, 2)),
            (jnp.stack(h_finals), jnp.stack(c_finals)))


if __name__ == "__main__":
    # Small shapes consistent with LSTMEncoder: batch=2, seq=8, input_dim=6,
    # hidden_dim=32, num_layers=2.
    B, T, D, H, L = 2, 8, 6, 32, 2

    key = jax.random.PRNGKey(0)
    kx, kp = jax.random.split(key)
    x = jax.random.normal(kx, (B, T, D), jnp.float32)
    params = init_lstm_params(kp, D, H, L)

    output, (hidden, cell) = lstm_encoder_forward(x, params, H, L)
    jax.block_until_ready((output, hidden, cell))

    assert output.shape == (B, T, H)
    assert hidden.shape == (L, B, H)
    assert cell.shape == (L, B, H)

    # Numerical check against pure-JAX reference; both sides use f32 HIGHEST
    # precision matmuls, so the tolerance is tight.
    ref_out, (ref_h, ref_c) = lstm_reference(x, params, H, L)
    np.testing.assert_allclose(np.asarray(output), np.asarray(ref_out),
                               rtol=1e-5, atol=1e-5)
    np.testing.assert_allclose(np.asarray(hidden), np.asarray(ref_h),
                               rtol=1e-5, atol=1e-5)
    np.testing.assert_allclose(np.asarray(cell), np.asarray(ref_c),
                               rtol=1e-5, atol=1e-5)

    print("KERNEL_OK")
</pallas_src>

<mosaic_0001>
module attributes {stable_mosaic.version = 11 : i64} {
  func.func @_fused_lstm_kernel(%arg0: memref<16x6xf32, #tpu.memory_space<vmem>>, %arg1: memref<6x128xf32, #tpu.memory_space<vmem>>, %arg2: memref<32x128xf32, #tpu.memory_space<vmem>>, %arg3: memref<1x128xf32, #tpu.memory_space<vmem>>, %arg4: memref<32x128xf32, #tpu.memory_space<vmem>>, %arg5: memref<32x128xf32, #tpu.memory_space<vmem>>, %arg6: memref<1x128xf32, #tpu.memory_space<vmem>>, %arg7: memref<2x256xf32, #tpu.memory_space<vmem>>, %arg8: memref<2x2x32xf32, #tpu.memory_space<vmem>>, %arg9: memref<2x2x32xf32, #tpu.memory_space<vmem>>) attributes {dimension_semantics = [], scalar_prefetch = 0 : i64, scratch_operands = 0 : i64, tpu.core_type = #tpu.core_type<tc>} {
    %c0 = arith.constant 0 : index
    %c0_0 = arith.constant 0 : index
    %0 = vector.load %arg0[%c0, %c0_0] : memref<16x6xf32, #tpu.memory_space<vmem>>, vector<16x6xf32>
    %c0_1 = arith.constant 0 : index
    %c0_2 = arith.constant 0 : index
    %1 = vector.load %arg1[%c0_1, %c0_2] : memref<6x128xf32, #tpu.memory_space<vmem>>, vector<6x128xf32>
    %c0_3 = arith.constant 0 : index
    %c0_4 = arith.constant 0 : index
    %2 = vector.load %arg4[%c0_3, %c0_4] : memref<32x128xf32, #tpu.memory_space<vmem>>, vector<32x128xf32>
    %c0_5 = arith.constant 0 : index
    %c0_6 = arith.constant 0 : index
    %3 = vector.load %arg2[%c0_5, %c0_6] : memref<32x128xf32, #tpu.memory_space<vmem>>, vector<32x128xf32>
    %c0_7 = arith.constant 0 : index
    %c0_8 = arith.constant 0 : index
    %4 = vector.load %arg5[%c0_7, %c0_8] : memref<32x128xf32, #tpu.memory_space<vmem>>, vector<32x128xf32>
    %c0_9 = arith.constant 0 : index
    %c0_10 = arith.constant 0 : index
    %5 = vector.load %arg3[%c0_9, %c0_10] : memref<1x128xf32, #tpu.memory_space<vmem>>, vector<1x128xf32>
    %c0_11 = arith.constant 0 : index
    %c0_12 = arith.constant 0 : index
    %6 = vector.load %arg6[%c0_11, %c0_12] : memref<1x128xf32, #tpu.memory_space<vmem>>, vector<1x128xf32>
    %cst = arith.constant dense<0.000000e+00> : vector<16x128xf32>
    %7 = tpu.matmul %0, %1, %cst {dimension_numbers = #tpu.dot_dimension_numbers<[1], [0], [0], [1], [0, 0, 1, 1], [], []>, precision = #tpu.contract_precision<fp32>} : vector<16x6xf32>, vector<6x128xf32>, vector<16x128xf32> -> vector<16x128xf32>
    %8 = vector.broadcast %5 : vector<1x128xf32> to vector<16x128xf32>
    %9 = arith.addf %7, %8 : vector<16x128xf32>
    %cst_13 = arith.constant 0.000000e+00 : f32
    %10 = vector.broadcast %cst_13 : f32 to vector<2x32xf32>
    %cst_14 = arith.constant 0.000000e+00 : f32
    %11 = vector.broadcast %cst_14 : f32 to vector<2x32xf32>
    %cst_15 = arith.constant 0.000000e+00 : f32
    %12 = vector.broadcast %cst_15 : f32 to vector<2x32xf32>
    %cst_16 = arith.constant 0.000000e+00 : f32
    %13 = vector.broadcast %cst_16 : f32 to vector<2x32xf32>
    %14 = vector.extract_strided_slice %9 {offsets = [0, 0], sizes = [2, 128], strides = [1, 1]} : vector<16x128xf32> to vector<2x128xf32>
    %cst_17 = arith.constant dense<0.000000e+00> : vector<2x128xf32>
    %15 = tpu.matmul %10, %3, %cst_17 {dimension_numbers = #tpu.dot_dimension_numbers<[1], [0], [0], [1], [0, 0, 1, 1], [], []>, precision = #tpu.contract_precision<fp32>} : vector<2x32xf32>, vector<32x128xf32>, vector<2x128xf32> -> vector<2x128xf32>
    %16 = arith.addf %14, %15 : vector<2x128xf32>
    %17 = arith.negf %16 : vector<2x128xf32>
    %18 = math.exp %17 : vector<2x128xf32>
    %cst_18 = arith.constant 1.000000e+00 : f32
    %19 = vector.broadcast %cst_18 : f32 to vector<2x128xf32>
    %20 = arith.addf %19, %18 : vector<2x128xf32>
    %21 = arith.divf %19, %20 : vector<2x128xf32>
    %22 = vector.extract_strided_slice %21 {offsets = [0, 0], sizes = [2, 32], strides = [1, 1]} : vector<2x128xf32> to vector<2x32xf32>
    %23 = vector.extract_strided_slice %21 {offsets = [0, 32], sizes = [2, 32], strides = [1, 1]} : vector<2x128xf32> to vector<2x32xf32>
    %24 = vector.extract_strided_slice %21 {offsets = [0, 96], sizes = [2, 32], strides = [1, 1]} : vector<2x128xf32> to vector<2x32xf32>
    %25 = vector.extract_strided_slice %16 {offsets = [0, 64], sizes = [2, 32], strides = [1, 1]} : vector<2x128xf32> to vector<2x32xf32>
    %26 = math.tanh %25 : vector<2x32xf32>
    %27 = arith.mulf %23, %12 : vector<2x32xf32>
    %28 = arith.mulf %22, %26 : vector<2x32xf32>
    %29 = arith.addf %27, %28 : vector<2x32xf32>
    %30 = math.tanh %29 : vector<2x32xf32>
    %31 = arith.mulf %24, %30 : vector<2x32xf32>
    %cst_19 = arith.constant dense<0.000000e+00> : vector<2x128xf32>
    %32 = tpu.matmul %31, %2, %cst_19 {dimension_numbers = #tpu.dot_dimension_numbers<[1], [0], [0], [1], [0, 0, 1, 1], [], []>, precision = #tpu.contract_precision<fp32>} : vector<2x32xf32>, vector<32x128xf32>, vector<2x128xf32> -> vector<2x128xf32>
    %cst_20 = arith.constant dense<0.000000e+00> : vector<2x128xf32>
    %33 = tpu.matmul %11, %4, %cst_20 {dimension_numbers = #tpu.dot_dimension_numbers<[1], [0], [0], [1], [0, 0, 1, 1], [], []>, precision = #tpu.contract_precision<fp32>} : vector<2x32xf32>, vector<32x128xf32>, vector<2x128xf32> -> vector<2x128xf32>
    %34 = arith.addf %32, %33 : vector<2x128xf32>
    %35 = vector.broadcast %6 : vector<1x128xf32> to vector<2x128xf32>
    %36 = arith.addf %34, %35 : vector<2x128xf32>
    %37 = arith.negf %36 : vector<2x128xf32>
    %38 = math.exp %37 : vector<2x128xf32>
    %cst_21 = arith.constant 1.000000e+00 : f32
    %39 = vector.broadcast %cst_21 : f32 to vector<2x128xf32>
    %40 = arith.addf %39, %38 : vector<2x128xf32>
    %41 = arith.divf %39, %40 : vector<2x128xf32>
    %42 = vector.extract_strided_slice %41 {offsets = [0, 0], sizes = [2, 32], strides = [1, 1]} : vector<2x128xf32> to vector<2x32xf32>
    %43 = vector.extract_strided_slice %41 {offsets = [0, 32], sizes = [2, 32], strides = [1, 1]} : vector<2x128xf32> to vector<2x32xf32>
    %44 = vector.extract_strided_slice %41 {offsets = [0, 96], sizes = [2, 32], strides = [1, 1]} : vector<2x128xf32> to vector<2x32xf32>
    %45 = vector.extract_strided_slice %36 {offsets = [0, 64], sizes = [2, 32], strides = [1, 1]} : vector<2x128xf32> to vector<2x32xf32>
    %46 = math.tanh %45 : vector<2x32xf32>
    %47 = arith.mulf %43, %13 : vector<2x32xf32>
    %48 = arith.mulf %42, %46 : vector<2x32xf32>
    %49 = arith.addf %47, %48 : vector<2x32xf32>
    %50 = math.tanh %49 : vector<2x32xf32>
    %51 = arith.mulf %44, %50 : vector<2x32xf32>
    %52 = vector.extract_strided_slice %9 {offsets = [2, 0], sizes = [2, 128], strides = [1, 1]} : vector<16x128xf32> to vector<2x128xf32>
    %cst_22 = arith.constant dense<0.000000e+00> : vector<2x128xf32>
    %53 = tpu.matmul %31, %3, %cst_22 {dimension_numbers = #tpu.dot_dimension_numbers<[1], [0], [0], [1], [0, 0, 1, 1], [], []>, precision = #tpu.contract_precision<fp32>} : vector<2x32xf32>, vector<32x128xf32>, vector<2x128xf32> -> vector<2x128xf32>
    %54 = arith.addf %52, %53 : vector<2x128xf32>
    %55 = arith.negf %54 : vector<2x128xf32>
    %56 = math.exp %55 : vector<2x128xf32>
    %cst_23 = arith.constant 1.000000e+00 : f32
    %57 = vector.broadcast %cst_23 : f32 to vector<2x128xf32>
    %58 = arith.addf %57, %56 : vector<2x128xf32>
    %59 = arith.divf %57, %58 : vector<2x128xf32>
    %60 = vector.extract_strided_slice %59 {offsets = [0, 0], sizes = [2, 32], strides = [1, 1]} : vector<2x128xf32> to vector<2x32xf32>
    %61 = vector.extract_strided_slice %59 {offsets = [0, 32], sizes = [2, 32], strides = [1, 1]} : vector<2x128xf32> to vector<2x32xf32>
    %62 = vector.extract_strided_slice %59 {offsets = [0, 96], sizes = [2, 32], strides = [1, 1]} : vector<2x128xf32> to vector<2x32xf32>
    %63 = vector.extract_strided_slice %54 {offsets = [0, 64], sizes = [2, 32], strides = [1, 1]} : vector<2x128xf32> to vector<2x32xf32>
    %64 = math.tanh %63 : vector<2x32xf32>
    %65 = arith.mulf %61, %29 : vector<2x32xf32>
    %66 = arith.mulf %60, %64 : vector<2x32xf32>
    %67 = arith.addf %65, %66 : vector<2x32xf32>
    %68 = math.tanh %67 : vector<2x32xf32>
    %69 = arith.mulf %62, %68 : vector<2x32xf32>
    %cst_24 = arith.constant dense<0.000000e+00> : vector<2x128xf32>
    %70 = tpu.matmul %69, %2, %cst_24 {dimension_numbers = #tpu.dot_dimension_numbers<[1], [0], [0], [1], [0, 0, 1, 1], [], []>, precision = #tpu.contract_precision<fp32>} : vector<2x32xf32>, vector<32x128xf32>, vector<2x128xf32> -> vector<2x128xf32>
    %cst_25 = arith.constant dense<0.000000e+00> : vector<2x128xf32>
    %71 = tpu.matmul %51, %4, %cst_25 {dimension_numbers = #tpu.dot_dimension_numbers<[1], [0], [0], [1], [0, 0, 1, 1], [], []>, precision = #tpu.contract_precision<fp32>} : vector<2x32xf32>, vector<32x128xf32>, vector<2x128xf32> -> vector<2x128xf32>
    %72 = arith.addf %70, %71 : vector<2x128xf32>
    %73 = vector.broadcast %6 : vector<1x128xf32> to vector<2x128xf32>
    %74 = arith.addf %72, %73 : vector<2x128xf32>
    %75 = arith.negf %74 : vector<2x128xf32>
    %76 = math.exp %75 : vector<2x128xf32>
    %cst_26 = arith.constant 1.000000e+00 : f32
    %77 = vector.broadcast %cst_26 : f32 to vector<2x128xf32>
    %78 = arith.addf %77, %76 : vector<2x128xf32>
    %79 = arith.divf %77, %78 : vector<2x128xf32>
    %80 = vector.extract_strided_slice %79 {offsets = [0, 0], sizes = [2, 32], strides = [1, 1]} : vector<2x128xf32> to vector<2x32xf32>
    %81 = vector.extract_strided_slice %79 {offsets = [0, 32], sizes = [2, 32], strides = [1, 1]} : vector<2x128xf32> to vector<2x32xf32>
    %82 = vector.extract_strided_slice %79 {offsets = [0, 96], sizes = [2, 32], strides = [1, 1]} : vector<2x128xf32> to vector<2x32xf32>
    %83 = vector.extract_strided_slice %74 {offsets = [0, 64], sizes = [2, 32], strides = [1, 1]} : vector<2x128xf32> to vector<2x32xf32>
    %84 = math.tanh %83 : vector<2x32xf32>
    %85 = arith.mulf %81, %49 : vector<2x32xf32>
    %86 = arith.mulf %80, %84 : vector<2x32xf32>
    %87 = arith.addf %85, %86 : vector<2x32xf32>
    %88 = math.tanh %87 : vector<2x32xf32>
    %89 = arith.mulf %82, %88 : vector<2x32xf32>
    %90 = vector.extract_strided_slice %9 {offsets = [4, 0], sizes = [2, 128], strides = [1, 1]} : vector<16x128xf32> to vector<2x128xf32>
    %cst_27 = arith.constant dense<0.000000e+00> : vector<2x128xf32>
    %91 = tpu.matmul %69, %3, %cst_27 {dimension_numbers = #tpu.dot_dimension_numbers<[1], [0], [0], [1], [0, 0, 1, 1], [], []>, precision = #tpu.contract_precision<fp32>} : vector<2x32xf32>, vector<32x128xf32>, vector<2x128xf32> -> vector<2x128xf32>
    %92 = arith.addf %90, %91 : vector<2x128xf32>
    %93 = arith.negf %92 : vector<2x128xf32>
    %94 = math.exp %93 : vector<2x128xf32>
    %cst_28 = arith.constant 1.000000e+00 : f32
    %95 = vector.broadcast %cst_28 : f32 to vector<2x128xf32>
    %96 = arith.addf %95, %94 : vector<2x128xf32>
    %97 = arith.divf %95, %96 : vector<2x128xf32>
    %98 = vector.extract_strided_slice %97 {offsets = [0, 0], sizes = [2, 32], strides = [1, 1]} : vector<2x128xf32> to vector<2x32xf32>
    %99 = vector.extract_strided_slice %97 {offsets = [0, 32], sizes = [2, 32], strides = [1, 1]} : vector<2x128xf32> to vector<2x32xf32>
    %100 = vector.extract_strided_slice %97 {offsets = [0, 96], sizes = [2, 32], strides = [1, 1]} : vector<2x128xf32> to vector<2x32xf32>
    %101 = vector.extract_strided_slice %92 {offsets = [0, 64], sizes = [2, 32], strides = [1, 1]} : vector<2x128xf32> to vector<2x32xf32>
    %102 = math.tanh %101 : vector<2x32xf32>
    %103 = arith.mulf %99, %67 : vector<2x32xf32>
    %104 = arith.mulf %98, %102 : vector<2x32xf32>
    %105 = arith.addf %103, %104 : vector<2x32xf32>
    %106 = math.tanh %105 : vector<2x32xf32>
    %107 = arith.mulf %100, %106 : vector<2x32xf32>
    %cst_29 = arith.constant dense<0.000000e+00> : vector<2x128xf32>
    %108 = tpu.matmul %107, %2, %cst_29 {dimension_numbers = #tpu.dot_dimension_numbers<[1], [0], [0], [1], [0, 0, 1, 1], [], []>, precision = #tpu.contract_precision<fp32>} : vector<2x32xf32>, vector<32x128xf32>, vector<2x128xf32> -> vector<2x128xf32>
    %cst_30 = arith.constant dense<0.000000e+00> : vector<2x128xf32>
    %109 = tpu.matmul %89, %4, %cst_30 {dimension_numbers = #tpu.dot_dimension_numbers<[1], [0], [0], [1], [0, 0, 1, 1], [], []>, precision = #tpu.contract_precision<fp32>} : vector<2x32xf32>, vector<32x128xf32>, vector<2x128xf32> -> vector<2x128xf32>
    %110 = arith.addf %108, %109 : vector<2x128xf32>
    %111 = vector.broadcast %6 : vector<1x128xf32> to vector<2x128xf32>
    %112 = arith.addf %110, %111 : vector<2x128xf32>
    %113 = arith.negf %112 : vector<2x128xf32>
    %114 = math.exp %113 : vector<2x128xf32>
    %cst_31 = arith.constant 1.000000e+00 : f32
    %115 = vector.broadcast %cst_31 : f32 to vector<2x128xf32>
    %116 = arith.addf %115, %114 : vector<2x128xf32>
    %117 = arith.divf %115, %116 : vector<2x128xf32>
    %118 = vector.extract_strided_slice %117 {offsets = [0, 0], sizes = [2, 32], strides = [1, 1]} : vector<2x128xf32> to vector<2x32xf32>
    %119 = vector.extract_strided_slice %117 {offsets = [0, 32], sizes = [2, 32], strides = [1, 1]} : vector<2x128xf32> to vector<2x32xf32>
    %120 = vector.extract_strided_slice %117 {offsets = [0, 96], sizes = [2, 32], strides = [1, 1]} : vector<2x128xf32> to vector<2x32xf32>
    %121 = vector.extract_strided_slice %112 {offsets = [0, 64], sizes = [2, 32], strides = [1, 1]} : vector<2x128xf32> to vector<2x32xf32>
    %122 = math.tanh %121 : vector<2x32xf32>
    %123 = arith.mulf %119, %87 : vector<2x32xf32>
    %124 = arith.mulf %118, %122 : vector<2x32xf32>
    %125 = arith.addf %123, %124 : vector<2x32xf32>
    %126 = math.tanh %125 : vector<2x32xf32>
    %127 = arith.mulf %120, %126 : vector<2x32xf32>
    %128 = vector.extract_strided_slice %9 {offsets = [6, 0], sizes = [2, 128], strides = [1, 1]} : vector<16x128xf32> to vector<2x128xf32>
    %cst_32 = arith.constant dense<0.000000e+00> : vector<2x128xf32>
    %129 = tpu.matmul %107, %3, %cst_32 {dimension_numbers = #tpu.dot_dimension_numbers<[1], [0], [0], [1], [0, 0, 1, 1], [], []>, precision = #tpu.contract_precision<fp32>} : vector<2x32xf32>, vector<32x128xf32>, vector<2x128xf32> -> vector<2x128xf32>
    %130 = arith.addf %128, %129 : vector<2x128xf32>
    %131 = arith.negf %130 : vector<2x128xf32>
    %132 = math.exp %131 : vector<2x128xf32>
    %cst_33 = arith.constant 1.000000e+00 : f32
    %133 = vector.broadcast %cst_33 : f32 to vector<2x128xf32>
    %134 = arith.addf %133, %132 : vector<2x128xf32>
    %135 = arith.divf %133, %134 : vector<2x128xf32>
    %136 = vector.extract_strided_slice %135 {offsets = [0, 0], sizes = [2, 32], strides = [1, 1]} : vector<2x128xf32> to vector<2x32xf32>
    %137 = vector.extract_strided_slice %135 {offsets = [0, 32], sizes = [2, 32], strides = [1, 1]} : vector<2x128xf32> to vector<2x32xf32>
    %138 = vector.extract_strided_slice %135 {offsets = [0, 96], sizes = [2, 32], strides = [1, 1]} : vector<2x128xf32> to vector<2x32xf32>
    %139 = vector.extract_strided_slice %130 {offsets = [0, 64], sizes = [2, 32], strides = [1, 1]} : vector<2x128xf32> to vector<2x32xf32>
    %140 = math.tanh %139 : vector<2x32xf32>
    %141 = arith.mulf %137, %105 : vector<2x32xf32>
    %142 = arith.mulf %136, %140 : vector<2x32xf32>
    %143 = arith.addf %141, %142 : vector<2x32xf32>
    %144 = math.tanh %143 : vector<2x32xf32>
    %145 = arith.mulf %138, %144 : vector<2x32xf32>
    %cst_34 = arith.constant dense<0.000000e+00> : vector<2x128xf32>
    %146 = tpu.matmul %145, %2, %cst_34 {dimension_numbers = #tpu.dot_dimension_numbers<[1], [0], [0], [1], [0, 0, 1, 1], [], []>, precision = #tpu.contract_precision<fp32>} : vector<2x32xf32>, vector<32x128xf32>, vector<2x128xf32> -> vector<2x128xf32>
    %cst_35 = arith.constant dense<0.000000e+00> : vector<2x128xf32>
    %147 = tpu.matmul %127, %4, %cst_35 {dimension_numbers = #tpu.dot_dimension_numbers<[1], [0], [0], [1], [0, 0, 1, 1], [], []>, precision = #tpu.contract_precision<fp32>} : vector<2x32xf32>, vector<32x128xf32>, vector<2x128xf32> -> vector<2x128xf32>
    %148 = arith.addf %146, %147 : vector<2x128xf32>
    %149 = vector.broadcast %6 : vector<1x128xf32> to vector<2x128xf32>
    %150 = arith.addf %148, %149 : vector<2x128xf32>
    %151 = arith.negf %150 : vector<2x128xf32>
    %152 = math.exp %151 : vector<2x128xf32>
    %cst_36 = arith.constant 1.000000e+00 : f32
    %153 = vector.broadcast %cst_36 : f32 to vector<2x128xf32>
    %154 = arith.addf %153, %152 : vector<2x128xf32>
    %155 = arith.divf %153, %154 : vector<2x128xf32>
    %156 = vector.extract_strided_slice %155 {offsets = [0, 0], sizes = [2, 32], strides = [1, 1]} : vector<2x128xf32> to vector<2x32xf32>
    %157 = vector.extract_strided_slice %155 {offsets = [0, 32], sizes = [2, 32], strides = [1, 1]} : vector<2x128xf32> to vector<2x32xf32>
    %158 = vector.extract_strided_slice %155 {offsets = [0, 96], sizes = [2, 32], strides = [1, 1]} : vector<2x128xf32> to vector<2x32xf32>
    %159 = vector.extract_strided_slice %150 {offsets = [0, 64], sizes = [2, 32], strides = [1, 1]} : vector<2x128xf32> to vector<2x32xf32>
    %160 = math.tanh %159 : vector<2x32xf32>
    %161 = arith.mulf %157, %125 : vector<2x32xf32>
    %162 = arith.mulf %156, %160 : vector<2x32xf32>
    %163 = arith.addf %161, %162 : vector<2x32xf32>
    %164 = math.tanh %163 : vector<2x32xf32>
    %165 = arith.mulf %158, %164 : vector<2x32xf32>
    %166 = vector.extract_strided_slice %9 {offsets = [8, 0], sizes = [2, 128], strides = [1, 1]} : vector<16x128xf32> to vector<2x128xf32>
    %cst_37 = arith.constant dense<0.000000e+00> : vector<2x128xf32>
    %167 = tpu.matmul %145, %3, %cst_37 {dimension_numbers = #tpu.dot_dimension_numbers<[1], [0], [0], [1], [0, 0, 1, 1], [], []>, precision = #tpu.contract_precision<fp32>} : vector<2x32xf32>, vector<32x128xf32>, vector<2x128xf32> -> vector<2x128xf32>
    %168 = arith.addf %166, %167 : vector<2x128xf32>
    %169 = arith.negf %168 : vector<2x128xf32>
    %170 = math.exp %169 : vector<2x128xf32>
    %cst_38 = arith.constant 1.000000e+00 : f32
    %171 = vector.broadcast %cst_38 : f32 to vector<2x128xf32>
    %172 = arith.addf %171, %170 : vector<2x128xf32>
    %173 = arith.divf %171, %172 : vector<2x128xf32>
    %174 = vector.extract_strided_slice %173 {offsets = [0, 0], sizes = [2, 32], strides = [1, 1]} : vector<2x128xf32> to vector<2x32xf32>
    %175 = vector.extract_strided_slice %173 {offsets = [0, 32], sizes = [2, 32], strides = [1, 1]} : vector<2x128xf32> to vector<2x32xf32>
    %176 = vector.extract_strided_slice %173 {offsets = [0, 96], sizes = [2, 32], strides = [1, 1]} : vector<2x128xf32> to vector<2x32xf32>
    %177 = vector.extract_strided_slice %168 {offsets = [0, 64], sizes = [2, 32], strides = [1, 1]} : vector<2x128xf32> to vector<2x32xf32>
    %178 = math.tanh %177 : vector<2x32xf32>
    %179 = arith.mulf %175, %143 : vector<2x32xf32>
    %180 = arith.mulf %174, %178 : vector<2x32xf32>
    %181 = arith.addf %179, %180 : vector<2x32xf32>
    %182 = math.tanh %181 : vector<2x32xf32>
    %183 = arith.mulf %176, %182 : vector<2x32xf32>
    %cst_39 = arith.constant dense<0.000000e+00> : vector<2x128xf32>
    %184 = tpu.matmul %183, %2, %cst_39 {dimension_numbers = #tpu.dot_dimension_numbers<[1], [0], [0], [1], [0, 0, 1, 1], [], []>, precision = #tpu.contract_precision<fp32>} : vector<2x32xf32>, vector<32x128xf32>, vector<2x128xf32> -> vector<2x128xf32>
    %cst_40 = arith.constant dense<0.000000e+00> : vector<2x128xf32>
    %185 = tpu.matmul %165, %4, %cst_40 {dimension_numbers = #tpu.dot_dimension_numbers<[1], [0], [0], [1], [0, 0, 1, 1], [], []>, precision = #tpu.contract_precision<fp32>} : vector<2x32xf32>, vector<32x128xf32>, vector<2x128xf32> -> vector<2x128xf32>
    %186 = arith.addf %184, %185 : vector<2x128xf32>
    %187 = vector.broadcast %6 : vector<1x128xf32> to vector<2x128xf32>
    %188 = arith.addf %186, %187 : vector<2x128xf32>
    %189 = arith.negf %188 : vector<2x128xf32>
    %190 = math.exp %189 : vector<2x128xf32>
    %cst_41 = arith.constant 1.000000e+00 : f32
    %191 = vector.broadcast %cst_41 : f32 to vector<2x128xf32>
    %192 = arith.addf %191, %190 : vector<2x128xf32>
    %193 = arith.divf %191, %192 : vector<2x128xf32>
    %194 = vector.extract_strided_slice %193 {offsets = [0, 0], sizes = [2, 32], strides = [1, 1]} : vector<2x128xf32> to vector<2x32xf32>
    %195 = vector.extract_strided_slice %193 {offsets = [0, 32], sizes = [2, 32], strides = [1, 1]} : vector<2x128xf32> to vector<2x32xf32>
    %196 = vector.extract_strided_slice %193 {offsets = [0, 96], sizes = [2, 32], strides = [1, 1]} : vector<2x128xf32> to vector<2x32xf32>
    %197 = vector.extract_strided_slice %188 {offsets = [0, 64], sizes = [2, 32], strides = [1, 1]} : vector<2x128xf32> to vector<2x32xf32>
    %198 = math.tanh %197 : vector<2x32xf32>
    %199 = arith.mulf %195, %163 : vector<2x32xf32>
    %200 = arith.mulf %194, %198 : vector<2x32xf32>
    %201 = arith.addf %199, %200 : vector<2x32xf32>
    %202 = math.tanh %201 : vector<2x32xf32>
    %203 = arith.mulf %196, %202 : vector<2x32xf32>
    %204 = vector.extract_strided_slice %9 {offsets = [10, 0], sizes = [2, 128], strides = [1, 1]} : vector<16x128xf32> to vector<2x128xf32>
    %cst_42 = arith.constant dense<0.000000e+00> : vector<2x128xf32>
    %205 = tpu.matmul %183, %3, %cst_42 {dimension_numbers = #tpu.dot_dimension_numbers<[1], [0], [0], [1], [0, 0, 1, 1], [], []>, precision = #tpu.contract_precision<fp32>} : vector<2x32xf32>, vector<32x128xf32>, vector<2x128xf32> -> vector<2x128xf32>
    %206 = arith.addf %204, %205 : vector<2x128xf32>
    %207 = arith.negf %206 : vector<2x128xf32>
    %208 = math.exp %207 : vector<2x128xf32>
    %cst_43 = arith.constant 1.000000e+00 : f32
    %209 = vector.broadcast %cst_43 : f32 to vector<2x128xf32>
    %210 = arith.addf %209, %208 : vector<2x128xf32>
    %211 = arith.divf %209, %210 : vector<2x128xf32>
    %212 = vector.extract_strided_slice %211 {offsets = [0, 0], sizes = [2, 32], strides = [1, 1]} : vector<2x128xf32> to vector<2x32xf32>
    %213 = vector.extract_strided_slice %211 {offsets = [0, 32], sizes = [2, 32], strides = [1, 1]} : vector<2x128xf32> to vector<2x32xf32>
    %214 = vector.extract_strided_slice %211 {offsets = [0, 96], sizes = [2, 32], strides = [1, 1]} : vector<2x128xf32> to vector<2x32xf32>
    %215 = vector.extract_strided_slice %206 {offsets = [0, 64], sizes = [2, 32], strides = [1, 1]} : vector<2x128xf32> to vector<2x32xf32>
    %216 = math.tanh %215 : vector<2x32xf32>
    %217 = arith.mulf %213, %181 : vector<2x32xf32>
    %218 = arith.mulf %212, %216 : vector<2x32xf32>
    %219 = arith.addf %217, %218 : vector<2x32xf32>
    %220 = math.tanh %219 : vector<2x32xf32>
    %221 = arith.mulf %214, %220 : vector<2x32xf32>
    %cst_44 = arith.constant dense<0.000000e+00> : vector<2x128xf32>
    %222 = tpu.matmul %221, %2, %cst_44 {dimension_numbers = #tpu.dot_dimension_numbers<[1], [0], [0], [1], [0, 0, 1, 1], [], []>, precision = #tpu.contract_precision<fp32>} : vector<2x32xf32>, vector<32x128xf32>, vector<2x128xf32> -> vector<2x128xf32>
    %cst_45 = arith.constant dense<0.000000e+00> : vector<2x128xf32>
    %223 = tpu.matmul %203, %4, %cst_45 {dimension_numbers = #tpu.dot_dimension_numbers<[1], [0], [0], [1], [0, 0, 1, 1], [], []>, precision = #tpu.contract_precision<fp32>} : vector<2x32xf32>, vector<32x128xf32>, vector<2x128xf32> -> vector<2x128xf32>
    %224 = arith.addf %222, %223 : vector<2x128xf32>
    %225 = vector.broadcast %6 : vector<1x128xf32> to vector<2x128xf32>
    %226 = arith.addf %224, %225 : vector<2x128xf32>
    %227 = arith.negf %226 : vector<2x128xf32>
    %228 = math.exp %227 : vector<2x128xf32>
    %cst_46 = arith.constant 1.000000e+00 : f32
    %229 = vector.broadcast %cst_46 : f32 to vector<2x128xf32>
    %230 = arith.addf %229, %228 : vector<2x128xf32>
    %231 = arith.divf %229, %230 : vector<2x128xf32>
    %232 = vector.extract_strided_slice %231 {offsets = [0, 0], sizes = [2, 32], strides = [1, 1]} : vector<2x128xf32> to vector<2x32xf32>
    %233 = vector.extract_strided_slice %231 {offsets = [0, 32], sizes = [2, 32], strides = [1, 1]} : vector<2x128xf32> to vector<2x32xf32>
    %234 = vector.extract_strided_slice %231 {offsets = [0, 96], sizes = [2, 32], strides = [1, 1]} : vector<2x128xf32> to vector<2x32xf32>
    %235 = vector.extract_strided_slice %226 {offsets = [0, 64], sizes = [2, 32], strides = [1, 1]} : vector<2x128xf32> to vector<2x32xf32>
    %236 = math.tanh %235 : vector<2x32xf32>
    %237 = arith.mulf %233, %201 : vector<2x32xf32>
    %238 = arith.mulf %232, %236 : vector<2x32xf32>
    %239 = arith.addf %237, %238 : vector<2x32xf32>
    %240 = math.tanh %239 : vector<2x32xf32>
    %241 = arith.mulf %234, %240 : vector<2x32xf32>
    %242 = vector.extract_strided_slice %9 {offsets = [12, 0], sizes = [2, 128], strides = [1, 1]} : vector<16x128xf32> to vector<2x128xf32>
    %cst_47 = arith.constant dense<0.000000e+00> : vector<2x128xf32>
    %243 = tpu.matmul %221, %3, %cst_47 {dimension_numbers = #tpu.dot_dimension_numbers<[1], [0], [0], [1], [0, 0, 1, 1], [], []>, precision = #tpu.contract_precision<fp32>} : vector<2x32xf32>, vector<32x128xf32>, vector<2x128xf32> -> vector<2x128xf32>
    %244 = arith.addf %242, %243 : vector<2x128xf32>
    %245 = arith.negf %244 : vector<2x128xf32>
    %246 = math.exp %245 : vector<2x128xf32>
    %cst_48 = arith.constant 1.000000e+00 : f32
    %247 = vector.broadcast %cst_48 : f32 to vector<2x128xf32>
    %248 = arith.addf %247, %246 : vector<2x128xf32>
    %249 = arith.divf %247, %248 : vector<2x128xf32>
    %250 = vector.extract_strided_slice %249 {offsets = [0, 0], sizes = [2, 32], strides = [1, 1]} : vector<2x128xf32> to vector<2x32xf32>
    %251 = vector.extract_strided_slice %249 {offsets = [0, 32], sizes = [2, 32], strides = [1, 1]} : vector<2x128xf32> to vector<2x32xf32>
    %252 = vector.extract_strided_slice %249 {offsets = [0, 96], sizes = [2, 32], strides = [1, 1]} : vector<2x128xf32> to vector<2x32xf32>
    %253 = vector.extract_strided_slice %244 {offsets = [0, 64], sizes = [2, 32], strides = [1, 1]} : vector<2x128xf32> to vector<2x32xf32>
    %254 = math.tanh %253 : vector<2x32xf32>
    %255 = arith.mulf %251, %219 : vector<2x32xf32>
    %256 = arith.mulf %250, %254 : vector<2x32xf32>
    %257 = arith.addf %255, %256 : vector<2x32xf32>
    %258 = math.tanh %257 : vector<2x32xf32>
    %259 = arith.mulf %252, %258 : vector<2x32xf32>
    %cst_49 = arith.constant dense<0.000000e+00> : vector<2x128xf32>
    %260 = tpu.matmul %259, %2, %cst_49 {dimension_numbers = #tpu.dot_dimension_numbers<[1], [0], [0], [1], [0, 0, 1, 1], [], []>, precision = #tpu.contract_precision<fp32>} : vector<2x32xf32>, vector<32x128xf32>, vector<2x128xf32> -> vector<2x128xf32>
    %cst_50 = arith.constant dense<0.000000e+00> : vector<2x128xf32>
    %261 = tpu.matmul %241, %4, %cst_50 {dimension_numbers = #tpu.dot_dimension_numbers<[1], [0], [0], [1], [0, 0, 1, 1], [], []>, precision = #tpu.contract_precision<fp32>} : vector<2x32xf32>, vector<32x128xf32>, vector<2x128xf32> -> vector<2x128xf32>
    %262 = arith.addf %260, %261 : vector<2x128xf32>
    %263 = vector.broadcast %6 : vector<1x128xf32> to vector<2x128xf32>
    %264 = arith.addf %262, %263 : vector<2x128xf32>
    %265 = arith.negf %264 : vector<2x128xf32>
    %266 = math.exp %265 : vector<2x128xf32>
    %cst_51 = arith.constant 1.000000e+00 : f32
    %267 = vector.broadcast %cst_51 : f32 to vector<2x128xf32>
    %268 = arith.addf %267, %266 : vector<2x128xf32>
    %269 = arith.divf %267, %268 : vector<2x128xf32>
    %270 = vector.extract_strided_slice %269 {offsets = [0, 0], sizes = [2, 32], strides = [1, 1]} : vector<2x128xf32> to vector<2x32xf32>
    %271 = vector.extract_strided_slice %269 {offsets = [0, 32], sizes = [2, 32], strides = [1, 1]} : vector<2x128xf32> to vector<2x32xf32>
    %272 = vector.extract_strided_slice %269 {offsets = [0, 96], sizes = [2, 32], strides = [1, 1]} : vector<2x128xf32> to vector<2x32xf32>
    %273 = vector.extract_strided_slice %264 {offsets = [0, 64], sizes = [2, 32], strides = [1, 1]} : vector<2x128xf32> to vector<2x32xf32>
    %274 = math.tanh %273 : vector<2x32xf32>
    %275 = arith.mulf %271, %239 : vector<2x32xf32>
    %276 = arith.mulf %270, %274 : vector<2x32xf32>
    %277 = arith.addf %275, %276 : vector<2x32xf32>
    %278 = math.tanh %277 : vector<2x32xf32>
    %279 = arith.mulf %272, %278 : vector<2x32xf32>
    %280 = vector.extract_strided_slice %9 {offsets = [14, 0], sizes = [2, 128], strides = [1, 1]} : vector<16x128xf32> to vector<2x128xf32>
    %cst_52 = arith.constant dense<0.000000e+00> : vector<2x128xf32>
    %281 = tpu.matmul %259, %3, %cst_52 {dimension_numbers = #tpu.dot_dimension_numbers<[1], [0], [0], [1], [0, 0, 1, 1], [], []>, precision = #tpu.contract_precision<fp32>} : vector<2x32xf32>, vector<32x128xf32>, vector<2x128xf32> -> vector<2x128xf32>
    %282 = arith.addf %280, %281 : vector<2x128xf32>
    %283 = arith.negf %282 : vector<2x128xf32>
    %284 = math.exp %283 : vector<2x128xf32>
    %cst_53 = arith.constant 1.000000e+00 : f32
    %285 = vector.broadcast %cst_53 : f32 to vector<2x128xf32>
    %286 = arith.addf %285, %284 : vector<2x128xf32>
    %287 = arith.divf %285, %286 : vector<2x128xf32>
    %288 = vector.extract_strided_slice %287 {offsets = [0, 0], sizes = [2, 32], strides = [1, 1]} : vector<2x128xf32> to vector<2x32xf32>
    %289 = vector.extract_strided_slice %287 {offsets = [0, 32], sizes = [2, 32], strides = [1, 1]} : vector<2x128xf32> to vector<2x32xf32>
    %290 = vector.extract_strided_slice %287 {offsets = [0, 96], sizes = [2, 32], strides = [1, 1]} : vector<2x128xf32> to vector<2x32xf32>
    %291 = vector.extract_strided_slice %282 {offsets = [0, 64], sizes = [2, 32], strides = [1, 1]} : vector<2x128xf32> to vector<2x32xf32>
    %292 = math.tanh %291 : vector<2x32xf32>
    %293 = arith.mulf %289, %257 : vector<2x32xf32>
    %294 = arith.mulf %288, %292 : vector<2x32xf32>
    %295 = arith.addf %293, %294 : vector<2x32xf32>
    %296 = math.tanh %295 : vector<2x32xf32>
    %297 = arith.mulf %290, %296 : vector<2x32xf32>
    %cst_54 = arith.constant dense<0.000000e+00> : vector<2x128xf32>
    %298 = tpu.matmul %297, %2, %cst_54 {dimension_numbers = #tpu.dot_dimension_numbers<[1], [0], [0], [1], [0, 0, 1, 1], [], []>, precision = #tpu.contract_precision<fp32>} : vector<2x32xf32>, vector<32x128xf32>, vector<2x128xf32> -> vector<2x128xf32>
    %cst_55 = arith.constant dense<0.000000e+00> : vector<2x128xf32>
    %299 = tpu.matmul %279, %4, %cst_55 {dimension_numbers = #tpu.dot_dimension_numbers<[1], [0], [0], [1], [0, 0, 1, 1], [], []>, precision = #tpu.contract_precision<fp32>} : vector<2x32xf32>, vector<32x128xf32>, vector<2x128xf32> -> vector<2x128xf32>
    %300 = arith.addf %298, %299 : vector<2x128xf32>
    %301 = vector.broadcast %6 : vector<1x128xf32> to vector<2x128xf32>
    %302 = arith.addf %300, %301 : vector<2x128xf32>
    %303 = arith.negf %302 : vector<2x128xf32>
    %304 = math.exp %303 : vector<2x128xf32>
    %cst_56 = arith.constant 1.000000e+00 : f32
    %305 = vector.broadcast %cst_56 : f32 to vector<2x128xf32>
    %306 = arith.addf %305, %304 : vector<2x128xf32>
    %307 = arith.divf %305, %306 : vector<2x128xf32>
    %308 = vector.extract_strided_slice %307 {offsets = [0, 0], sizes = [2, 32], strides = [1, 1]} : vector<2x128xf32> to vector<2x32xf32>
    %309 = vector.extract_strided_slice %307 {offsets = [0, 32], sizes = [2, 32], strides = [1, 1]} : vector<2x128xf32> to vector<2x32xf32>
    %310 = vector.extract_strided_slice %307 {offsets = [0, 96], sizes = [2, 32], strides = [1, 1]} : vector<2x128xf32> to vector<2x32xf32>
    %311 = vector.extract_strided_slice %302 {offsets = [0, 64], sizes = [2, 32], strides = [1, 1]} : vector<2x128xf32> to vector<2x32xf32>
    %312 = math.tanh %311 : vector<2x32xf32>
    %313 = arith.mulf %309, %277 : vector<2x32xf32>
    %314 = arith.mulf %308, %312 : vector<2x32xf32>
    %315 = arith.addf %313, %314 : vector<2x32xf32>
    %316 = math.tanh %315 : vector<2x32xf32>
    %317 = arith.mulf %310, %316 : vector<2x32xf32>
    %318 = tpu.concatenate %51, %89, %127, %165, %203, %241, %279, %317 in 1 : vector<2x32xf32>, vector<2x32xf32>, vector<2x32xf32>, vector<2x32xf32>, vector<2x32xf32>, vector<2x32xf32>, vector<2x32xf32>, vector<2x32xf32> -> vector<2x256xf32>
    %c0_57 = arith.constant 0 : index
    %c0_58 = arith.constant 0 : index
    %319 = vector.load %arg7[%c0_57, %c0_58] : memref<2x256xf32, #tpu.memory_space<vmem>>, vector<2x256xf32>
    tpu.vector_store %arg7[%c0_57, %c0_58], %318 {strides = array<i32>} : memref<2x256xf32, #tpu.memory_space<vmem>>, vector<2x256xf32>,
    %320 = vector.shape_cast %297 : vector<2x32xf32> to vector<1x2x32xf32>
    %321 = vector.shape_cast %317 : vector<2x32xf32> to vector<1x2x32xf32>
    %322 = tpu.concatenate %320, %321 in 0 : vector<1x2x32xf32>, vector<1x2x32xf32> -> vector<2x2x32xf32>
    %c0_59 = arith.constant 0 : index
    %c0_60 = arith.constant 0 : index
    %c0_61 = arith.constant 0 : index
    %323 = vector.load %arg8[%c0_59, %c0_60, %c0_61] : memref<2x2x32xf32, #tpu.memory_space<vmem>>, vector<2x2x32xf32>
    tpu.vector_store %arg8[%c0_59, %c0_60, %c0_61], %322 {strides = array<i32>} : memref<2x2x32xf32, #tpu.memory_space<vmem>>, vector<2x2x32xf32>,
    %324 = vector.shape_cast %295 : vector<2x32xf32> to vector<1x2x32xf32>
    %325 = vector.shape_cast %315 : vector<2x32xf32> to vector<1x2x32xf32>
    %326 = tpu.concatenate %324, %325 in 0 : vector<1x2x32xf32>, vector<1x2x32xf32> -> vector<2x2x32xf32>
    %c0_62 = arith.constant 0 : index
    %c0_63 = arith.constant 0 : index
    %c0_64 = arith.constant 0 : index
    %327 = vector.load %arg9[%c0_62, %c0_63, %c0_64] : memref<2x2x32xf32, #tpu.memory_space<vmem>>, vector<2x2x32xf32>
    tpu.vector_store %arg9[%c0_62, %c0_63, %c0_64], %326 {strides = array<i32>} : memref<2x2x32xf32, #tpu.memory_space<vmem>>, vector<2x2x32xf32>,
    return
  }
}

</mosaic_0001>

<llo_original>
// kernel: tpu_custom_call.1
$region0: #{tpu_custom_call.1}
  #allocation0 [shape = 'u32[]', space=smem, size = 0x4, offset = 0x4, fixed_abs, tag = 'smem constant byte address 0x4 - core index']
  #allocation1 [shape = 'u32[72,128]{1,0:T(1,128)}', space=vmem, size = 0x9000, scoped, tag = 'internal scratch']
  %s0 = inlined_call_operand.vmem [shape: f32[16,6], index: 0, kind: input, shape index: {}]
  %s1 = inlined_call_operand.vmem [shape: f32[6,128], index: 1, kind: input, shape index: {}]
  %s2 = inlined_call_operand.hbm [shape: f32[32,128], index: 2, kind: input, shape index: {}]
  %s3 = inlined_call_operand.vmem [shape: f32[1,128], index: 3, kind: input, shape index: {}]
  %s4 = inlined_call_operand.hbm [shape: f32[32,128], index: 4, kind: input, shape index: {}]
  %s5 = inlined_call_operand.hbm [shape: f32[32,128], index: 5, kind: input, shape index: {}]
  %s6 = inlined_call_operand.vmem [shape: f32[1,128], index: 6, kind: input, shape index: {}]
  %s7 = inlined_call_operand.hbm [shape: f32[2,256], index: 7, kind: output, shape index: {0}]
  %s8 = inlined_call_operand.hbm [shape: f32[2,2,32], index: 8, kind: output, shape index: {1}]
  %s9 = inlined_call_operand.hbm [shape: f32[2,2,32], index: 9, kind: output, shape index: {2}]
  %10 = xla_tuple %s7, %s8, %s9
  %s11 = sld [smem:[#allocation0]]
  $region66: #{tpu_custom_call.1} parent=0
    _
  %s13 = ssub.s32 1, %s11
  %s14 = scalar_select 0, %s13, %s11
  $region1: #{tpu_custom_call.1} parent=0
    #allocation2 [shape = 'u8[16384]{0}', space=vmem, size = 0x4000, scoped, tag = 'input window, operand 2, single buffered']
    #allocation3 [shape = 's32[1]{0}', space=sflag, size = 0x4, scoped, tag = 'scoped memory for tpu_custom_call.1']
    #allocation4 [shape = 's32[1]{0}', space=sflag, size = 0x4, scoped, tag = 'scoped memory for tpu_custom_call.1']
    #allocation5 [shape = 'u8[16384]{0}', space=vmem, size = 0x4000, scoped, tag = 'input window, operand 4, single buffered']
    #allocation6 [shape = 's32[1]{0}', space=sflag, size = 0x4, scoped, tag = 'scoped memory for tpu_custom_call.1']
    #allocation7 [shape = 'u8[16384]{0}', space=vmem, size = 0x4000, scoped, tag = 'input window, operand 5, single buffered']
    #allocation8 [shape = 'u8[2048]{0}', space=vmem, size = 0x800, scoped, tag = 'output window, operand 0, single buffered']
    #allocation9 [shape = 'u8[2048]{0}', space=vmem, size = 0x800, scoped, tag = 'output window, operand 1, single buffered']
    #allocation10 [shape = 's32[1]{0}', space=sflag, size = 0x4, scoped, tag = 'scoped memory for tpu_custom_call.1']
    #allocation11 [shape = 'u8[2048]{0}', space=vmem, size = 0x800, scoped, tag = 'output window, operand 2, single buffered']
    %15 = vsyncpa [#allocation3], 0
    %16 = vsyncpa [#allocation6], 0
    %17 = vsyncpa [#allocation4], 0
    %18 = vsyncpa [#allocation10], 0
    // Predicated region
    $region2: #{tpu_custom_call.1} parent=1 // pred_check
      _
    $region3: #{tpu_custom_call.1} parent=1 // pred_check_branch
      %20 = sbr.rel (0) target = $region5
    $region4: #{tpu_custom_call.1} parent=1 // pred_region
      _
    $region5: #{tpu_custom_call.1} parent=1 // pred_fallthru
      _
    // Predicated region
    $region6: #{tpu_custom_call.1} parent=1 // pred_check
      _
    $region7: #{tpu_custom_call.1} parent=1 // pred_check_branch
      %22 = sbr.rel (0) target = $region9
    $region8: #{tpu_custom_call.1} parent=1 // pred_region
      _
    $region9: #{tpu_custom_call.1} parent=1 // pred_fallthru
      _
    // Predicated region
    $region10: #{tpu_custom_call.1} parent=1 // pred_check
      _
    $region11: #{tpu_custom_call.1} parent=1 // pred_check_branch
      %24 = sbr.rel (0) target = $region13
    $region12: #{tpu_custom_call.1} parent=1 // pred_region
      %26 = vsyncadd [#allocation3], 0
      %s27 = sshll.u32 %s2, 4
      %s28 = int_to_ptr.hbm [resolvable:$true] %s27
      %s29 = sshll.u32 [#allocation2], 4
      %s30 = int_to_ptr.vmem [resolvable:$true] %s29
      %35 = dma.hbm_to_vmem [thread:$0]  %s28, 512, %s30, [#allocation3], 128, 128, 8
    $region13: #{tpu_custom_call.1} parent=1 // pred_fallthru
      _
    // Predicated region
    $region14: #{tpu_custom_call.1} parent=1 // pred_check
      _
    $region15: #{tpu_custom_call.1} parent=1 // pred_check_branch
      %37 = sbr.rel (0) target = $region17
    $region16: #{tpu_custom_call.1} parent=1 // pred_region
      _
    $region17: #{tpu_custom_call.1} parent=1 // pred_fallthru
      _
    // Predicated region
    $region18: #{tpu_custom_call.1} parent=1 // pred_check
      _
    $region19: #{tpu_custom_call.1} parent=1 // pred_check_branch
      %39 = sbr.rel (0) target = $region21
    $region20: #{tpu_custom_call.1} parent=1 // pred_region
      %41 = vsyncadd [#allocation6], 0
      %s42 = sshll.u32 %s4, 4
      %s43 = int_to_ptr.hbm [resolvable:$true] %s42
      %s44 = sshll.u32 [#allocation5], 4
      %s45 = int_to_ptr.vmem [resolvable:$true] %s44
      %50 = dma.hbm_to_vmem [thread:$0]  %s43, 512, %s45, [#allocation6], 128, 128, 8
    $region21: #{tpu_custom_call.1} parent=1 // pred_fallthru
      _
    // Predicated region
    $region22: #{tpu_custom_call.1} parent=1 // pred_check
      _
    $region23: #{tpu_custom_call.1} parent=1 // pred_check_branch
      %52 = sbr.rel (0) target = $region25
    $region24: #{tpu_custom_call.1} parent=1 // pred_region
      %54 = vsyncadd [#allocation6], 0
      %s55 = sshll.u32 %s5, 4
      %s56 = int_to_ptr.hbm [resolvable:$true] %s55
      %s57 = sshll.u32 [#allocation7], 4
      %s58 = int_to_ptr.vmem [resolvable:$true] %s57
      %63 = dma.hbm_to_vmem [thread:$0]  %s56, 512, %s58, [#allocation6], 128, 128, 8
    $region25: #{tpu_custom_call.1} parent=1 // pred_fallthru
      _
    // Predicated region
    $region26: #{tpu_custom_call.1} parent=1 // pred_check
      _
    $region27: #{tpu_custom_call.1} parent=1 // pred_check_branch
      %65 = sbr.rel (0) target = $region29
    $region28: #{tpu_custom_call.1} parent=1 // pred_region
      _
    $region29: #{tpu_custom_call.1} parent=1 // pred_fallthru
      _
    // Predicated region
    $region30: #{tpu_custom_call.1} parent=1 // pred_check
      _
    $region31: #{tpu_custom_call.1} parent=1 // pred_check_branch
      %67 = sbr.rel (0) target = $region33
    $region32: #{tpu_custom_call.1} parent=1 // pred_region
      %69 = dma.done [#allocation3], 512
    $region33: #{tpu_custom_call.1} parent=1 // pred_fallthru
      _
    // Predicated region
    $region34: #{tpu_custom_call.1} parent=1 // pred_check
      _
    $region35: #{tpu_custom_call.1} parent=1 // pred_check_branch
      %71 = sbr.rel (0) target = $region37
    $region36: #{tpu_custom_call.1} parent=1 // pred_region
      %73 = dma.done [#allocation6], 512
    $region37: #{tpu_custom_call.1} parent=1 // pred_fallthru
      _
    // Predicated region
    $region38: #{tpu_custom_call.1} parent=1 // pred_check
      _
    $region39: #{tpu_custom_call.1} parent=1 // pred_check_branch
      %75 = sbr.rel (0) target = $region41
    $region40: #{tpu_custom_call.1} parent=1 // pred_region
      %77 = dma.done [#allocation6], 512
    $region41: #{tpu_custom_call.1} parent=1 // pred_fallthru
      _
    %v78 = vld [vmem:[%s0] sm:$0xff]
    %v79 = vld [vmem:[%s0 + $0x8] sm:$0xff]
    %v80 = vld [vmem:[%s1] sm:$0x3f]
    %v81 = vld [vmem:[#allocation5] sm:$0xff]
    %v82 = vld [vmem:[#allocation5 + $0x8] sm:$0xff]
    %v83 = vld [vmem:[#allocation5 + $0x10] sm:$0xff]
    %v84 = vld [vmem:[#allocation5 + $0x18] sm:$0xff]
    %v85 = vld [vmem:[#allocation2] sm:$0xff]
    %v86 = vld [vmem:[#allocation2 + $0x8] sm:$0xff]
    %v87 = vld [vmem:[#allocation2 + $0x10] sm:$0xff]
    %v88 = vld [vmem:[#allocation2 + $0x18] sm:$0xff]
    %v89 = vld [vmem:[#allocation7] sm:$0xff]
    %v90 = vld [vmem:[#allocation7 + $0x8] sm:$0xff]
    %v91 = vld [vmem:[#allocation7 + $0x10] sm:$0xff]
    %v92 = vld [vmem:[#allocation7 + $0x18] sm:$0xff]
    %v93 = vld [vmem:[%s3] sm:$0x1]
    %v94 = vld [vmem:[%s6] sm:$0x1]
    %v96 = vperm.slane %v93, 0
    %vm98 = vcmask 48128
    %v100 = vsel %vm98, %v78, 0
    %v103 = vsel %vm98, %v79, 0
    %vm105 = vcmask 1045504
    %v107 = vsel %vm105, %v80, 0
    %109 = vmatpush.msra.mxu0 0.0
    %110 = vmatpush.msra.mxu0 0.0
    %111 = vmatpush.msra.mxu0 0.0
    %112 = vmatpush.msra.mxu0 0.0
    %113 = vmatpush.msra.mxu0 0.0
    %114 = vmatpush.msra.mxu0 0.0
    %115 = vmatpush.msra.mxu0 0.0
    %116 = vmatpush.msra.mxu0 0.0
    %117 = vmatpush.msra.mxu0 0.0
    %118 = vmatpush.msra.mxu0 0.0
    %119 = vmatpush.msra.mxu0 0.0
    %120 = vmatpush.msra.mxu0 0.0
    %121 = vmatpush.msra.mxu0 0.0
    %122 = vmatpush.msra.mxu0 0.0
    %123 = vmatpush.msra.mxu0 0.0
    %v124 = vand.u32 %v107, 4294901760
    %125 = vmatpush.msra.mxu0 %v124
    %v126 = vand.u32 %v100, 4294901760
    %v127 = vsub.f32 %v100, %v126
    %v128 = vand.u32 %v127, 4294901760
    %v129 = vsub.f32 %v127, %v128
    %v130 = vand.u32 %v129, 4294901760
    %131 = vmatmul.f32.gmra.mxu0 %v130
    %v132 = vpop.f32.mrf.mxu0
    %v133 = vadd.f32 %v96, %v132
    %v134 = vand.u32 %v103, 4294901760
    %v135 = vsub.f32 %v103, %v134
    %v136 = vand.u32 %v135, 4294901760
    %v137 = vsub.f32 %v135, %v136
    %v138 = vand.u32 %v137, 4294901760
    %139 = vmatmul.f32.gmra.mxu0 %v138
    %v140 = vpop.f32.mrf.mxu0
    %v141 = vadd.f32 %v96, %v140
    %142 = vdwg.mxu0
    %143 = vmatpush.msra.mxu0 0.0
    %144 = vmatpush.msra.mxu0 0.0
    %145 = vmatpush.msra.mxu0 0.0
    %146 = vmatpush.msra.mxu0 0.0
    %147 = vmatpush.msra.mxu0 0.0
    %148 = vmatpush.msra.mxu0 0.0
    %149 = vmatpush.msra.mxu0 0.0
    %150 = vmatpush.msra.mxu0 0.0
    %151 = vmatpush.msra.mxu0 0.0
    %152 = vmatpush.msra.mxu0 0.0
    %153 = vmatpush.msra.mxu0 0.0
    %154 = vmatpush.msra.mxu0 0.0
    %155 = vmatpush.msra.mxu0 0.0
    %156 = vmatpush.msra.mxu0 0.0
    %157 = vmatpush.msra.mxu0 0.0
    %v158 = vand.u32 %v107, 4294901760
    %v159 = vsub.f32 %v107, %v158
    %v160 = vand.u32 %v159, 4294901760
    %v161 = vsub.f32 %v159, %v160
    %v162 = vand.u32 %v161, 4294901760
    %163 = vmatpush.msra.mxu0 %v162
    %v164 = vand.u32 %v100, 4294901760
    %165 = vmatmul.f32.gmra.mxu0 %v164
    %v166 = vpop.f32.mrf.mxu0
    %v167 = vadd.f32 %v133, %v166
    %v168 = vand.u32 %v103, 4294901760
    %169 = vmatmul.f32.gmra.mxu0 %v168
    %v170 = vpop.f32.mrf.mxu0
    %v171 = vadd.f32 %v141, %v170
    %172 = vdwg.mxu0
    %173 = vmatpush.msra.mxu0 0.0
    %174 = vmatpush.msra.mxu0 0.0
    %175 = vmatpush.msra.mxu0 0.0
    %176 = vmatpush.msra.mxu0 0.0
    %177 = vmatpush.msra.mxu0 0.0
    %178 = vmatpush.msra.mxu0 0.0
    %179 = vmatpush.msra.mxu0 0.0
    %180 = vmatpush.msra.mxu0 0.0
    %181 = vmatpush.msra.mxu0 0.0
    %182 = vmatpush.msra.mxu0 0.0
    %183 = vmatpush.msra.mxu0 0.0
    %184 = vmatpush.msra.mxu0 0.0
    %185 = vmatpush.msra.mxu0 0.0
    %186 = vmatpush.msra.mxu0 0.0
    %187 = vmatpush.msra.mxu0 0.0
    %v188 = vand.u32 %v107, 4294901760
    %v189 = vsub.f32 %v107, %v188
    %190 = vmatpush.msra.mxu0 %v189
    %v191 = vand.u32 %v100, 4294901760
    %v192 = vsub.f32 %v100, %v191
    %193 = vmatmul.f32.gmra.mxu0 %v192
    %v194 = vpop.f32.mrf.mxu0
    %v195 = vadd.f32 %v167, %v194
    %v196 = vand.u32 %v103, 4294901760
    %v197 = vsub.f32 %v103, %v196
    %198 = vmatmul.f32.gmra.mxu0 %v197
    %v199 = vpop.f32.mrf.mxu0
    %v200 = vadd.f32 %v171, %v199
    %201 = vdwg.mxu0
    %202 = vmatpush.msra.mxu0 0.0
    %203 = vmatpush.msra.mxu0 0.0
    %204 = vmatpush.msra.mxu0 0.0
    %205 = vmatpush.msra.mxu0 0.0
    %206 = vmatpush.msra.mxu0 0.0
    %207 = vmatpush.msra.mxu0 0.0
    %208 = vmatpush.msra.mxu0 0.0
    %209 = vmatpush.msra.mxu0 0.0
    %210 = vmatpush.msra.mxu0 0.0
    %211 = vmatpush.msra.mxu0 0.0
    %212 = vmatpush.msra.mxu0 0.0
    %213 = vmatpush.msra.mxu0 0.0
    %214 = vmatpush.msra.mxu0 0.0
    %215 = vmatpush.msra.mxu0 0.0
    %216 = vmatpush.msra.mxu0 0.0
    %v217 = vand.u32 %v107, 4294901760
    %218 = vmatpush.msra.mxu0 %v217
    %v219 = vand.u32 %v100, 4294901760
    %v220 = vsub.f32 %v100, %v219
    %v221 = vand.u32 %v220, 4294901760
    %222 = vmatmul.f32.gmra.mxu0 %v221
    %v223 = vpop.f32.mrf.mxu0
    %v224 = vadd.f32 %v195, %v223
    %v225 = vand.u32 %v103, 4294901760
    %v226 = vsub.f32 %v103, %v225
    %v227 = vand.u32 %v226, 4294901760
    %228 = vmatmul.f32.gmra.mxu0 %v227
    %v229 = vpop.f32.mrf.mxu0
    %v230 = vadd.f32 %v200, %v229
    %231 = vdwg.mxu0
    %232 = vmatpush.msra.mxu0 0.0
    %233 = vmatpush.msra.mxu0 0.0
    %234 = vmatpush.msra.mxu0 0.0
    %235 = vmatpush.msra.mxu0 0.0
    %236 = vmatpush.msra.mxu0 0.0
    %237 = vmatpush.msra.mxu0 0.0
    %238 = vmatpush.msra.mxu0 0.0
    %239 = vmatpush.msra.mxu0 0.0
    %240 = vmatpush.msra.mxu0 0.0
    %241 = vmatpush.msra.mxu0 0.0
    %242 = vmatpush.msra.mxu0 0.0
    %243 = vmatpush.msra.mxu0 0.0
    %244 = vmatpush.msra.mxu0 0.0
    %245 = vmatpush.msra.mxu0 0.0
    %246 = vmatpush.msra.mxu0 0.0
    %v247 = vand.u32 %v107, 4294901760
    %v248 = vsub.f32 %v107, %v247
    %v249 = vand.u32 %v248, 4294901760
    %250 = vmatpush.msra.mxu0 %v249
    %v251 = vand.u32 %v100, 4294901760
    %252 = vmatmul.f32.gmra.mxu0 %v251
    %v253 = vpop.f32.mrf.mxu0
    %v254 = vadd.f32 %v224, %v253
    %v255 = vand.u32 %v103, 4294901760
    %256 = vmatmul.f32.gmra.mxu0 %v255
    %v257 = vpop.f32.mrf.mxu0
    %v258 = vadd.f32 %v230, %v257
    %259 = vdwg.mxu0
    %260 = vmatpush.msra.mxu0 0.0
    %261 = vmatpush.msra.mxu0 0.0
    %262 = vmatpush.msra.mxu0 0.0
    %263 = vmatpush.msra.mxu0 0.0
    %264 = vmatpush.msra.mxu0 0.0
    %265 = vmatpush.msra.mxu0 0.0
    %266 = vmatpush.msra.mxu0 0.0
    %267 = vmatpush.msra.mxu0 0.0
    %268 = vmatpush.msra.mxu0 0.0
    %269 = vmatpush.msra.mxu0 0.0
    %270 = vmatpush.msra.mxu0 0.0
    %271 = vmatpush.msra.mxu0 0.0
    %272 = vmatpush.msra.mxu0 0.0
    %273 = vmatpush.msra.mxu0 0.0
    %274 = vmatpush.msra.mxu0 0.0
    %v275 = vand.u32 %v107, 4294901760
    %276 = vmatpush.msra.mxu0 %v275
    %v277 = vand.u32 %v100, 4294901760
    %278 = vmatmul.f32.gmra.mxu0 %v277
    %v279 = vpop.f32.mrf.mxu0
    %v280 = vadd.f32 %v254, %v279
    %v281 = vand.u32 %v103, 4294901760
    %282 = vmatmul.f32.gmra.mxu0 %v281
    %v283 = vpop.f32.mrf.mxu0
    %v284 = vadd.f32 %v258, %v283
    %285 = vdwg.mxu0
    %vm286 = vcmask 261120
    %v288 = vsel %vm286, 0.0, 0
    %290 = vmatpush.msra.mxu0 0.0
    %291 = vmatpush.msra.mxu0 0.0
    %292 = vmatpush.msra.mxu0 0.0
    %293 = vmatpush.msra.mxu0 0.0
    %294 = vmatpush.msra.mxu0 0.0
    %295 = vmatpush.msra.mxu0 0.0
    %296 = vmatpush.msra.mxu0 0.0
    %297 = vmatpush.msra.mxu0 0.0
    %298 = vmatpush.msra.mxu0 0.0
    %299 = vmatpush.msra.mxu0 0.0
    %300 = vmatpush.msra.mxu0 0.0
    %301 = vmatpush.msra.mxu0 0.0
    %v302 = vand.u32 %v88, 4294901760
    %303 = vmatpush.msra.mxu0 %v302
    %v304 = vand.u32 %v87, 4294901760
    %305 = vmatpush.msra.mxu0 %v304
    %v306 = vand.u32 %v86, 4294901760
    %307 = vmatpush.msra.mxu0 %v306
    %v308 = vand.u32 %v85, 4294901760
    %309 = vmatpush.msra.mxu0 %v308
    %v310 = vand.u32 %v288, 4294901760
    %v311 = vsub.f32 %v288, %v310
    %v312 = vand.u32 %v311, 4294901760
    %v313 = vsub.f32 %v311, %v312
    %v314 = vand.u32 %v313, 4294901760
    %315 = vmatmul.f32.gmra.mxu0 %v314
    %v316 = vpop.f32.mrf.mxu0
    %v317 = vadd.f32 0.0, %v316
    %318 = vdwg.mxu0
    %319 = vmatpush.msra.mxu0 0.0
    %320 = vmatpush.msra.mxu0 0.0
    %321 = vmatpush.msra.mxu0 0.0
    %322 = vmatpush.msra.mxu0 0.0
    %323 = vmatpush.msra.mxu0 0.0
    %324 = vmatpush.msra.mxu0 0.0
    %325 = vmatpush.msra.mxu0 0.0
    %326 = vmatpush.msra.mxu0 0.0
    %327 = vmatpush.msra.mxu0 0.0
    %328 = vmatpush.msra.mxu0 0.0
    %329 = vmatpush.msra.mxu0 0.0
    %330 = vmatpush.msra.mxu0 0.0
    %v331 = vand.u32 %v88, 4294901760
    %v332 = vsub.f32 %v88, %v331
    %v333 = vand.u32 %v332, 4294901760
    %v334 = vsub.f32 %v332, %v333
    %v335 = vand.u32 %v334, 4294901760
    %336 = vmatpush.msra.mxu0 %v335
    %v337 = vand.u32 %v87, 4294901760
    %v338 = vsub.f32 %v87, %v337
    %v339 = vand.u32 %v338, 4294901760
    %v340 = vsub.f32 %v338, %v339
    %v341 = vand.u32 %v340, 4294901760
    %342 = vmatpush.msra.mxu0 %v341
    %v343 = vand.u32 %v86, 4294901760
    %v344 = vsub.f32 %v86, %v343
    %v345 = vand.u32 %v344, 4294901760
    %v346 = vsub.f32 %v344, %v345
    %v347 = vand.u32 %v346, 4294901760
    %348 = vmatpush.msra.mxu0 %v347
    %v349 = vand.u32 %v85, 4294901760
    %v350 = vsub.f32 %v85, %v349
    %v351 = vand.u32 %v350, 4294901760
    %v352 = vsub.f32 %v350, %v351
    %v353 = vand.u32 %v352, 4294901760
    %354 = vmatpush.msra.mxu0 %v353
    %v355 = vand.u32 %v288, 4294901760
    %356 = vmatmul.f32.gmra.mxu0 %v355
    %v357 = vpop.f32.mrf.mxu0
    %v358 = vadd.f32 %v317, %v357
    %359 = vdwg.mxu0
    %360 = vmatpush.msra.mxu0 0.0
    %361 = vmatpush.msra.mxu0 0.0
    %362 = vmatpush.msra.mxu0 0.0
    %363 = vmatpush.msra.mxu0 0.0
    %364 = vmatpush.msra.mxu0 0.0
    %365 = vmatpush.msra.mxu0 0.0
    %366 = vmatpush.msra.mxu0 0.0
    %367 = vmatpush.msra.mxu0 0.0
    %368 = vmatpush.msra.mxu0 0.0
    %369 = vmatpush.msra.mxu0 0.0
    %370 = vmatpush.msra.mxu0 0.0
    %371 = vmatpush.msra.mxu0 0.0
    %v372 = vand.u32 %v88, 4294901760
    %v373 = vsub.f32 %v88, %v372
    %374 = vmatpush.msra.mxu0 %v373
    %v375 = vand.u32 %v87, 4294901760
    %v376 = vsub.f32 %v87, %v375
    %377 = vmatpush.msra.mxu0 %v376
    %v378 = vand.u32 %v86, 4294901760
    %v379 = vsub.f32 %v86, %v378
    %380 = vmatpush.msra.mxu0 %v379
    %v381 = vand.u32 %v85, 4294901760
    %v382 = vsub.f32 %v85, %v381
    %383 = vmatpush.msra.mxu0 %v382
    %v384 = vand.u32 %v288, 4294901760
    %v385 = vsub.f32 %v288, %v384
    %386 = vmatmul.f32.gmra.mxu0 %v385
    %v387 = vpop.f32.mrf.mxu0
    %v388 = vadd.f32 %v358, %v387
    %389 = vdwg.mxu0
    %390 = vmatpush.msra.mxu0 0.0
    %391 = vmatpush.msra.mxu0 0.0
    %392 = vmatpush.msra.mxu0 0.0
    %393 = vmatpush.msra.mxu0 0.0
    %394 = vmatpush.msra.mxu0 0.0
    %395 = vmatpush.msra.mxu0 0.0
    %396 = vmatpush.msra.mxu0 0.0
    %397 = vmatpush.msra.mxu0 0.0
    %398 = vmatpush.msra.mxu0 0.0
    %399 = vmatpush.msra.mxu0 0.0
    %400 = vmatpush.msra.mxu0 0.0
    %401 = vmatpush.msra.mxu0 0.0
    %v402 = vand.u32 %v88, 4294901760
    %403 = vmatpush.msra.mxu0 %v402
    %v404 = vand.u32 %v87, 4294901760
    %405 = vmatpush.msra.mxu0 %v404
    %v406 = vand.u32 %v86, 4294901760
    %407 = vmatpush.msra.mxu0 %v406
    %v408 = vand.u32 %v85, 4294901760
    %409 = vmatpush.msra.mxu0 %v408
    %v410 = vand.u32 %v288, 4294901760
    %v411 = vsub.f32 %v288, %v410
    %v412 = vand.u32 %v411, 4294901760
    %413 = vmatmul.f32.gmra.mxu0 %v412
    %v414 = vpop.f32.mrf.mxu0
    %v415 = vadd.f32 %v388, %v414
    %416 = vdwg.mxu0
    %417 = vmatpush.msra.mxu0 0.0
    %418 = vmatpush.msra.mxu0 0.0
    %419 = vmatpush.msra.mxu0 0.0
    %420 = vmatpush.msra.mxu0 0.0
    %421 = vmatpush.msra.mxu0 0.0
    %422 = vmatpush.msra.mxu0 0.0
    %423 = vmatpush.msra.mxu0 0.0
    %424 = vmatpush.msra.mxu0 0.0
    %425 = vmatpush.msra.mxu0 0.0
    %426 = vmatpush.msra.mxu0 0.0
    %427 = vmatpush.msra.mxu0 0.0
    %428 = vmatpush.msra.mxu0 0.0
    %v429 = vand.u32 %v88, 4294901760
    %v430 = vsub.f32 %v88, %v429
    %v431 = vand.u32 %v430, 4294901760
    %432 = vmatpush.msra.mxu0 %v431
    %v433 = vand.u32 %v87, 4294901760
    %v434 = vsub.f32 %v87, %v433
    %v435 = vand.u32 %v434, 4294901760
    %436 = vmatpush.msra.mxu0 %v435
    %v437 = vand.u32 %v86, 4294901760
    %v438 = vsub.f32 %v86, %v437
    %v439 = vand.u32 %v438, 4294901760
    %440 = vmatpush.msra.mxu0 %v439
    %v441 = vand.u32 %v85, 4294901760
    %v442 = vsub.f32 %v85, %v441
    %v443 = vand.u32 %v442, 4294901760
    %444 = vmatpush.msra.mxu0 %v443
    %v445 = vand.u32 %v288, 4294901760
    %446 = vmatmul.f32.gmra.mxu0 %v445
    %v447 = vpop.f32.mrf.mxu0
    %v448 = vadd.f32 %v415, %v447
    %449 = vdwg.mxu0
    %450 = vmatpush.msra.mxu0 0.0
    %451 = vmatpush.msra.mxu0 0.0
    %452 = vmatpush.msra.mxu0 0.0
    %453 = vmatpush.msra.mxu0 0.0
    %454 = vmatpush.msra.mxu0 0.0
    %455 = vmatpush.msra.mxu0 0.0
    %456 = vmatpush.msra.mxu0 0.0
    %457 = vmatpush.msra.mxu0 0.0
    %458 = vmatpush.msra.mxu0 0.0
    %459 = vmatpush.msra.mxu0 0.0
    %460 = vmatpush.msra.mxu0 0.0
    %461 = vmatpush.msra.mxu0 0.0
    %v462 = vand.u32 %v88, 4294901760
    %463 = vmatpush.msra.mxu0 %v462
    %v464 = vand.u32 %v87, 4294901760
    %465 = vmatpush.msra.mxu0 %v464
    %v466 = vand.u32 %v86, 4294901760
    %467 = vmatpush.msra.mxu0 %v466
    %v468 = vand.u32 %v85, 4294901760
    %469 = vmatpush.msra.mxu0 %v468
    %v470 = vand.u32 %v288, 4294901760
    %471 = vmatmul.f32.gmra.mxu0 %v470
    %v472 = vpop.f32.mrf.mxu0
    %v473 = vadd.f32 %v448, %v472
    %474 = vdwg.mxu0
    %v475 = vadd.f32 %v280, %v473
    %v476 = vxor.u32 %v475, 2147483648
    %v477 = vmul.f32 %v476, 1.442695
    %v478 = vpow.pop %v477
    %v479 = vadd.f32 %v478, 1.0
    %v480 = vrcp.pop %v479
    %v481 = vmul.f32 %v479, %v480
    %v482 = vsub.f32 1.0, %v481
    %v483 = vmul.f32 %v480, %v482
    %v484 = vadd.f32 %v480, %v483
    %vm485 = vweird.f32 %v479
    %vm486 = vweird.f32 %v480
    %vm487 = vmor %vm485, %vm486
    %v488 = vsel %vm487, %v480, %v484
    %v489 = vand.u32 2147483647, %v479
    %vm490 = vcmp.eq.f32.partialorder %v489, 8.507059e+37
    %v491 = vand.u32 %v479, 2147483648
    %v492 = vor.u32 1.1754944e-38, %v491
    %v493 = vsel %vm490, %v492, %v488
    %v494 = vmul.f32 1.0, %v493
    %v495 = vtanh.pop %v475
    %v496 = vmul.f32 %v494, 0.0
    %498 = vrot.lane.b32.xlu0 %v495, 64
    %v499 = vpop.permute.xlu0 %498
    %v501 = vmul.f32 %v494, %v499
    %503 = vrot.lane.b32.xlu0 %v501, 32
    %v504 = vpop.permute.xlu0 %503
    %v506 = vadd.f32 %v496, %v504
    %v507 = vtanh.pop %v506
    %509 = vrot.lane.b32.xlu0 %v507, 64
    %v510 = vpop.permute.xlu0 %509
    %v512 = vmul.f32 %v494, %v510
    %513 = vmatpush.msra.mxu0 0.0
    %514 = vmatpush.msra.mxu0 0.0
    %515 = vmatpush.msra.mxu0 0.0
    %516 = vmatpush.msra.mxu0 0.0
    %517 = vmatpush.msra.mxu0 0.0
    %518 = vmatpush.msra.mxu0 0.0
    %519 = vmatpush.msra.mxu0 0.0
    %520 = vmatpush.msra.mxu0 0.0
    %521 = vmatpush.msra.mxu0 0.0
    %522 = vmatpush.msra.mxu0 0.0
    %523 = vmatpush.msra.mxu0 0.0
    %524 = vmatpush.msra.mxu0 0.0
    %v525 = vand.u32 %v92, 4294901760
    %526 = vmatpush.msra.mxu0 %v525
    %v527 = vand.u32 %v91, 4294901760
    %528 = vmatpush.msra.mxu0 %v527
    %v529 = vand.u32 %v90, 4294901760
    %530 = vmatpush.msra.mxu0 %v529
    %v531 = vand.u32 %v89, 4294901760
    %532 = vmatpush.msra.mxu0 %v531
    %v533 = vand.u32 %v288, 4294901760
    %v534 = vsub.f32 %v288, %v533
    %v535 = vand.u32 %v534, 4294901760
    %v536 = vsub.f32 %v534, %v535
    %v537 = vand.u32 %v536, 4294901760
    %538 = vmatmul.f32.gmra.mxu0 %v537
    %v539 = vpop.f32.mrf.mxu0
    %v540 = vadd.f32 0.0, %v539
    %541 = vdwg.mxu0
    %542 = vmatpush.msra.mxu0 0.0
    %543 = vmatpush.msra.mxu0 0.0
    %544 = vmatpush.msra.mxu0 0.0
    %545 = vmatpush.msra.mxu0 0.0
    %546 = vmatpush.msra.mxu0 0.0
    %547 = vmatpush.msra.mxu0 0.0
    %548 = vmatpush.msra.mxu0 0.0
    %549 = vmatpush.msra.mxu0 0.0
    %550 = vmatpush.msra.mxu0 0.0
    %551 = vmatpush.msra.mxu0 0.0
    %552 = vmatpush.msra.mxu0 0.0
    %553 = vmatpush.msra.mxu0 0.0
    %v554 = vand.u32 %v92, 4294901760
    %v555 = vsub.f32 %v92, %v554
    %v556 = vand.u32 %v555, 4294901760
    %v557 = vsub.f32 %v555, %v556
    %v558 = vand.u32 %v557, 4294901760
    %559 = vmatpush.msra.mxu0 %v558
    %v560 = vand.u32 %v91, 4294901760
    %v561 = vsub.f32 %v91, %v560
    %v562 = vand.u32 %v561, 4294901760
    %v563 = vsub.f32 %v561, %v562
    %v564 = vand.u32 %v563, 4294901760
    %565 = vmatpush.msra.mxu0 %v564
    %v566 = vand.u32 %v90, 4294901760
    %v567 = vsub.f32 %v90, %v566
    %v568 = vand.u32 %v567, 4294901760
    %v569 = vsub.f32 %v567, %v568
    %v570 = vand.u32 %v569, 4294901760
    %571 = vmatpush.msra.mxu0 %v570
    %v572 = vand.u32 %v89, 4294901760
    %v573 = vsub.f32 %v89, %v572
    %v574 = vand.u32 %v573, 4294901760
    %v575 = vsub.f32 %v573, %v574
    %v576 = vand.u32 %v575, 4294901760
    %577 = vmatpush.msra.mxu0 %v576
    %v578 = vand.u32 %v288, 4294901760
    %579 = vmatmul.f32.gmra.mxu0 %v578
    %v580 = vpop.f32.mrf.mxu0
    %v581 = vadd.f32 %v540, %v580
    %582 = vdwg.mxu0
    %583 = vmatpush.msra.mxu0 0.0
    %584 = vmatpush.msra.mxu0 0.0
    %585 = vmatpush.msra.mxu0 0.0
    %586 = vmatpush.msra.mxu0 0.0
    %587 = vmatpush.msra.mxu0 0.0
    %588 = vmatpush.msra.mxu0 0.0
    %589 = vmatpush.msra.mxu0 0.0
    %590 = vmatpush.msra.mxu0 0.0
    %591 = vmatpush.msra.mxu0 0.0
    %592 = vmatpush.msra.mxu0 0.0
    %593 = vmatpush.msra.mxu0 0.0
    %594 = vmatpush.msra.mxu0 0.0
    %v595 = vand.u32 %v92, 4294901760
    %v596 = vsub.f32 %v92, %v595
    %597 = vmatpush.msra.mxu0 %v596
    %v598 = vand.u32 %v91, 4294901760
    %v599 = vsub.f32 %v91, %v598
    %600 = vmatpush.msra.mxu0 %v599
    %v601 = vand.u32 %v90, 4294901760
    %v602 = vsub.f32 %v90, %v601
    %603 = vmatpush.msra.mxu0 %v602
    %v604 = vand.u32 %v89, 4294901760
    %v605 = vsub.f32 %v89, %v604
    %606 = vmatpush.msra.mxu0 %v605
    %v607 = vand.u32 %v288, 4294901760
    %v608 = vsub.f32 %v288, %v607
    %609 = vmatmul.f32.gmra.mxu0 %v608
    %v610 = vpop.f32.mrf.mxu0
    %v611 = vadd.f32 %v581, %v610
    %612 = vdwg.mxu0
    %613 = vmatpush.msra.mxu0 0.0
    %614 = vmatpush.msra.mxu0 0.0
    %615 = vmatpush.msra.mxu0 0.0
    %616 = vmatpush.msra.mxu0 0.0
    %617 = vmatpush.msra.mxu0 0.0
    %618 = vmatpush.msra.mxu0 0.0
    %619 = vmatpush.msra.mxu0 0.0
    %620 = vmatpush.msra.mxu0 0.0
    %621 = vmatpush.msra.mxu0 0.0
    %622 = vmatpush.msra.mxu0 0.0
    %623 = vmatpush.msra.mxu0 0.0
    %624 = vmatpush.msra.mxu0 0.0
    %v625 = vand.u32 %v92, 4294901760
    %626 = vmatpush.msra.mxu0 %v625
    %v627 = vand.u32 %v91, 4294901760
    %628 = vmatpush.msra.mxu0 %v627
    %v629 = vand.u32 %v90, 4294901760
    %630 = vmatpush.msra.mxu0 %v629
    %v631 = vand.u32 %v89, 4294901760
    %632 = vmatpush.msra.mxu0 %v631
    %v633 = vand.u32 %v288, 4294901760
    %v634 = vsub.f32 %v288, %v633
    %v635 = vand.u32 %v634, 4294901760
    %636 = vmatmul.f32.gmra.mxu0 %v635
    %v637 = vpop.f32.mrf.mxu0
    %v638 = vadd.f32 %v611, %v637
    %639 = vdwg.mxu0
    %640 = vmatpush.msra.mxu0 0.0
    %641 = vmatpush.msra.mxu0 0.0
    %642 = vmatpush.msra.mxu0 0.0
    %643 = vmatpush.msra.mxu0 0.0
    %644 = vmatpush.msra.mxu0 0.0
    %645 = vmatpush.msra.mxu0 0.0
    %646 = vmatpush.msra.mxu0 0.0
    %647 = vmatpush.msra.mxu0 0.0
    %648 = vmatpush.msra.mxu0 0.0
    %649 = vmatpush.msra.mxu0 0.0
    %650 = vmatpush.msra.mxu0 0.0
    %651 = vmatpush.msra.mxu0 0.0
    %v652 = vand.u32 %v92, 4294901760
    %v653 = vsub.f32 %v92, %v652
    %v654 = vand.u32 %v653, 4294901760
    %655 = vmatpush.msra.mxu0 %v654
    %v656 = vand.u32 %v91, 4294901760
    %v657 = vsub.f32 %v91, %v656
    %v658 = vand.u32 %v657, 4294901760
    %659 = vmatpush.msra.mxu0 %v658
    %v660 = vand.u32 %v90, 4294901760
    %v661 = vsub.f32 %v90, %v660
    %v662 = vand.u32 %v661, 4294901760
    %663 = vmatpush.msra.mxu0 %v662
    %v664 = vand.u32 %v89, 4294901760
    %v665 = vsub.f32 %v89, %v664
    %v666 = vand.u32 %v665, 4294901760
    %667 = vmatpush.msra.mxu0 %v666
    %v668 = vand.u32 %v288, 4294901760
    %669 = vmatmul.f32.gmra.mxu0 %v668
    %v670 = vpop.f32.mrf.mxu0
    %v671 = vadd.f32 %v638, %v670
    %672 = vdwg.mxu0
    %673 = vmatpush.msra.mxu0 0.0
    %674 = vmatpush.msra.mxu0 0.0
    %675 = vmatpush.msra.mxu0 0.0
    %676 = vmatpush.msra.mxu0 0.0
    %677 = vmatpush.msra.mxu0 0.0
    %678 = vmatpush.msra.mxu0 0.0
    %679 = vmatpush.msra.mxu0 0.0
    %680 = vmatpush.msra.mxu0 0.0
    %681 = vmatpush.msra.mxu0 0.0
    %682 = vmatpush.msra.mxu0 0.0
    %683 = vmatpush.msra.mxu0 0.0
    %684 = vmatpush.msra.mxu0 0.0
    %v685 = vand.u32 %v92, 4294901760
    %686 = vmatpush.msra.mxu0 %v685
    %v687 = vand.u32 %v91, 4294901760
    %688 = vmatpush.msra.mxu0 %v687
    %v689 = vand.u32 %v90, 4294901760
    %690 = vmatpush.msra.mxu0 %v689
    %v691 = vand.u32 %v89, 4294901760
    %692 = vmatpush.msra.mxu0 %v691
    %v693 = vand.u32 %v288, 4294901760
    %694 = vmatmul.f32.gmra.mxu0 %v693
    %v695 = vpop.f32.mrf.mxu0
    %v696 = vadd.f32 %v671, %v695
    %697 = vdwg.mxu0
    %699 = vrot.lane.b32.xlu0 %v512, 32
    %v700 = vpop.permute.xlu0 %699
    %v701 = vsel %vm286, %v700, 0
    %703 = vmatpush.msra.mxu0 0.0
    %704 = vmatpush.msra.mxu0 0.0
    %705 = vmatpush.msra.mxu0 0.0
    %706 = vmatpush.msra.mxu0 0.0
    %707 = vmatpush.msra.mxu0 0.0
    %708 = vmatpush.msra.mxu0 0.0
    %709 = vmatpush.msra.mxu0 0.0
    %710 = vmatpush.msra.mxu0 0.0
    %711 = vmatpush.msra.mxu0 0.0
    %712 = vmatpush.msra.mxu0 0.0
    %713 = vmatpush.msra.mxu0 0.0
    %714 = vmatpush.msra.mxu0 0.0
    %v715 = vand.u32 %v84, 4294901760
    %716 = vmatpush.msra.mxu0 %v715
    %v717 = vand.u32 %v83, 4294901760
    %718 = vmatpush.msra.mxu0 %v717
    %v719 = vand.u32 %v82, 4294901760
    %720 = vmatpush.msra.mxu0 %v719
    %v721 = vand.u32 %v81, 4294901760
    %722 = vmatpush.msra.mxu0 %v721
    %v723 = vand.u32 %v701, 4294901760
    %v724 = vsub.f32 %v701, %v723
    %v725 = vand.u32 %v724, 4294901760
    %v726 = vsub.f32 %v724, %v725
    %v727 = vand.u32 %v726, 4294901760
    %728 = vmatmul.f32.gmra.mxu0 %v727
    %v729 = vpop.f32.mrf.mxu0
    %v730 = vadd.f32 %v696, %v729
    %731 = vdwg.mxu0
    %732 = vmatpush.msra.mxu0 0.0
    %733 = vmatpush.msra.mxu0 0.0
    %734 = vmatpush.msra.mxu0 0.0
    %735 = vmatpush.msra.mxu0 0.0
    %736 = vmatpush.msra.mxu0 0.0
    %737 = vmatpush.msra.mxu0 0.0
    %738 = vmatpush.msra.mxu0 0.0
    %739 = vmatpush.msra.mxu0 0.0
    %740 = vmatpush.msra.mxu0 0.0
    %741 = vmatpush.msra.mxu0 0.0
    %742 = vmatpush.msra.mxu0 0.0
    %743 = vmatpush.msra.mxu0 0.0
    %v744 = vand.u32 %v84, 4294901760
    %v745 = vsub.f32 %v84, %v744
    %v746 = vand.u32 %v745, 4294901760
    %v747 = vsub.f32 %v745, %v746
    %v748 = vand.u32 %v747, 4294901760
    %749 = vmatpush.msra.mxu0 %v748
    %v750 = vand.u32 %v83, 4294901760
    %v751 = vsub.f32 %v83, %v750
    %v752 = vand.u32 %v751, 4294901760
    %v753 = vsub.f32 %v751, %v752
    %v754 = vand.u32 %v753, 4294901760
    %755 = vmatpush.msra.mxu0 %v754
    %v756 = vand.u32 %v82, 4294901760
    %v757 = vsub.f32 %v82, %v756
    %v758 = vand.u32 %v757, 4294901760
    %v759 = vsub.f32 %v757, %v758
    %v760 = vand.u32 %v759, 4294901760
    %761 = vmatpush.msra.mxu0 %v760
    %v762 = vand.u32 %v81, 4294901760
    %v763 = vsub.f32 %v81, %v762
    %v764 = vand.u32 %v763, 4294901760
    %v765 = vsub.f32 %v763, %v764
    %v766 = vand.u32 %v765, 4294901760
    %767 = vmatpush.msra.mxu0 %v766
    %v768 = vand.u32 %v701, 4294901760
    %769 = vmatmul.f32.gmra.mxu0 %v768
    %v770 = vpop.f32.mrf.mxu0
    %v771 = vadd.f32 %v730, %v770
    %772 = vdwg.mxu0
    %773 = vmatpush.msra.mxu0 0.0
    %774 = vmatpush.msra.mxu0 0.0
    %775 = vmatpush.msra.mxu0 0.0
    %776 = vmatpush.msra.mxu0 0.0
    %777 = vmatpush.msra.mxu0 0.0
    %778 = vmatpush.msra.mxu0 0.0
    %779 = vmatpush.msra.mxu0 0.0
    %780 = vmatpush.msra.mxu0 0.0
    %781 = vmatpush.msra.mxu0 0.0
    %782 = vmatpush.msra.mxu0 0.0
    %783 = vmatpush.msra.mxu0 0.0
    %784 = vmatpush.msra.mxu0 0.0
    %v785 = vand.u32 %v84, 4294901760
    %v786 = vsub.f32 %v84, %v785
    %787 = vmatpush.msra.mxu0 %v786
    %v788 = vand.u32 %v83, 4294901760
    %v789 = vsub.f32 %v83, %v788
    %790 = vmatpush.msra.mxu0 %v789
    %v791 = vand.u32 %v82, 4294901760
    %v792 = vsub.f32 %v82, %v791
    %793 = vmatpush.msra.mxu0 %v792
    %v794 = vand.u32 %v81, 4294901760
    %v795 = vsub.f32 %v81, %v794
    %796 = vmatpush.msra.mxu0 %v795
    %v797 = vand.u32 %v701, 4294901760
    %v798 = vsub.f32 %v701, %v797
    %799 = vmatmul.f32.gmra.mxu0 %v798
    %v800 = vpop.f32.mrf.mxu0
    %v801 = vadd.f32 %v771, %v800
    %802 = vdwg.mxu0
    %803 = vmatpush.msra.mxu0 0.0
    %804 = vmatpush.msra.mxu0 0.0
    %805 = vmatpush.msra.mxu0 0.0
    %806 = vmatpush.msra.mxu0 0.0
    %807 = vmatpush.msra.mxu0 0.0
    %808 = vmatpush.msra.mxu0 0.0
    %809 = vmatpush.msra.mxu0 0.0
    %810 = vmatpush.msra.mxu0 0.0
    %811 = vmatpush.msra.mxu0 0.0
    %812 = vmatpush.msra.mxu0 0.0
    %813 = vmatpush.msra.mxu0 0.0
    %814 = vmatpush.msra.mxu0 0.0
    %v815 = vand.u32 %v84, 4294901760
    %816 = vmatpush.msra.mxu0 %v815
    %v817 = vand.u32 %v83, 4294901760
    %818 = vmatpush.msra.mxu0 %v817
    %v819 = vand.u32 %v82, 4294901760
    %820 = vmatpush.msra.mxu0 %v819
    %v821 = vand.u32 %v81, 4294901760
    %822 = vmatpush.msra.mxu0 %v821
    %v823 = vand.u32 %v701, 4294901760
    %v824 = vsub.f32 %v701, %v823
    %v825 = vand.u32 %v824, 4294901760
    %826 = vmatmul.f32.gmra.mxu0 %v825
    %v827 = vpop.f32.mrf.mxu0
    %v828 = vadd.f32 %v801, %v827
    %829 = vdwg.mxu0
    %830 = vmatpush.msra.mxu0 0.0
    %831 = vmatpush.msra.mxu0 0.0
    %832 = vmatpush.msra.mxu0 0.0
    %833 = vmatpush.msra.mxu0 0.0
    %834 = vmatpush.msra.mxu0 0.0
    %835 = vmatpush.msra.mxu0 0.0
    %836 = vmatpush.msra.mxu0 0.0
    %837 = vmatpush.msra.mxu0 0.0
    %838 = vmatpush.msra.mxu0 0.0
    %839 = vmatpush.msra.mxu0 0.0
    %840 = vmatpush.msra.mxu0 0.0
    %841 = vmatpush.msra.mxu0 0.0
    %v842 = vand.u32 %v84, 4294901760
    %v843 = vsub.f32 %v84, %v842
    %v844 = vand.u32 %v843, 4294901760
    %845 = vmatpush.msra.mxu0 %v844
    %v846 = vand.u32 %v83, 4294901760
    %v847 = vsub.f32 %v83, %v846
    %v848 = vand.u32 %v847, 4294901760
    %849 = vmatpush.msra.mxu0 %v848
    %v850 = vand.u32 %v82, 4294901760
    %v851 = vsub.f32 %v82, %v850
    %v852 = vand.u32 %v851, 4294901760
    %853 = vmatpush.msra.mxu0 %v852
    %v854 = vand.u32 %v81, 4294901760
    %v855 = vsub.f32 %v81, %v854
    %v856 = vand.u32 %v855, 4294901760
    %857 = vmatpush.msra.mxu0 %v856
    %v858 = vand.u32 %v701, 4294901760
    %859 = vmatmul.f32.gmra.mxu0 %v858
    %v860 = vpop.f32.mrf.mxu0
    %v861 = vadd.f32 %v828, %v860
    %862 = vdwg.mxu0
    %863 = vmatpush.msra.mxu0 0.0
    %864 = vmatpush.msra.mxu0 0.0
    %865 = vmatpush.msra.mxu0 0.0
    %866 = vmatpush.msra.mxu0 0.0
    %867 = vmatpush.msra.mxu0 0.0
    %868 = vmatpush.msra.mxu0 0.0
    %869 = vmatpush.msra.mxu0 0.0
    %870 = vmatpush.msra.mxu0 0.0
    %871 = vmatpush.msra.mxu0 0.0
    %872 = vmatpush.msra.mxu0 0.0
    %873 = vmatpush.msra.mxu0 0.0
    %874 = vmatpush.msra.mxu0 0.0
    %v875 = vand.u32 %v84, 4294901760
    %876 = vmatpush.msra.mxu0 %v875
    %v877 = vand.u32 %v83, 4294901760
    %878 = vmatpush.msra.mxu0 %v877
    %v879 = vand.u32 %v82, 4294901760
    %880 = vmatpush.msra.mxu0 %v879
    %v881 = vand.u32 %v81, 4294901760
    %882 = vmatpush.msra.mxu0 %v881
    %v883 = vand.u32 %v701, 4294901760
    %884 = vmatmul.f32.gmra.mxu0 %v883
    %v885 = vpop.f32.mrf.mxu0
    %v886 = vadd.f32 %v861, %v885
    %887 = vdwg.mxu0
    %v889 = vperm.slane %v94, 0
    %v891 = vadd.f32 %v886, %v889
    %v892 = vxor.u32 %v891, 2147483648
    %v893 = vmul.f32 %v892, 1.442695
    %v894 = vpow.pop %v893
    %v895 = vadd.f32 %v894, 1.0
    %v896 = vrcp.pop %v895
    %v897 = vmul.f32 %v895, %v896
    %v898 = vsub.f32 1.0, %v897
    %v899 = vmul.f32 %v896, %v898
    %v900 = vadd.f32 %v896, %v899
    %vm901 = vweird.f32 %v895
    %vm902 = vweird.f32 %v896
    %vm903 = vmor %vm901, %vm902
    %v904 = vsel %vm903, %v896, %v900
    %v905 = vand.u32 2147483647, %v895
    %vm906 = vcmp.eq.f32.partialorder %v905, 8.507059e+37
    %v907 = vand.u32 %v895, 2147483648
    %v908 = vor.u32 1.1754944e-38, %v907
    %v909 = vsel %vm906, %v908, %v904
    %v910 = vmul.f32 1.0, %v909
    %v911 = vtanh.pop %v891
    %v912 = vmul.f32 %v910, 0.0
    %914 = vrot.lane.b32.xlu0 %v911, 64
    %v915 = vpop.permute.xlu0 %914
    %v917 = vmul.f32 %v910, %v915
    %919 = vrot.lane.b32.xlu0 %v917, 32
    %v920 = vpop.permute.xlu0 %919
    %v922 = vadd.f32 %v912, %v920
    %v923 = vtanh.pop %v922
    %925 = vrot.lane.b32.xlu0 %v923, 64
    %v926 = vpop.permute.xlu0 %925
    %v928 = vmul.f32 %v910, %v926
    %929 = vmatpush.msra.mxu0 0.0
    %930 = vmatpush.msra.mxu0 0.0
    %931 = vmatpush.msra.mxu0 0.0
    %932 = vmatpush.msra.mxu0 0.0
    %933 = vmatpush.msra.mxu0 0.0
    %934 = vmatpush.msra.mxu0 0.0
    %935 = vmatpush.msra.mxu0 0.0
    %936 = vmatpush.msra.mxu0 0.0
    %937 = vmatpush.msra.mxu0 0.0
    %938 = vmatpush.msra.mxu0 0.0
    %939 = vmatpush.msra.mxu0 0.0
    %940 = vmatpush.msra.mxu0 0.0
    %v941 = vand.u32 %v88, 4294901760
    %942 = vmatpush.msra.mxu0 %v941
    %v943 = vand.u32 %v87, 4294901760
    %944 = vmatpush.msra.mxu0 %v943
    %v945 = vand.u32 %v86, 4294901760
    %946 = vmatpush.msra.mxu0 %v945
    %v947 = vand.u32 %v85, 4294901760
    %948 = vmatpush.msra.mxu0 %v947
    %v949 = vand.u32 %v701, 4294901760
    %v950 = vsub.f32 %v701, %v949
    %v951 = vand.u32 %v950, 4294901760
    %v952 = vsub.f32 %v950, %v951
    %v953 = vand.u32 %v952, 4294901760
    %954 = vmatmul.f32.gmra.mxu0 %v953
    %v955 = vpop.f32.mrf.mxu0
    %v956 = vadd.f32 0.0, %v955
    %957 = vdwg.mxu0
    %958 = vmatpush.msra.mxu0 0.0
    %959 = vmatpush.msra.mxu0 0.0
    %960 = vmatpush.msra.mxu0 0.0
    %961 = vmatpush.msra.mxu0 0.0
    %962 = vmatpush.msra.mxu0 0.0
    %963 = vmatpush.msra.mxu0 0.0
    %964 = vmatpush.msra.mxu0 0.0
    %965 = vmatpush.msra.mxu0 0.0
    %966 = vmatpush.msra.mxu0 0.0
    %967 = vmatpush.msra.mxu0 0.0
    %968 = vmatpush.msra.mxu0 0.0
    %969 = vmatpush.msra.mxu0 0.0
    %v970 = vand.u32 %v88, 4294901760
    %v971 = vsub.f32 %v88, %v970
    %v972 = vand.u32 %v971, 4294901760
    %v973 = vsub.f32 %v971, %v972
    %v974 = vand.u32 %v973, 4294901760
    %975 = vmatpush.msra.mxu0 %v974
    %v976 = vand.u32 %v87, 4294901760
    %v977 = vsub.f32 %v87, %v976
    %v978 = vand.u32 %v977, 4294901760
    %v979 = vsub.f32 %v977, %v978
    %v980 = vand.u32 %v979, 4294901760
    %981 = vmatpush.msra.mxu0 %v980
    %v982 = vand.u32 %v86, 4294901760
    %v983 = vsub.f32 %v86, %v982
    %v984 = vand.u32 %v983, 4294901760
    %v985 = vsub.f32 %v983, %v984
    %v986 = vand.u32 %v985, 4294901760
    %987 = vmatpush.msra.mxu0 %v986
    %v988 = vand.u32 %v85, 4294901760
    %v989 = vsub.f32 %v85, %v988
    %v990 = vand.u32 %v989, 4294901760
    %v991 = vsub.f32 %v989, %v990
    %v992 = vand.u32 %v991, 4294901760
    %993 = vmatpush.msra.mxu0 %v992
    %v994 = vand.u32 %v701, 4294901760
    %995 = vmatmul.f32.gmra.mxu0 %v994
    %v996 = vpop.f32.mrf.mxu0
    %v997 = vadd.f32 %v956, %v996
    %998 = vdwg.mxu0
    %999 = vmatpush.msra.mxu0 0.0
    %1000 = vmatpush.msra.mxu0 0.0
    %1001 = vmatpush.msra.mxu0 0.0
    %1002 = vmatpush.msra.mxu0 0.0
    %1003 = vmatpush.msra.mxu0 0.0
    %1004 = vmatpush.msra.mxu0 0.0
    %1005 = vmatpush.msra.mxu0 0.0
    %1006 = vmatpush.msra.mxu0 0.0
    %1007 = vmatpush.msra.mxu0 0.0
    %1008 = vmatpush.msra.mxu0 0.0
    %1009 = vmatpush.msra.mxu0 0.0
    %1010 = vmatpush.msra.mxu0 0.0
    %v1011 = vand.u32 %v88, 4294901760
    %v1012 = vsub.f32 %v88, %v1011
    %1013 = vmatpush.msra.mxu0 %v1012
    %v1014 = vand.u32 %v87, 4294901760
    %v1015 = vsub.f32 %v87, %v1014
    %1016 = vmatpush.msra.mxu0 %v1015
    %v1017 = vand.u32 %v86, 4294901760
    %v1018 = vsub.f32 %v86, %v1017
    %1019 = vmatpush.msra.mxu0 %v1018
    %v1020 = vand.u32 %v85, 4294901760
    %v1021 = vsub.f32 %v85, %v1020
    %1022 = vmatpush.msra.mxu0 %v1021
    %v1023 = vand.u32 %v701, 4294901760
    %v1024 = vsub.f32 %v701, %v1023
    %1025 = vmatmul.f32.gmra.mxu0 %v1024
    %v1026 = vpop.f32.mrf.mxu0
    %v1027 = vadd.f32 %v997, %v1026
    %1028 = vdwg.mxu0
    %1029 = vmatpush.msra.mxu0 0.0
    %1030 = vmatpush.msra.mxu0 0.0
    %1031 = vmatpush.msra.mxu0 0.0
    %1032 = vmatpush.msra.mxu0 0.0
    %1033 = vmatpush.msra.mxu0 0.0
    %1034 = vmatpush.msra.mxu0 0.0
    %1035 = vmatpush.msra.mxu0 0.0
    %1036 = vmatpush.msra.mxu0 0.0
    %1037 = vmatpush.msra.mxu0 0.0
    %1038 = vmatpush.msra.mxu0 0.0
    %1039 = vmatpush.msra.mxu0 0.0
    %1040 = vmatpush.msra.mxu0 0.0
    %v1041 = vand.u32 %v88, 4294901760
    %1042 = vmatpush.msra.mxu0 %v1041
    %v1043 = vand.u32 %v87, 4294901760
    %1044 = vmatpush.msra.mxu0 %v1043
    %v1045 = vand.u32 %v86, 4294901760
    %1046 = vmatpush.msra.mxu0 %v1045
    %v1047 = vand.u32 %v85, 4294901760
    %1048 = vmatpush.msra.mxu0 %v1047
    %v1049 = vand.u32 %v701, 4294901760
    %v1050 = vsub.f32 %v701, %v1049
    %v1051 = vand.u32 %v1050, 4294901760
    %1052 = vmatmul.f32.gmra.mxu0 %v1051
    %v1053 = vpop.f32.mrf.mxu0
    %v1054 = vadd.f32 %v1027, %v1053
    %1055 = vdwg.mxu0
    %1056 = vmatpush.msra.mxu0 0.0
    %1057 = vmatpush.msra.mxu0 0.0
    %1058 = vmatpush.msra.mxu0 0.0
    %1059 = vmatpush.msra.mxu0 0.0
    %1060 = vmatpush.msra.mxu0 0.0
    %1061 = vmatpush.msra.mxu0 0.0
    %1062 = vmatpush.msra.mxu0 0.0
    %1063 = vmatpush.msra.mxu0 0.0
    %1064 = vmatpush.msra.mxu0 0.0
    %1065 = vmatpush.msra.mxu0 0.0
    %1066 = vmatpush.msra.mxu0 0.0
    %1067 = vmatpush.msra.mxu0 0.0
    %v1068 = vand.u32 %v88, 4294901760
    %v1069 = vsub.f32 %v88, %v1068
    %v1070 = vand.u32 %v1069, 4294901760
    %1071 = vmatpush.msra.mxu0 %v1070
    %v1072 = vand.u32 %v87, 4294901760
    %v1073 = vsub.f32 %v87, %v1072
    %v1074 = vand.u32 %v1073, 4294901760
    %1075 = vmatpush.msra.mxu0 %v1074
    %v1076 = vand.u32 %v86, 4294901760
    %v1077 = vsub.f32 %v86, %v1076
    %v1078 = vand.u32 %v1077, 4294901760
    %1079 = vmatpush.msra.mxu0 %v1078
    %v1080 = vand.u32 %v85, 4294901760
    %v1081 = vsub.f32 %v85, %v1080
    %v1082 = vand.u32 %v1081, 4294901760
    %1083 = vmatpush.msra.mxu0 %v1082
    %v1084 = vand.u32 %v701, 4294901760
    %1085 = vmatmul.f32.gmra.mxu0 %v1084
    %v1086 = vpop.f32.mrf.mxu0
    %v1087 = vadd.f32 %v1054, %v1086
    %1088 = vdwg.mxu0
    %1089 = vmatpush.msra.mxu0 0.0
    %1090 = vmatpush.msra.mxu0 0.0
    %1091 = vmatpush.msra.mxu0 0.0
    %1092 = vmatpush.msra.mxu0 0.0
    %1093 = vmatpush.msra.mxu0 0.0
    %1094 = vmatpush.msra.mxu0 0.0
    %1095 = vmatpush.msra.mxu0 0.0
    %1096 = vmatpush.msra.mxu0 0.0
    %1097 = vmatpush.msra.mxu0 0.0
    %1098 = vmatpush.msra.mxu0 0.0
    %1099 = vmatpush.msra.mxu0 0.0
    %1100 = vmatpush.msra.mxu0 0.0
    %v1101 = vand.u32 %v88, 4294901760
    %1102 = vmatpush.msra.mxu0 %v1101
    %v1103 = vand.u32 %v87, 4294901760
    %1104 = vmatpush.msra.mxu0 %v1103
    %v1105 = vand.u32 %v86, 4294901760
    %1106 = vmatpush.msra.mxu0 %v1105
    %v1107 = vand.u32 %v85, 4294901760
    %1108 = vmatpush.msra.mxu0 %v1107
    %v1109 = vand.u32 %v701, 4294901760
    %1110 = vmatmul.f32.gmra.mxu0 %v1109
    %v1111 = vpop.f32.mrf.mxu0
    %v1112 = vadd.f32 %v1087, %v1111
    %1113 = vdwg.mxu0
    %v1115 = vrot.slane %v1112, 6
    %v1117 = vadd.f32 %v280, %v1115
    %v1118 = vxor.u32 %v1117, 2147483648
    %v1119 = vmul.f32 %v1118, 1.442695
    %v1120 = vpow.pop %v1119
    %v1121 = vadd.f32 %v1120, 1.0
    %v1122 = vrcp.pop %v1121
    %v1123 = vmul.f32 %v1121, %v1122
    %v1124 = vsub.f32 1.0, %v1123
    %v1125 = vmul.f32 %v1122, %v1124
    %v1126 = vadd.f32 %v1122, %v1125
    %vm1127 = vweird.f32 %v1121
    %vm1128 = vweird.f32 %v1122
    %vm1129 = vmor %vm1127, %vm1128
    %v1130 = vsel %vm1129, %v1122, %v1126
    %v1131 = vand.u32 2147483647, %v1121
    %vm1132 = vcmp.eq.f32.partialorder %v1131, 8.507059e+37
    %v1133 = vand.u32 %v1121, 2147483648
    %v1134 = vor.u32 1.1754944e-38, %v1133
    %v1135 = vsel %vm1132, %v1134, %v1130
    %v1136 = vmul.f32 1.0, %v1135
    %v1137 = vtanh.pop %v1117
    %v1139 = vrot.slane %v506, 6
    %v1141 = vmul.f32 %v1136, %v1139
    %1143 = vrot.lane.b32.xlu0 %v1137, 64
    %v1144 = vpop.permute.xlu0 %1143
    %v1146 = vmul.f32 %v1136, %v1144
    %1148 = vrot.lane.b32.xlu0 %v1146, 32
    %v1149 = vpop.permute.xlu0 %1148
    %v1151 = vadd.f32 %v1141, %v1149
    %v1152 = vtanh.pop %v1151
    %1154 = vrot.lane.b32.xlu0 %v1152, 64
    %v1155 = vpop.permute.xlu0 %1154
    %v1157 = vmul.f32 %v1136, %v1155
    %1159 = vrot.lane.b32.xlu0 %v928, 32
    %v1160 = vpop.permute.xlu0 %1159
    %v1161 = vsel %vm286, %v1160, 0
    %1163 = vmatpush.msra.mxu0 0.0
    %1164 = vmatpush.msra.mxu0 0.0
    %1165 = vmatpush.msra.mxu0 0.0
    %1166 = vmatpush.msra.mxu0 0.0
    %1167 = vmatpush.msra.mxu0 0.0
    %1168 = vmatpush.msra.mxu0 0.0
    %1169 = vmatpush.msra.mxu0 0.0
    %1170 = vmatpush.msra.mxu0 0.0
    %1171 = vmatpush.msra.mxu0 0.0
    %1172 = vmatpush.msra.mxu0 0.0
    %1173 = vmatpush.msra.mxu0 0.0
    %1174 = vmatpush.msra.mxu0 0.0
    %v1175 = vand.u32 %v92, 4294901760
    %1176 = vmatpush.msra.mxu0 %v1175
    %v1177 = vand.u32 %v91, 4294901760
    %1178 = vmatpush.msra.mxu0 %v1177
    %v1179 = vand.u32 %v90, 4294901760
    %1180 = vmatpush.msra.mxu0 %v1179
    %v1181 = vand.u32 %v89, 4294901760
    %1182 = vmatpush.msra.mxu0 %v1181
    %v1183 = vand.u32 %v1161, 4294901760
    %v1184 = vsub.f32 %v1161, %v1183
    %v1185 = vand.u32 %v1184, 4294901760
    %v1186 = vsub.f32 %v1184, %v1185
    %v1187 = vand.u32 %v1186, 4294901760
    %1188 = vmatmul.f32.gmra.mxu0 %v1187
    %v1189 = vpop.f32.mrf.mxu0
    %v1190 = vadd.f32 0.0, %v1189
    %1191 = vdwg.mxu0
    %1192 = vmatpush.msra.mxu0 0.0
    %1193 = vmatpush.msra.mxu0 0.0
    %1194 = vmatpush.msra.mxu0 0.0
    %1195 = vmatpush.msra.mxu0 0.0
    %1196 = vmatpush.msra.mxu0 0.0
    %1197 = vmatpush.msra.mxu0 0.0
    %1198 = vmatpush.msra.mxu0 0.0
    %1199 = vmatpush.msra.mxu0 0.0
    %1200 = vmatpush.msra.mxu0 0.0
    %1201 = vmatpush.msra.mxu0 0.0
    %1202 = vmatpush.msra.mxu0 0.0
    %1203 = vmatpush.msra.mxu0 0.0
    %v1204 = vand.u32 %v92, 4294901760
    %v1205 = vsub.f32 %v92, %v1204
    %v1206 = vand.u32 %v1205, 4294901760
    %v1207 = vsub.f32 %v1205, %v1206
    %v1208 = vand.u32 %v1207, 4294901760
    %1209 = vmatpush.msra.mxu0 %v1208
    %v1210 = vand.u32 %v91, 4294901760
    %v1211 = vsub.f32 %v91, %v1210
    %v1212 = vand.u32 %v1211, 4294901760
    %v1213 = vsub.f32 %v1211, %v1212
    %v1214 = vand.u32 %v1213, 4294901760
    %1215 = vmatpush.msra.mxu0 %v1214
    %v1216 = vand.u32 %v90, 4294901760
    %v1217 = vsub.f32 %v90, %v1216
    %v1218 = vand.u32 %v1217, 4294901760
    %v1219 = vsub.f32 %v1217, %v1218
    %v1220 = vand.u32 %v1219, 4294901760
    %1221 = vmatpush.msra.mxu0 %v1220
    %v1222 = vand.u32 %v89, 4294901760
    %v1223 = vsub.f32 %v89, %v1222
    %v1224 = vand.u32 %v1223, 4294901760
    %v1225 = vsub.f32 %v1223, %v1224
    %v1226 = vand.u32 %v1225, 4294901760
    %1227 = vmatpush.msra.mxu0 %v1226
    %v1228 = vand.u32 %v1161, 4294901760
    %1229 = vmatmul.f32.gmra.mxu0 %v1228
    %v1230 = vpop.f32.mrf.mxu0
    %v1231 = vadd.f32 %v1190, %v1230
    %1232 = vdwg.mxu0
    %1233 = vmatpush.msra.mxu0 0.0
    %1234 = vmatpush.msra.mxu0 0.0
    %1235 = vmatpush.msra.mxu0 0.0
    %1236 = vmatpush.msra.mxu0 0.0
    %1237 = vmatpush.msra.mxu0 0.0
    %1238 = vmatpush.msra.mxu0 0.0
    %1239 = vmatpush.msra.mxu0 0.0
    %1240 = vmatpush.msra.mxu0 0.0
    %1241 = vmatpush.msra.mxu0 0.0
    %1242 = vmatpush.msra.mxu0 0.0
    %1243 = vmatpush.msra.mxu0 0.0
    %1244 = vmatpush.msra.mxu0 0.0
    %v1245 = vand.u32 %v92, 4294901760
    %v1246 = vsub.f32 %v92, %v1245
    %1247 = vmatpush.msra.mxu0 %v1246
    %v1248 = vand.u32 %v91, 4294901760
    %v1249 = vsub.f32 %v91, %v1248
    %1250 = vmatpush.msra.mxu0 %v1249
    %v1251 = vand.u32 %v90, 4294901760
    %v1252 = vsub.f32 %v90, %v1251
    %1253 = vmatpush.msra.mxu0 %v1252
    %v1254 = vand.u32 %v89, 4294901760
    %v1255 = vsub.f32 %v89, %v1254
    %1256 = vmatpush.msra.mxu0 %v1255
    %v1257 = vand.u32 %v1161, 4294901760
    %v1258 = vsub.f32 %v1161, %v1257
    %1259 = vmatmul.f32.gmra.mxu0 %v1258
    %v1260 = vpop.f32.mrf.mxu0
    %v1261 = vadd.f32 %v1231, %v1260
    %1262 = vdwg.mxu0
    %1263 = vmatpush.msra.mxu0 0.0
    %1264 = vmatpush.msra.mxu0 0.0
    %1265 = vmatpush.msra.mxu0 0.0
    %1266 = vmatpush.msra.mxu0 0.0
    %1267 = vmatpush.msra.mxu0 0.0
    %1268 = vmatpush.msra.mxu0 0.0
    %1269 = vmatpush.msra.mxu0 0.0
    %1270 = vmatpush.msra.mxu0 0.0
    %1271 = vmatpush.msra.mxu0 0.0
    %1272 = vmatpush.msra.mxu0 0.0
    %1273 = vmatpush.msra.mxu0 0.0
    %1274 = vmatpush.msra.mxu0 0.0
    %v1275 = vand.u32 %v92, 4294901760
    %1276 = vmatpush.msra.mxu0 %v1275
    %v1277 = vand.u32 %v91, 4294901760
    %1278 = vmatpush.msra.mxu0 %v1277
    %v1279 = vand.u32 %v90, 4294901760
    %1280 = vmatpush.msra.mxu0 %v1279
    %v1281 = vand.u32 %v89, 4294901760
    %1282 = vmatpush.msra.mxu0 %v1281
    %v1283 = vand.u32 %v1161, 4294901760
    %v1284 = vsub.f32 %v1161, %v1283
    %v1285 = vand.u32 %v1284, 4294901760
    %1286 = vmatmul.f32.gmra.mxu0 %v1285
    %v1287 = vpop.f32.mrf.mxu0
    %v1288 = vadd.f32 %v1261, %v1287
    %1289 = vdwg.mxu0
    %1290 = vmatpush.msra.mxu0 0.0
    %1291 = vmatpush.msra.mxu0 0.0
    %1292 = vmatpush.msra.mxu0 0.0
    %1293 = vmatpush.msra.mxu0 0.0
    %1294 = vmatpush.msra.mxu0 0.0
    %1295 = vmatpush.msra.mxu0 0.0
    %1296 = vmatpush.msra.mxu0 0.0
    %1297 = vmatpush.msra.mxu0 0.0
    %1298 = vmatpush.msra.mxu0 0.0
    %1299 = vmatpush.msra.mxu0 0.0
    %1300 = vmatpush.msra.mxu0 0.0
    %1301 = vmatpush.msra.mxu0 0.0
    %v1302 = vand.u32 %v92, 4294901760
    %v1303 = vsub.f32 %v92, %v1302
    %v1304 = vand.u32 %v1303, 4294901760
    %1305 = vmatpush.msra.mxu0 %v1304
    %v1306 = vand.u32 %v91, 4294901760
    %v1307 = vsub.f32 %v91, %v1306
    %v1308 = vand.u32 %v1307, 4294901760
    %1309 = vmatpush.msra.mxu0 %v1308
    %v1310 = vand.u32 %v90, 4294901760
    %v1311 = vsub.f32 %v90, %v1310
    %v1312 = vand.u32 %v1311, 4294901760
    %1313 = vmatpush.msra.mxu0 %v1312
    %v1314 = vand.u32 %v89, 4294901760
    %v1315 = vsub.f32 %v89, %v1314
    %v1316 = vand.u32 %v1315, 4294901760
    %1317 = vmatpush.msra.mxu0 %v1316
    %v1318 = vand.u32 %v1161, 4294901760
    %1319 = vmatmul.f32.gmra.mxu0 %v1318
    %v1320 = vpop.f32.mrf.mxu0
    %v1321 = vadd.f32 %v1288, %v1320
    %1322 = vdwg.mxu0
    %1323 = vmatpush.msra.mxu0 0.0
    %1324 = vmatpush.msra.mxu0 0.0
    %1325 = vmatpush.msra.mxu0 0.0
    %1326 = vmatpush.msra.mxu0 0.0
    %1327 = vmatpush.msra.mxu0 0.0
    %1328 = vmatpush.msra.mxu0 0.0
    %1329 = vmatpush.msra.mxu0 0.0
    %1330 = vmatpush.msra.mxu0 0.0
    %1331 = vmatpush.msra.mxu0 0.0
    %1332 = vmatpush.msra.mxu0 0.0
    %1333 = vmatpush.msra.mxu0 0.0
    %1334 = vmatpush.msra.mxu0 0.0
    %v1335 = vand.u32 %v92, 4294901760
    %1336 = vmatpush.msra.mxu0 %v1335
    %v1337 = vand.u32 %v91, 4294901760
    %1338 = vmatpush.msra.mxu0 %v1337
    %v1339 = vand.u32 %v90, 4294901760
    %1340 = vmatpush.msra.mxu0 %v1339
    %v1341 = vand.u32 %v89, 4294901760
    %1342 = vmatpush.msra.mxu0 %v1341
    %v1343 = vand.u32 %v1161, 4294901760
    %1344 = vmatmul.f32.gmra.mxu0 %v1343
    %v1345 = vpop.f32.mrf.mxu0
    %v1346 = vadd.f32 %v1321, %v1345
    %1347 = vdwg.mxu0
    %v1349 = vrot.slane %v1157, 2
    %1350 = vrot.lane.b32.xlu0 %v1349, 32
    %v1351 = vpop.permute.xlu0 %1350
    %v1352 = vsel %vm286, %v1351, 0
    %1354 = vmatpush.msra.mxu0 0.0
    %1355 = vmatpush.msra.mxu0 0.0
    %1356 = vmatpush.msra.mxu0 0.0
    %1357 = vmatpush.msra.mxu0 0.0
    %1358 = vmatpush.msra.mxu0 0.0
    %1359 = vmatpush.msra.mxu0 0.0
    %1360 = vmatpush.msra.mxu0 0.0
    %1361 = vmatpush.msra.mxu0 0.0
    %1362 = vmatpush.msra.mxu0 0.0
    %1363 = vmatpush.msra.mxu0 0.0
    %1364 = vmatpush.msra.mxu0 0.0
    %1365 = vmatpush.msra.mxu0 0.0
    %v1366 = vand.u32 %v84, 4294901760
    %1367 = vmatpush.msra.mxu0 %v1366
    %v1368 = vand.u32 %v83, 4294901760
    %1369 = vmatpush.msra.mxu0 %v1368
    %v1370 = vand.u32 %v82, 4294901760
    %1371 = vmatpush.msra.mxu0 %v1370
    %v1372 = vand.u32 %v81, 4294901760
    %1373 = vmatpush.msra.mxu0 %v1372
    %v1374 = vand.u32 %v1352, 4294901760
    %v1375 = vsub.f32 %v1352, %v1374
    %v1376 = vand.u32 %v1375, 4294901760
    %v1377 = vsub.f32 %v1375, %v1376
    %v1378 = vand.u32 %v1377, 4294901760
    %1379 = vmatmul.f32.gmra.mxu0 %v1378
    %v1380 = vpop.f32.mrf.mxu0
    %v1381 = vadd.f32 %v1346, %v1380
    %1382 = vdwg.mxu0
    %1383 = vmatpush.msra.mxu0 0.0
    %1384 = vmatpush.msra.mxu0 0.0
    %1385 = vmatpush.msra.mxu0 0.0
    %1386 = vmatpush.msra.mxu0 0.0
    %1387 = vmatpush.msra.mxu0 0.0
    %1388 = vmatpush.msra.mxu0 0.0
    %1389 = vmatpush.msra.mxu0 0.0
    %1390 = vmatpush.msra.mxu0 0.0
    %1391 = vmatpush.msra.mxu0 0.0
    %1392 = vmatpush.msra.mxu0 0.0
    %1393 = vmatpush.msra.mxu0 0.0
    %1394 = vmatpush.msra.mxu0 0.0
    %v1395 = vand.u32 %v84, 4294901760
    %v1396 = vsub.f32 %v84, %v1395
    %v1397 = vand.u32 %v1396, 4294901760
    %v1398 = vsub.f32 %v1396, %v1397
    %v1399 = vand.u32 %v1398, 4294901760
    %1400 = vmatpush.msra.mxu0 %v1399
    %v1401 = vand.u32 %v83, 4294901760
    %v1402 = vsub.f32 %v83, %v1401
    %v1403 = vand.u32 %v1402, 4294901760
    %v1404 = vsub.f32 %v1402, %v1403
    %v1405 = vand.u32 %v1404, 4294901760
    %1406 = vmatpush.msra.mxu0 %v1405
    %v1407 = vand.u32 %v82, 4294901760
    %v1408 = vsub.f32 %v82, %v1407
    %v1409 = vand.u32 %v1408, 4294901760
    %v1410 = vsub.f32 %v1408, %v1409
    %v1411 = vand.u32 %v1410, 4294901760
    %1412 = vmatpush.msra.mxu0 %v1411
    %v1413 = vand.u32 %v81, 4294901760
    %v1414 = vsub.f32 %v81, %v1413
    %v1415 = vand.u32 %v1414, 4294901760
    %v1416 = vsub.f32 %v1414, %v1415
    %v1417 = vand.u32 %v1416, 4294901760
    %1418 = vmatpush.msra.mxu0 %v1417
    %v1419 = vand.u32 %v1352, 4294901760
    %1420 = vmatmul.f32.gmra.mxu0 %v1419
    %v1421 = vpop.f32.mrf.mxu0
    %v1422 = vadd.f32 %v1381, %v1421
    %1423 = vdwg.mxu0
    %1424 = vmatpush.msra.mxu0 0.0
    %1425 = vmatpush.msra.mxu0 0.0
    %1426 = vmatpush.msra.mxu0 0.0
    %1427 = vmatpush.msra.mxu0 0.0
    %1428 = vmatpush.msra.mxu0 0.0
    %1429 = vmatpush.msra.mxu0 0.0
    %1430 = vmatpush.msra.mxu0 0.0
    %1431 = vmatpush.msra.mxu0 0.0
    %1432 = vmatpush.msra.mxu0 0.0
    %1433 = vmatpush.msra.mxu0 0.0
    %1434 = vmatpush.msra.mxu0 0.0
    %1435 = vmatpush.msra.mxu0 0.0
    %v1436 = vand.u32 %v84, 4294901760
    %v1437 = vsub.f32 %v84, %v1436
    %1438 = vmatpush.msra.mxu0 %v1437
    %v1439 = vand.u32 %v83, 4294901760
    %v1440 = vsub.f32 %v83, %v1439
    %1441 = vmatpush.msra.mxu0 %v1440
    %v1442 = vand.u32 %v82, 4294901760
    %v1443 = vsub.f32 %v82, %v1442
    %1444 = vmatpush.msra.mxu0 %v1443
    %v1445 = vand.u32 %v81, 4294901760
    %v1446 = vsub.f32 %v81, %v1445
    %1447 = vmatpush.msra.mxu0 %v1446
    %v1448 = vand.u32 %v1352, 4294901760
    %v1449 = vsub.f32 %v1352, %v1448
    %1450 = vmatmul.f32.gmra.mxu0 %v1449
    %v1451 = vpop.f32.mrf.mxu0
    %v1452 = vadd.f32 %v1422, %v1451
    %1453 = vdwg.mxu0
    %1454 = vmatpush.msra.mxu0 0.0
    %1455 = vmatpush.msra.mxu0 0.0
    %1456 = vmatpush.msra.mxu0 0.0
    %1457 = vmatpush.msra.mxu0 0.0
    %1458 = vmatpush.msra.mxu0 0.0
    %1459 = vmatpush.msra.mxu0 0.0
    %1460 = vmatpush.msra.mxu0 0.0
    %1461 = vmatpush.msra.mxu0 0.0
    %1462 = vmatpush.msra.mxu0 0.0
    %1463 = vmatpush.msra.mxu0 0.0
    %1464 = vmatpush.msra.mxu0 0.0
    %1465 = vmatpush.msra.mxu0 0.0
    %v1466 = vand.u32 %v84, 4294901760
    %1467 = vmatpush.msra.mxu0 %v1466
    %v1468 = vand.u32 %v83, 4294901760
    %1469 = vmatpush.msra.mxu0 %v1468
    %v1470 = vand.u32 %v82, 4294901760
    %1471 = vmatpush.msra.mxu0 %v1470
    %v1472 = vand.u32 %v81, 4294901760
    %1473 = vmatpush.msra.mxu0 %v1472
    %v1474 = vand.u32 %v1352, 4294901760
    %v1475 = vsub.f32 %v1352, %v1474
    %v1476 = vand.u32 %v1475, 4294901760
    %1477 = vmatmul.f32.gmra.mxu0 %v1476
    %v1478 = vpop.f32.mrf.mxu0
    %v1479 = vadd.f32 %v1452, %v1478
    %1480 = vdwg.mxu0
    %1481 = vmatpush.msra.mxu0 0.0
    %1482 = vmatpush.msra.mxu0 0.0
    %1483 = vmatpush.msra.mxu0 0.0
    %1484 = vmatpush.msra.mxu0 0.0
    %1485 = vmatpush.msra.mxu0 0.0
    %1486 = vmatpush.msra.mxu0 0.0
    %1487 = vmatpush.msra.mxu0 0.0
    %1488 = vmatpush.msra.mxu0 0.0
    %1489 = vmatpush.msra.mxu0 0.0
    %1490 = vmatpush.msra.mxu0 0.0
    %1491 = vmatpush.msra.mxu0 0.0
    %1492 = vmatpush.msra.mxu0 0.0
    %v1493 = vand.u32 %v84, 4294901760
    %v1494 = vsub.f32 %v84, %v1493
    %v1495 = vand.u32 %v1494, 4294901760
    %1496 = vmatpush.msra.mxu0 %v1495
    %v1497 = vand.u32 %v83, 4294901760
    %v1498 = vsub.f32 %v83, %v1497
    %v1499 = vand.u32 %v1498, 4294901760
    %1500 = vmatpush.msra.mxu0 %v1499
    %v1501 = vand.u32 %v82, 4294901760
    %v1502 = vsub.f32 %v82, %v1501
    %v1503 = vand.u32 %v1502, 4294901760
    %1504 = vmatpush.msra.mxu0 %v1503
    %v1505 = vand.u32 %v81, 4294901760
    %v1506 = vsub.f32 %v81, %v1505
    %v1507 = vand.u32 %v1506, 4294901760
    %1508 = vmatpush.msra.mxu0 %v1507
    %v1509 = vand.u32 %v1352, 4294901760
    %1510 = vmatmul.f32.gmra.mxu0 %v1509
    %v1511 = vpop.f32.mrf.mxu0
    %v1512 = vadd.f32 %v1479, %v1511
    %1513 = vdwg.mxu0
    %1514 = vmatpush.msra.mxu0 0.0
    %1515 = vmatpush.msra.mxu0 0.0
    %1516 = vmatpush.msra.mxu0 0.0
    %1517 = vmatpush.msra.mxu0 0.0
    %1518 = vmatpush.msra.mxu0 0.0
    %1519 = vmatpush.msra.mxu0 0.0
    %1520 = vmatpush.msra.mxu0 0.0
    %1521 = vmatpush.msra.mxu0 0.0
    %1522 = vmatpush.msra.mxu0 0.0
    %1523 = vmatpush.msra.mxu0 0.0
    %1524 = vmatpush.msra.mxu0 0.0
    %1525 = vmatpush.msra.mxu0 0.0
    %v1526 = vand.u32 %v84, 4294901760
    %1527 = vmatpush.msra.mxu0 %v1526
    %v1528 = vand.u32 %v83, 4294901760
    %1529 = vmatpush.msra.mxu0 %v1528
    %v1530 = vand.u32 %v82, 4294901760
    %1531 = vmatpush.msra.mxu0 %v1530
    %v1532 = vand.u32 %v81, 4294901760
    %1533 = vmatpush.msra.mxu0 %v1532
    %v1534 = vand.u32 %v1352, 4294901760
    %1535 = vmatmul.f32.gmra.mxu0 %v1534
    %v1536 = vpop.f32.mrf.mxu0
    %v1537 = vadd.f32 %v1512, %v1536
    %1538 = vdwg.mxu0
    %v1539 = vadd.f32 %v1537, %v889
    %v1540 = vxor.u32 %v1539, 2147483648
    %v1541 = vmul.f32 %v1540, 1.442695
    %v1542 = vpow.pop %v1541
    %v1543 = vadd.f32 %v1542, 1.0
    %v1544 = vrcp.pop %v1543
    %v1545 = vmul.f32 %v1543, %v1544
    %v1546 = vsub.f32 1.0, %v1545
    %v1547 = vmul.f32 %v1544, %v1546
    %v1548 = vadd.f32 %v1544, %v1547
    %vm1549 = vweird.f32 %v1543
    %vm1550 = vweird.f32 %v1544
    %vm1551 = vmor %vm1549, %vm1550
    %v1552 = vsel %vm1551, %v1544, %v1548
    %v1553 = vand.u32 2147483647, %v1543
    %vm1554 = vcmp.eq.f32.partialorder %v1553, 8.507059e+37
    %v1555 = vand.u32 %v1543, 2147483648
    %v1556 = vor.u32 1.1754944e-38, %v1555
    %v1557 = vsel %vm1554, %v1556, %v1552
    %v1558 = vmul.f32 1.0, %v1557
    %v1559 = vtanh.pop %v1539
    %v1560 = vmul.f32 %v1558, %v922
    %1562 = vrot.lane.b32.xlu0 %v1559, 64
    %v1563 = vpop.permute.xlu0 %1562
    %v1565 = vmul.f32 %v1558, %v1563
    %1567 = vrot.lane.b32.xlu0 %v1565, 32
    %v1568 = vpop.permute.xlu0 %1567
    %v1570 = vadd.f32 %v1560, %v1568
    %v1571 = vtanh.pop %v1570
    %1573 = vrot.lane.b32.xlu0 %v1571, 64
    %v1574 = vpop.permute.xlu0 %1573
    %v1576 = vmul.f32 %v1558, %v1574
    %1577 = vmatpush.msra.mxu0 0.0
    %1578 = vmatpush.msra.mxu0 0.0
    %1579 = vmatpush.msra.mxu0 0.0
    %1580 = vmatpush.msra.mxu0 0.0
    %1581 = vmatpush.msra.mxu0 0.0
    %1582 = vmatpush.msra.mxu0 0.0
    %1583 = vmatpush.msra.mxu0 0.0
    %1584 = vmatpush.msra.mxu0 0.0
    %1585 = vmatpush.msra.mxu0 0.0
    %1586 = vmatpush.msra.mxu0 0.0
    %1587 = vmatpush.msra.mxu0 0.0
    %1588 = vmatpush.msra.mxu0 0.0
    %v1589 = vand.u32 %v88, 4294901760
    %1590 = vmatpush.msra.mxu0 %v1589
    %v1591 = vand.u32 %v87, 4294901760
    %1592 = vmatpush.msra.mxu0 %v1591
    %v1593 = vand.u32 %v86, 4294901760
    %1594 = vmatpush.msra.mxu0 %v1593
    %v1595 = vand.u32 %v85, 4294901760
    %1596 = vmatpush.msra.mxu0 %v1595
    %v1597 = vand.u32 %v1352, 4294901760
    %v1598 = vsub.f32 %v1352, %v1597
    %v1599 = vand.u32 %v1598, 4294901760
    %v1600 = vsub.f32 %v1598, %v1599
    %v1601 = vand.u32 %v1600, 4294901760
    %1602 = vmatmul.f32.gmra.mxu0 %v1601
    %v1603 = vpop.f32.mrf.mxu0
    %v1604 = vadd.f32 0.0, %v1603
    %1605 = vdwg.mxu0
    %1606 = vmatpush.msra.mxu0 0.0
    %1607 = vmatpush.msra.mxu0 0.0
    %1608 = vmatpush.msra.mxu0 0.0
    %1609 = vmatpush.msra.mxu0 0.0
    %1610 = vmatpush.msra.mxu0 0.0
    %1611 = vmatpush.msra.mxu0 0.0
    %1612 = vmatpush.msra.mxu0 0.0
    %1613 = vmatpush.msra.mxu0 0.0
    %1614 = vmatpush.msra.mxu0 0.0
    %1615 = vmatpush.msra.mxu0 0.0
    %1616 = vmatpush.msra.mxu0 0.0
    %1617 = vmatpush.msra.mxu0 0.0
    %v1618 = vand.u32 %v88, 4294901760
    %v1619 = vsub.f32 %v88, %v1618
    %v1620 = vand.u32 %v1619, 4294901760
    %v1621 = vsub.f32 %v1619, %v1620
    %v1622 = vand.u32 %v1621, 4294901760
    %1623 = vmatpush.msra.mxu0 %v1622
    %v1624 = vand.u32 %v87, 4294901760
    %v1625 = vsub.f32 %v87, %v1624
    %v1626 = vand.u32 %v1625, 4294901760
    %v1627 = vsub.f32 %v1625, %v1626
    %v1628 = vand.u32 %v1627, 4294901760
    %1629 = vmatpush.msra.mxu0 %v1628
    %v1630 = vand.u32 %v86, 4294901760
    %v1631 = vsub.f32 %v86, %v1630
    %v1632 = vand.u32 %v1631, 4294901760
    %v1633 = vsub.f32 %v1631, %v1632
    %v1634 = vand.u32 %v1633, 4294901760
    %1635 = vmatpush.msra.mxu0 %v1634
    %v1636 = vand.u32 %v85, 4294901760
    %v1637 = vsub.f32 %v85, %v1636
    %v1638 = vand.u32 %v1637, 4294901760
    %v1639 = vsub.f32 %v1637, %v1638
    %v1640 = vand.u32 %v1639, 4294901760
    %1641 = vmatpush.msra.mxu0 %v1640
    %v1642 = vand.u32 %v1352, 4294901760
    %1643 = vmatmul.f32.gmra.mxu0 %v1642
    %v1644 = vpop.f32.mrf.mxu0
    %v1645 = vadd.f32 %v1604, %v1644
    %1646 = vdwg.mxu0
    %1647 = vmatpush.msra.mxu0 0.0
    %1648 = vmatpush.msra.mxu0 0.0
    %1649 = vmatpush.msra.mxu0 0.0
    %1650 = vmatpush.msra.mxu0 0.0
    %1651 = vmatpush.msra.mxu0 0.0
    %1652 = vmatpush.msra.mxu0 0.0
    %1653 = vmatpush.msra.mxu0 0.0
    %1654 = vmatpush.msra.mxu0 0.0
    %1655 = vmatpush.msra.mxu0 0.0
    %1656 = vmatpush.msra.mxu0 0.0
    %1657 = vmatpush.msra.mxu0 0.0
    %1658 = vmatpush.msra.mxu0 0.0
    %v1659 = vand.u32 %v88, 4294901760
    %v1660 = vsub.f32 %v88, %v1659
    %1661 = vmatpush.msra.mxu0 %v1660
    %v1662 = vand.u32 %v87, 4294901760
    %v1663 = vsub.f32 %v87, %v1662
    %1664 = vmatpush.msra.mxu0 %v1663
    %v1665 = vand.u32 %v86, 4294901760
    %v1666 = vsub.f32 %v86, %v1665
    %1667 = vmatpush.msra.mxu0 %v1666
    %v1668 = vand.u32 %v85, 4294901760
    %v1669 = vsub.f32 %v85, %v1668
    %1670 = vmatpush.msra.mxu0 %v1669
    %v1671 = vand.u32 %v1352, 4294901760
    %v1672 = vsub.f32 %v1352, %v1671
    %1673 = vmatmul.f32.gmra.mxu0 %v1672
    %v1674 = vpop.f32.mrf.mxu0
    %v1675 = vadd.f32 %v1645, %v1674
    %1676 = vdwg.mxu0
    %1677 = vmatpush.msra.mxu0 0.0
    %1678 = vmatpush.msra.mxu0 0.0
    %1679 = vmatpush.msra.mxu0 0.0
    %1680 = vmatpush.msra.mxu0 0.0
    %1681 = vmatpush.msra.mxu0 0.0
    %1682 = vmatpush.msra.mxu0 0.0
    %1683 = vmatpush.msra.mxu0 0.0
    %1684 = vmatpush.msra.mxu0 0.0
    %1685 = vmatpush.msra.mxu0 0.0
    %1686 = vmatpush.msra.mxu0 0.0
    %1687 = vmatpush.msra.mxu0 0.0
    %1688 = vmatpush.msra.mxu0 0.0
    %v1689 = vand.u32 %v88, 4294901760
    %1690 = vmatpush.msra.mxu0 %v1689
    %v1691 = vand.u32 %v87, 4294901760
    %1692 = vmatpush.msra.mxu0 %v1691
    %v1693 = vand.u32 %v86, 4294901760
    %1694 = vmatpush.msra.mxu0 %v1693
    %v1695 = vand.u32 %v85, 4294901760
    %1696 = vmatpush.msra.mxu0 %v1695
    %v1697 = vand.u32 %v1352, 4294901760
    %v1698 = vsub.f32 %v1352, %v1697
    %v1699 = vand.u32 %v1698, 4294901760
    %1700 = vmatmul.f32.gmra.mxu0 %v1699
    %v1701 = vpop.f32.mrf.mxu0
    %v1702 = vadd.f32 %v1675, %v1701
    %1703 = vdwg.mxu0
    %1704 = vmatpush.msra.mxu0 0.0
    %1705 = vmatpush.msra.mxu0 0.0
    %1706 = vmatpush.msra.mxu0 0.0
    %1707 = vmatpush.msra.mxu0 0.0
    %1708 = vmatpush.msra.mxu0 0.0
    %1709 = vmatpush.msra.mxu0 0.0
    %1710 = vmatpush.msra.mxu0 0.0
    %1711 = vmatpush.msra.mxu0 0.0
    %1712 = vmatpush.msra.mxu0 0.0
    %1713 = vmatpush.msra.mxu0 0.0
    %1714 = vmatpush.msra.mxu0 0.0
    %1715 = vmatpush.msra.mxu0 0.0
    %v1716 = vand.u32 %v88, 4294901760
    %v1717 = vsub.f32 %v88, %v1716
    %v1718 = vand.u32 %v1717, 4294901760
    %1719 = vmatpush.msra.mxu0 %v1718
    %v1720 = vand.u32 %v87, 4294901760
    %v1721 = vsub.f32 %v87, %v1720
    %v1722 = vand.u32 %v1721, 4294901760
    %1723 = vmatpush.msra.mxu0 %v1722
    %v1724 = vand.u32 %v86, 4294901760
    %v1725 = vsub.f32 %v86, %v1724
    %v1726 = vand.u32 %v1725, 4294901760
    %1727 = vmatpush.msra.mxu0 %v1726
    %v1728 = vand.u32 %v85, 4294901760
    %v1729 = vsub.f32 %v85, %v1728
    %v1730 = vand.u32 %v1729, 4294901760
    %1731 = vmatpush.msra.mxu0 %v1730
    %v1732 = vand.u32 %v1352, 4294901760
    %1733 = vmatmul.f32.gmra.mxu0 %v1732
    %v1734 = vpop.f32.mrf.mxu0
    %v1735 = vadd.f32 %v1702, %v1734
    %1736 = vdwg.mxu0
    %1737 = vmatpush.msra.mxu0 0.0
    %1738 = vmatpush.msra.mxu0 0.0
    %1739 = vmatpush.msra.mxu0 0.0
    %1740 = vmatpush.msra.mxu0 0.0
    %1741 = vmatpush.msra.mxu0 0.0
    %1742 = vmatpush.msra.mxu0 0.0
    %1743 = vmatpush.msra.mxu0 0.0
    %1744 = vmatpush.msra.mxu0 0.0
    %1745 = vmatpush.msra.mxu0 0.0
    %1746 = vmatpush.msra.mxu0 0.0
    %1747 = vmatpush.msra.mxu0 0.0
    %1748 = vmatpush.msra.mxu0 0.0
    %v1749 = vand.u32 %v88, 4294901760
    %1750 = vmatpush.msra.mxu0 %v1749
    %v1751 = vand.u32 %v87, 4294901760
    %1752 = vmatpush.msra.mxu0 %v1751
    %v1753 = vand.u32 %v86, 4294901760
    %1754 = vmatpush.msra.mxu0 %v1753
    %v1755 = vand.u32 %v85, 4294901760
    %1756 = vmatpush.msra.mxu0 %v1755
    %v1757 = vand.u32 %v1352, 4294901760
    %1758 = vmatmul.f32.gmra.mxu0 %v1757
    %v1759 = vpop.f32.mrf.mxu0
    %v1760 = vadd.f32 %v1735, %v1759
    %1761 = vdwg.mxu0
    %v1763 = vrot.slane %v1760, 4
    %v1765 = vadd.f32 %v280, %v1763
    %v1766 = vxor.u32 %v1765, 2147483648
    %v1767 = vmul.f32 %v1766, 1.442695
    %v1768 = vpow.pop %v1767
    %v1769 = vadd.f32 %v1768, 1.0
    %v1770 = vrcp.pop %v1769
    %v1771 = vmul.f32 %v1769, %v1770
    %v1772 = vsub.f32 1.0, %v1771
    %v1773 = vmul.f32 %v1770, %v1772
    %v1774 = vadd.f32 %v1770, %v1773
    %vm1775 = vweird.f32 %v1769
    %vm1776 = vweird.f32 %v1770
    %vm1777 = vmor %vm1775, %vm1776
    %v1778 = vsel %vm1777, %v1770, %v1774
    %v1779 = vand.u32 2147483647, %v1769
    %vm1780 = vcmp.eq.f32.partialorder %v1779, 8.507059e+37
    %v1781 = vand.u32 %v1769, 2147483648
    %v1782 = vor.u32 1.1754944e-38, %v1781
    %v1783 = vsel %vm1780, %v1782, %v1778
    %v1784 = vmul.f32 1.0, %v1783
    %v1785 = vtanh.pop %v1765
    %v1787 = vrot.slane %v1151, 6
    %v1789 = vmul.f32 %v1784, %v1787
    %1791 = vrot.lane.b32.xlu0 %v1785, 64
    %v1792 = vpop.permute.xlu0 %1791
    %v1794 = vmul.f32 %v1784, %v1792
    %1796 = vrot.lane.b32.xlu0 %v1794, 32
    %v1797 = vpop.permute.xlu0 %1796
    %v1799 = vadd.f32 %v1789, %v1797
    %v1800 = vtanh.pop %v1799
    %1802 = vrot.lane.b32.xlu0 %v1800, 64
    %v1803 = vpop.permute.xlu0 %1802
    %v1805 = vmul.f32 %v1784, %v1803
    %1807 = vrot.lane.b32.xlu0 %v1576, 32
    %v1808 = vpop.permute.xlu0 %1807
    %v1809 = vsel %vm286, %v1808, 0
    %1811 = vmatpush.msra.mxu0 0.0
    %1812 = vmatpush.msra.mxu0 0.0
    %1813 = vmatpush.msra.mxu0 0.0
    %1814 = vmatpush.msra.mxu0 0.0
    %1815 = vmatpush.msra.mxu0 0.0
    %1816 = vmatpush.msra.mxu0 0.0
    %1817 = vmatpush.msra.mxu0 0.0
    %1818 = vmatpush.msra.mxu0 0.0
    %1819 = vmatpush.msra.mxu0 0.0
    %1820 = vmatpush.msra.mxu0 0.0
    %1821 = vmatpush.msra.mxu0 0.0
    %1822 = vmatpush.msra.mxu0 0.0
    %v1823 = vand.u32 %v92, 4294901760
    %1824 = vmatpush.msra.mxu0 %v1823
    %v1825 = vand.u32 %v91, 4294901760
    %1826 = vmatpush.msra.mxu0 %v1825
    %v1827 = vand.u32 %v90, 4294901760
    %1828 = vmatpush.msra.mxu0 %v1827
    %v1829 = vand.u32 %v89, 4294901760
    %1830 = vmatpush.msra.mxu0 %v1829
    %v1831 = vand.u32 %v1809, 4294901760
    %v1832 = vsub.f32 %v1809, %v1831
    %v1833 = vand.u32 %v1832, 4294901760
    %v1834 = vsub.f32 %v1832, %v1833
    %v1835 = vand.u32 %v1834, 4294901760
    %1836 = vmatmul.f32.gmra.mxu0 %v1835
    %v1837 = vpop.f32.mrf.mxu0
    %v1838 = vadd.f32 0.0, %v1837
    %1839 = vdwg.mxu0
    %1840 = vmatpush.msra.mxu0 0.0
    %1841 = vmatpush.msra.mxu0 0.0
    %1842 = vmatpush.msra.mxu0 0.0
    %1843 = vmatpush.msra.mxu0 0.0
    %1844 = vmatpush.msra.mxu0 0.0
    %1845 = vmatpush.msra.mxu0 0.0
    %1846 = vmatpush.msra.mxu0 0.0
    %1847 = vmatpush.msra.mxu0 0.0
    %1848 = vmatpush.msra.mxu0 0.0
    %1849 = vmatpush.msra.mxu0 0.0
    %1850 = vmatpush.msra.mxu0 0.0
    %1851 = vmatpush.msra.mxu0 0.0
    %v1852 = vand.u32 %v92, 4294901760
    %v1853 = vsub.f32 %v92, %v1852
    %v1854 = vand.u32 %v1853, 4294901760
    %v1855 = vsub.f32 %v1853, %v1854
    %v1856 = vand.u32 %v1855, 4294901760
    %1857 = vmatpush.msra.mxu0 %v1856
    %v1858 = vand.u32 %v91, 4294901760
    %v1859 = vsub.f32 %v91, %v1858
    %v1860 = vand.u32 %v1859, 4294901760
    %v1861 = vsub.f32 %v1859, %v1860
    %v1862 = vand.u32 %v1861, 4294901760
    %1863 = vmatpush.msra.mxu0 %v1862
    %v1864 = vand.u32 %v90, 4294901760
    %v1865 = vsub.f32 %v90, %v1864
    %v1866 = vand.u32 %v1865, 4294901760
    %v1867 = vsub.f32 %v1865, %v1866
    %v1868 = vand.u32 %v1867, 4294901760
    %1869 = vmatpush.msra.mxu0 %v1868
    %v1870 = vand.u32 %v89, 4294901760
    %v1871 = vsub.f32 %v89, %v1870
    %v1872 = vand.u32 %v1871, 4294901760
    %v1873 = vsub.f32 %v1871, %v1872
    %v1874 = vand.u32 %v1873, 4294901760
    %1875 = vmatpush.msra.mxu0 %v1874
    %v1876 = vand.u32 %v1809, 4294901760
    %1877 = vmatmul.f32.gmra.mxu0 %v1876
    %v1878 = vpop.f32.mrf.mxu0
    %v1879 = vadd.f32 %v1838, %v1878
    %1880 = vdwg.mxu0
    %1881 = vmatpush.msra.mxu0 0.0
    %1882 = vmatpush.msra.mxu0 0.0
    %1883 = vmatpush.msra.mxu0 0.0
    %1884 = vmatpush.msra.mxu0 0.0
    %1885 = vmatpush.msra.mxu0 0.0
    %1886 = vmatpush.msra.mxu0 0.0
    %1887 = vmatpush.msra.mxu0 0.0
    %1888 = vmatpush.msra.mxu0 0.0
    %1889 = vmatpush.msra.mxu0 0.0
    %1890 = vmatpush.msra.mxu0 0.0
    %1891 = vmatpush.msra.mxu0 0.0
    %1892 = vmatpush.msra.mxu0 0.0
    %v1893 = vand.u32 %v92, 4294901760
    %v1894 = vsub.f32 %v92, %v1893
    %1895 = vmatpush.msra.mxu0 %v1894
    %v1896 = vand.u32 %v91, 4294901760
    %v1897 = vsub.f32 %v91, %v1896
    %1898 = vmatpush.msra.mxu0 %v1897
    %v1899 = vand.u32 %v90, 4294901760
    %v1900 = vsub.f32 %v90, %v1899
    %1901 = vmatpush.msra.mxu0 %v1900
    %v1902 = vand.u32 %v89, 4294901760
    %v1903 = vsub.f32 %v89, %v1902
    %1904 = vmatpush.msra.mxu0 %v1903
    %v1905 = vand.u32 %v1809, 4294901760
    %v1906 = vsub.f32 %v1809, %v1905
    %1907 = vmatmul.f32.gmra.mxu0 %v1906
    %v1908 = vpop.f32.mrf.mxu0
    %v1909 = vadd.f32 %v1879, %v1908
    %1910 = vdwg.mxu0
    %1911 = vmatpush.msra.mxu0 0.0
    %1912 = vmatpush.msra.mxu0 0.0
    %1913 = vmatpush.msra.mxu0 0.0
    %1914 = vmatpush.msra.mxu0 0.0
    %1915 = vmatpush.msra.mxu0 0.0
    %1916 = vmatpush.msra.mxu0 0.0
    %1917 = vmatpush.msra.mxu0 0.0
    %1918 = vmatpush.msra.mxu0 0.0
    %1919 = vmatpush.msra.mxu0 0.0
    %1920 = vmatpush.msra.mxu0 0.0
    %1921 = vmatpush.msra.mxu0 0.0
    %1922 = vmatpush.msra.mxu0 0.0
    %v1923 = vand.u32 %v92, 4294901760
    %1924 = vmatpush.msra.mxu0 %v1923
    %v1925 = vand.u32 %v91, 4294901760
    %1926 = vmatpush.msra.mxu0 %v1925
    %v1927 = vand.u32 %v90, 4294901760
    %1928 = vmatpush.msra.mxu0 %v1927
    %v1929 = vand.u32 %v89, 4294901760
    %1930 = vmatpush.msra.mxu0 %v1929
    %v1931 = vand.u32 %v1809, 4294901760
    %v1932 = vsub.f32 %v1809, %v1931
    %v1933 = vand.u32 %v1932, 4294901760
    %1934 = vmatmul.f32.gmra.mxu0 %v1933
    %v1935 = vpop.f32.mrf.mxu0
    %v1936 = vadd.f32 %v1909, %v1935
    %1937 = vdwg.mxu0
    %1938 = vmatpush.msra.mxu0 0.0
    %1939 = vmatpush.msra.mxu0 0.0
    %1940 = vmatpush.msra.mxu0 0.0
    %1941 = vmatpush.msra.mxu0 0.0
    %1942 = vmatpush.msra.mxu0 0.0
    %1943 = vmatpush.msra.mxu0 0.0
    %1944 = vmatpush.msra.mxu0 0.0
    %1945 = vmatpush.msra.mxu0 0.0
    %1946 = vmatpush.msra.mxu0 0.0
    %1947 = vmatpush.msra.mxu0 0.0
    %1948 = vmatpush.msra.mxu0 0.0
    %1949 = vmatpush.msra.mxu0 0.0
    %v1950 = vand.u32 %v92, 4294901760
    %v1951 = vsub.f32 %v92, %v1950
    %v1952 = vand.u32 %v1951, 4294901760
    %1953 = vmatpush.msra.mxu0 %v1952
    %v1954 = vand.u32 %v91, 4294901760
    %v1955 = vsub.f32 %v91, %v1954
    %v1956 = vand.u32 %v1955, 4294901760
    %1957 = vmatpush.msra.mxu0 %v1956
    %v1958 = vand.u32 %v90, 4294901760
    %v1959 = vsub.f32 %v90, %v1958
    %v1960 = vand.u32 %v1959, 4294901760
    %1961 = vmatpush.msra.mxu0 %v1960
    %v1962 = vand.u32 %v89, 4294901760
    %v1963 = vsub.f32 %v89, %v1962
    %v1964 = vand.u32 %v1963, 4294901760
    %1965 = vmatpush.msra.mxu0 %v1964
    %v1966 = vand.u32 %v1809, 4294901760
    %1967 = vmatmul.f32.gmra.mxu0 %v1966
    %v1968 = vpop.f32.mrf.mxu0
    %v1969 = vadd.f32 %v1936, %v1968
    %1970 = vdwg.mxu0
    %1971 = vmatpush.msra.mxu0 0.0
    %1972 = vmatpush.msra.mxu0 0.0
    %1973 = vmatpush.msra.mxu0 0.0
    %1974 = vmatpush.msra.mxu0 0.0
    %1975 = vmatpush.msra.mxu0 0.0
    %1976 = vmatpush.msra.mxu0 0.0
    %1977 = vmatpush.msra.mxu0 0.0
    %1978 = vmatpush.msra.mxu0 0.0
    %1979 = vmatpush.msra.mxu0 0.0
    %1980 = vmatpush.msra.mxu0 0.0
    %1981 = vmatpush.msra.mxu0 0.0
    %1982 = vmatpush.msra.mxu0 0.0
    %v1983 = vand.u32 %v92, 4294901760
    %1984 = vmatpush.msra.mxu0 %v1983
    %v1985 = vand.u32 %v91, 4294901760
    %1986 = vmatpush.msra.mxu0 %v1985
    %v1987 = vand.u32 %v90, 4294901760
    %1988 = vmatpush.msra.mxu0 %v1987
    %v1989 = vand.u32 %v89, 4294901760
    %1990 = vmatpush.msra.mxu0 %v1989
    %v1991 = vand.u32 %v1809, 4294901760
    %1992 = vmatmul.f32.gmra.mxu0 %v1991
    %v1993 = vpop.f32.mrf.mxu0
    %v1994 = vadd.f32 %v1969, %v1993
    %1995 = vdwg.mxu0
    %v1997 = vrot.slane %v1805, 4
    %1998 = vrot.lane.b32.xlu0 %v1997, 32
    %v1999 = vpop.permute.xlu0 %1998
    %v2000 = vsel %vm286, %v1999, 0
    %2002 = vmatpush.msra.mxu0 0.0
    %2003 = vmatpush.msra.mxu0 0.0
    %2004 = vmatpush.msra.mxu0 0.0
    %2005 = vmatpush.msra.mxu0 0.0
    %2006 = vmatpush.msra.mxu0 0.0
    %2007 = vmatpush.msra.mxu0 0.0
    %2008 = vmatpush.msra.mxu0 0.0
    %2009 = vmatpush.msra.mxu0 0.0
    %2010 = vmatpush.msra.mxu0 0.0
    %2011 = vmatpush.msra.mxu0 0.0
    %2012 = vmatpush.msra.mxu0 0.0
    %2013 = vmatpush.msra.mxu0 0.0
    %v2014 = vand.u32 %v84, 4294901760
    %2015 = vmatpush.msra.mxu0 %v2014
    %v2016 = vand.u32 %v83, 4294901760
    %2017 = vmatpush.msra.mxu0 %v2016
    %v2018 = vand.u32 %v82, 4294901760
    %2019 = vmatpush.msra.mxu0 %v2018
    %v2020 = vand.u32 %v81, 4294901760
    %2021 = vmatpush.msra.mxu0 %v2020
    %v2022 = vand.u32 %v2000, 4294901760
    %v2023 = vsub.f32 %v2000, %v2022
    %v2024 = vand.u32 %v2023, 4294901760
    %v2025 = vsub.f32 %v2023, %v2024
    %v2026 = vand.u32 %v2025, 4294901760
    %2027 = vmatmul.f32.gmra.mxu0 %v2026
    %v2028 = vpop.f32.mrf.mxu0
    %v2029 = vadd.f32 %v1994, %v2028
    %2030 = vdwg.mxu0
    %2031 = vmatpush.msra.mxu0 0.0
    %2032 = vmatpush.msra.mxu0 0.0
    %2033 = vmatpush.msra.mxu0 0.0
    %2034 = vmatpush.msra.mxu0 0.0
    %2035 = vmatpush.msra.mxu0 0.0
    %2036 = vmatpush.msra.mxu0 0.0
    %2037 = vmatpush.msra.mxu0 0.0
    %2038 = vmatpush.msra.mxu0 0.0
    %2039 = vmatpush.msra.mxu0 0.0
    %2040 = vmatpush.msra.mxu0 0.0
    %2041 = vmatpush.msra.mxu0 0.0
    %2042 = vmatpush.msra.mxu0 0.0
    %v2043 = vand.u32 %v84, 4294901760
    %v2044 = vsub.f32 %v84, %v2043
    %v2045 = vand.u32 %v2044, 4294901760
    %v2046 = vsub.f32 %v2044, %v2045
    %v2047 = vand.u32 %v2046, 4294901760
    %2048 = vmatpush.msra.mxu0 %v2047
    %v2049 = vand.u32 %v83, 4294901760
    %v2050 = vsub.f32 %v83, %v2049
    %v2051 = vand.u32 %v2050, 4294901760
    %v2052 = vsub.f32 %v2050, %v2051
    %v2053 = vand.u32 %v2052, 4294901760
    %2054 = vmatpush.msra.mxu0 %v2053
    %v2055 = vand.u32 %v82, 4294901760
    %v2056 = vsub.f32 %v82, %v2055
    %v2057 = vand.u32 %v2056, 4294901760
    %v2058 = vsub.f32 %v2056, %v2057
    %v2059 = vand.u32 %v2058, 4294901760
    %2060 = vmatpush.msra.mxu0 %v2059
    %v2061 = vand.u32 %v81, 4294901760
    %v2062 = vsub.f32 %v81, %v2061
    %v2063 = vand.u32 %v2062, 4294901760
    %v2064 = vsub.f32 %v2062, %v2063
    %v2065 = vand.u32 %v2064, 4294901760
    %2066 = vmatpush.msra.mxu0 %v2065
    %v2067 = vand.u32 %v2000, 4294901760
    %2068 = vmatmul.f32.gmra.mxu0 %v2067
    %v2069 = vpop.f32.mrf.mxu0
    %v2070 = vadd.f32 %v2029, %v2069
    %2071 = vdwg.mxu0
    %2072 = vmatpush.msra.mxu0 0.0
    %2073 = vmatpush.msra.mxu0 0.0
    %2074 = vmatpush.msra.mxu0 0.0
    %2075 = vmatpush.msra.mxu0 0.0
    %2076 = vmatpush.msra.mxu0 0.0
    %2077 = vmatpush.msra.mxu0 0.0
    %2078 = vmatpush.msra.mxu0 0.0
    %2079 = vmatpush.msra.mxu0 0.0
    %2080 = vmatpush.msra.mxu0 0.0
    %2081 = vmatpush.msra.mxu0 0.0
    %2082 = vmatpush.msra.mxu0 0.0
    %2083 = vmatpush.msra.mxu0 0.0
    %v2084 = vand.u32 %v84, 4294901760
    %v2085 = vsub.f32 %v84, %v2084
    %2086 = vmatpush.msra.mxu0 %v2085
    %v2087 = vand.u32 %v83, 4294901760
    %v2088 = vsub.f32 %v83, %v2087
    %2089 = vmatpush.msra.mxu0 %v2088
    %v2090 = vand.u32 %v82, 4294901760
    %v2091 = vsub.f32 %v82, %v2090
    %2092 = vmatpush.msra.mxu0 %v2091
    %v2093 = vand.u32 %v81, 4294901760
    %v2094 = vsub.f32 %v81, %v2093
    %2095 = vmatpush.msra.mxu0 %v2094
    %v2096 = vand.u32 %v2000, 4294901760
    %v2097 = vsub.f32 %v2000, %v2096
    %2098 = vmatmul.f32.gmra.mxu0 %v2097
    %v2099 = vpop.f32.mrf.mxu0
    %v2100 = vadd.f32 %v2070, %v2099
    %2101 = vdwg.mxu0
    %2102 = vmatpush.msra.mxu0 0.0
    %2103 = vmatpush.msra.mxu0 0.0
    %2104 = vmatpush.msra.mxu0 0.0
    %2105 = vmatpush.msra.mxu0 0.0
    %2106 = vmatpush.msra.mxu0 0.0
    %2107 = vmatpush.msra.mxu0 0.0
    %2108 = vmatpush.msra.mxu0 0.0
    %2109 = vmatpush.msra.mxu0 0.0
    %2110 = vmatpush.msra.mxu0 0.0
    %2111 = vmatpush.msra.mxu0 0.0
    %2112 = vmatpush.msra.mxu0 0.0
    %2113 = vmatpush.msra.mxu0 0.0
    %v2114 = vand.u32 %v84, 4294901760
    %2115 = vmatpush.msra.mxu0 %v2114
    %v2116 = vand.u32 %v83, 4294901760
    %2117 = vmatpush.msra.mxu0 %v2116
    %v2118 = vand.u32 %v82, 4294901760
    %2119 = vmatpush.msra.mxu0 %v2118
    %v2120 = vand.u32 %v81, 4294901760
    %2121 = vmatpush.msra.mxu0 %v2120
    %v2122 = vand.u32 %v2000, 4294901760
    %v2123 = vsub.f32 %v2000, %v2122
    %v2124 = vand.u32 %v2123, 4294901760
    %2125 = vmatmul.f32.gmra.mxu0 %v2124
    %v2126 = vpop.f32.mrf.mxu0
    %v2127 = vadd.f32 %v2100, %v2126
    %2128 = vdwg.mxu0
    %2129 = vmatpush.msra.mxu0 0.0
    %2130 = vmatpush.msra.mxu0 0.0
    %2131 = vmatpush.msra.mxu0 0.0
    %2132 = vmatpush.msra.mxu0 0.0
    %2133 = vmatpush.msra.mxu0 0.0
    %2134 = vmatpush.msra.mxu0 0.0
    %2135 = vmatpush.msra.mxu0 0.0
    %2136 = vmatpush.msra.mxu0 0.0
    %2137 = vmatpush.msra.mxu0 0.0
    %2138 = vmatpush.msra.mxu0 0.0
    %2139 = vmatpush.msra.mxu0 0.0
    %2140 = vmatpush.msra.mxu0 0.0
    %v2141 = vand.u32 %v84, 4294901760
    %v2142 = vsub.f32 %v84, %v2141
    %v2143 = vand.u32 %v2142, 4294901760
    %2144 = vmatpush.msra.mxu0 %v2143
    %v2145 = vand.u32 %v83, 4294901760
    %v2146 = vsub.f32 %v83, %v2145
    %v2147 = vand.u32 %v2146, 4294901760
    %2148 = vmatpush.msra.mxu0 %v2147
    %v2149 = vand.u32 %v82, 4294901760
    %v2150 = vsub.f32 %v82, %v2149
    %v2151 = vand.u32 %v2150, 4294901760
    %2152 = vmatpush.msra.mxu0 %v2151
    %v2153 = vand.u32 %v81, 4294901760
    %v2154 = vsub.f32 %v81, %v2153
    %v2155 = vand.u32 %v2154, 4294901760
    %2156 = vmatpush.msra.mxu0 %v2155
    %v2157 = vand.u32 %v2000, 4294901760
    %2158 = vmatmul.f32.gmra.mxu0 %v2157
    %v2159 = vpop.f32.mrf.mxu0
    %v2160 = vadd.f32 %v2127, %v2159
    %2161 = vdwg.mxu0
    %2162 = vmatpush.msra.mxu0 0.0
    %2163 = vmatpush.msra.mxu0 0.0
    %2164 = vmatpush.msra.mxu0 0.0
    %2165 = vmatpush.msra.mxu0 0.0
    %2166 = vmatpush.msra.mxu0 0.0
    %2167 = vmatpush.msra.mxu0 0.0
    %2168 = vmatpush.msra.mxu0 0.0
    %2169 = vmatpush.msra.mxu0 0.0
    %2170 = vmatpush.msra.mxu0 0.0
    %2171 = vmatpush.msra.mxu0 0.0
    %2172 = vmatpush.msra.mxu0 0.0
    %2173 = vmatpush.msra.mxu0 0.0
    %v2174 = vand.u32 %v84, 4294901760
    %2175 = vmatpush.msra.mxu0 %v2174
    %v2176 = vand.u32 %v83, 4294901760
    %2177 = vmatpush.msra.mxu0 %v2176
    %v2178 = vand.u32 %v82, 4294901760
    %2179 = vmatpush.msra.mxu0 %v2178
    %v2180 = vand.u32 %v81, 4294901760
    %2181 = vmatpush.msra.mxu0 %v2180
    %v2182 = vand.u32 %v2000, 4294901760
    %2183 = vmatmul.f32.gmra.mxu0 %v2182
    %v2184 = vpop.f32.mrf.mxu0
    %v2185 = vadd.f32 %v2160, %v2184
    %2186 = vdwg.mxu0
    %v2187 = vadd.f32 %v2185, %v889
    %v2188 = vxor.u32 %v2187, 2147483648
    %v2189 = vmul.f32 %v2188, 1.442695
    %v2190 = vpow.pop %v2189
    %v2191 = vadd.f32 %v2190, 1.0
    %v2192 = vrcp.pop %v2191
    %v2193 = vmul.f32 %v2191, %v2192
    %v2194 = vsub.f32 1.0, %v2193
    %v2195 = vmul.f32 %v2192, %v2194
    %v2196 = vadd.f32 %v2192, %v2195
    %vm2197 = vweird.f32 %v2191
    %vm2198 = vweird.f32 %v2192
    %vm2199 = vmor %vm2197, %vm2198
    %v2200 = vsel %vm2199, %v2192, %v2196
    %v2201 = vand.u32 2147483647, %v2191
    %vm2202 = vcmp.eq.f32.partialorder %v2201, 8.507059e+37
    %v2203 = vand.u32 %v2191, 2147483648
    %v2204 = vor.u32 1.1754944e-38, %v2203
    %v2205 = vsel %vm2202, %v2204, %v2200
    %v2206 = vmul.f32 1.0, %v2205
    %v2207 = vtanh.pop %v2187
    %v2208 = vmul.f32 %v2206, %v1570
    %2210 = vrot.lane.b32.xlu0 %v2207, 64
    %v2211 = vpop.permute.xlu0 %2210
    %v2213 = vmul.f32 %v2206, %v2211
    %2215 = vrot.lane.b32.xlu0 %v2213, 32
    %v2216 = vpop.permute.xlu0 %2215
    %v2218 = vadd.f32 %v2208, %v2216
    %v2219 = vtanh.pop %v2218
    %2221 = vrot.lane.b32.xlu0 %v2219, 64
    %v2222 = vpop.permute.xlu0 %2221
    %v2224 = vmul.f32 %v2206, %v2222
    %2225 = vmatpush.msra.mxu0 0.0
    %2226 = vmatpush.msra.mxu0 0.0
    %2227 = vmatpush.msra.mxu0 0.0
    %2228 = vmatpush.msra.mxu0 0.0
    %2229 = vmatpush.msra.mxu0 0.0
    %2230 = vmatpush.msra.mxu0 0.0
    %2231 = vmatpush.msra.mxu0 0.0
    %2232 = vmatpush.msra.mxu0 0.0
    %2233 = vmatpush.msra.mxu0 0.0
    %2234 = vmatpush.msra.mxu0 0.0
    %2235 = vmatpush.msra.mxu0 0.0
    %2236 = vmatpush.msra.mxu0 0.0
    %v2237 = vand.u32 %v88, 4294901760
    %2238 = vmatpush.msra.mxu0 %v2237
    %v2239 = vand.u32 %v87, 4294901760
    %2240 = vmatpush.msra.mxu0 %v2239
    %v2241 = vand.u32 %v86, 4294901760
    %2242 = vmatpush.msra.mxu0 %v2241
    %v2243 = vand.u32 %v85, 4294901760
    %2244 = vmatpush.msra.mxu0 %v2243
    %v2245 = vand.u32 %v2000, 4294901760
    %v2246 = vsub.f32 %v2000, %v2245
    %v2247 = vand.u32 %v2246, 4294901760
    %v2248 = vsub.f32 %v2246, %v2247
    %v2249 = vand.u32 %v2248, 4294901760
    %2250 = vmatmul.f32.gmra.mxu0 %v2249
    %v2251 = vpop.f32.mrf.mxu0
    %v2252 = vadd.f32 0.0, %v2251
    %2253 = vdwg.mxu0
    %2254 = vmatpush.msra.mxu0 0.0
    %2255 = vmatpush.msra.mxu0 0.0
    %2256 = vmatpush.msra.mxu0 0.0
    %2257 = vmatpush.msra.mxu0 0.0
    %2258 = vmatpush.msra.mxu0 0.0
    %2259 = vmatpush.msra.mxu0 0.0
    %2260 = vmatpush.msra.mxu0 0.0
    %2261 = vmatpush.msra.mxu0 0.0
    %2262 = vmatpush.msra.mxu0 0.0
    %2263 = vmatpush.msra.mxu0 0.0
    %2264 = vmatpush.msra.mxu0 0.0
    %2265 = vmatpush.msra.mxu0 0.0
    %v2266 = vand.u32 %v88, 4294901760
    %v2267 = vsub.f32 %v88, %v2266
    %v2268 = vand.u32 %v2267, 4294901760
    %v2269 = vsub.f32 %v2267, %v2268
    %v2270 = vand.u32 %v2269, 4294901760
    %2271 = vmatpush.msra.mxu0 %v2270
    %v2272 = vand.u32 %v87, 4294901760
    %v2273 = vsub.f32 %v87, %v2272
    %v2274 = vand.u32 %v2273, 4294901760
    %v2275 = vsub.f32 %v2273, %v2274
    %v2276 = vand.u32 %v2275, 4294901760
    %2277 = vmatpush.msra.mxu0 %v2276
    %v2278 = vand.u32 %v86, 4294901760
    %v2279 = vsub.f32 %v86, %v2278
    %v2280 = vand.u32 %v2279, 4294901760
    %v2281 = vsub.f32 %v2279, %v2280
    %v2282 = vand.u32 %v2281, 4294901760
    %2283 = vmatpush.msra.mxu0 %v2282
    %v2284 = vand.u32 %v85, 4294901760
    %v2285 = vsub.f32 %v85, %v2284
    %v2286 = vand.u32 %v2285, 4294901760
    %v2287 = vsub.f32 %v2285, %v2286
    %v2288 = vand.u32 %v2287, 4294901760
    %2289 = vmatpush.msra.mxu0 %v2288
    %v2290 = vand.u32 %v2000, 4294901760
    %2291 = vmatmul.f32.gmra.mxu0 %v2290
    %v2292 = vpop.f32.mrf.mxu0
    %v2293 = vadd.f32 %v2252, %v2292
    %2294 = vdwg.mxu0
    %2295 = vmatpush.msra.mxu0 0.0
    %2296 = vmatpush.msra.mxu0 0.0
    %2297 = vmatpush.msra.mxu0 0.0
    %2298 = vmatpush.msra.mxu0 0.0
    %2299 = vmatpush.msra.mxu0 0.0
    %2300 = vmatpush.msra.mxu0 0.0
    %2301 = vmatpush.msra.mxu0 0.0
    %2302 = vmatpush.msra.mxu0 0.0
    %2303 = vmatpush.msra.mxu0 0.0
    %2304 = vmatpush.msra.mxu0 0.0
    %2305 = vmatpush.msra.mxu0 0.0
    %2306 = vmatpush.msra.mxu0 0.0
    %v2307 = vand.u32 %v88, 4294901760
    %v2308 = vsub.f32 %v88, %v2307
    %2309 = vmatpush.msra.mxu0 %v2308
    %v2310 = vand.u32 %v87, 4294901760
    %v2311 = vsub.f32 %v87, %v2310
    %2312 = vmatpush.msra.mxu0 %v2311
    %v2313 = vand.u32 %v86, 4294901760
    %v2314 = vsub.f32 %v86, %v2313
    %2315 = vmatpush.msra.mxu0 %v2314
    %v2316 = vand.u32 %v85, 4294901760
    %v2317 = vsub.f32 %v85, %v2316
    %2318 = vmatpush.msra.mxu0 %v2317
    %v2319 = vand.u32 %v2000, 4294901760
    %v2320 = vsub.f32 %v2000, %v2319
    %2321 = vmatmul.f32.gmra.mxu0 %v2320
    %v2322 = vpop.f32.mrf.mxu0
    %v2323 = vadd.f32 %v2293, %v2322
    %2324 = vdwg.mxu0
    %2325 = vmatpush.msra.mxu0 0.0
    %2326 = vmatpush.msra.mxu0 0.0
    %2327 = vmatpush.msra.mxu0 0.0
    %2328 = vmatpush.msra.mxu0 0.0
    %2329 = vmatpush.msra.mxu0 0.0
    %2330 = vmatpush.msra.mxu0 0.0
    %2331 = vmatpush.msra.mxu0 0.0
    %2332 = vmatpush.msra.mxu0 0.0
    %2333 = vmatpush.msra.mxu0 0.0
    %2334 = vmatpush.msra.mxu0 0.0
    %2335 = vmatpush.msra.mxu0 0.0
    %2336 = vmatpush.msra.mxu0 0.0
    %v2337 = vand.u32 %v88, 4294901760
    %2338 = vmatpush.msra.mxu0 %v2337
    %v2339 = vand.u32 %v87, 4294901760
    %2340 = vmatpush.msra.mxu0 %v2339
    %v2341 = vand.u32 %v86, 4294901760
    %2342 = vmatpush.msra.mxu0 %v2341
    %v2343 = vand.u32 %v85, 4294901760
    %2344 = vmatpush.msra.mxu0 %v2343
    %v2345 = vand.u32 %v2000, 4294901760
    %v2346 = vsub.f32 %v2000, %v2345
    %v2347 = vand.u32 %v2346, 4294901760
    %2348 = vmatmul.f32.gmra.mxu0 %v2347
    %v2349 = vpop.f32.mrf.mxu0
    %v2350 = vadd.f32 %v2323, %v2349
    %2351 = vdwg.mxu0
    %2352 = vmatpush.msra.mxu0 0.0
    %2353 = vmatpush.msra.mxu0 0.0
    %2354 = vmatpush.msra.mxu0 0.0
    %2355 = vmatpush.msra.mxu0 0.0
    %2356 = vmatpush.msra.mxu0 0.0
    %2357 = vmatpush.msra.mxu0 0.0
    %2358 = vmatpush.msra.mxu0 0.0
    %2359 = vmatpush.msra.mxu0 0.0
    %2360 = vmatpush.msra.mxu0 0.0
    %2361 = vmatpush.msra.mxu0 0.0
    %2362 = vmatpush.msra.mxu0 0.0
    %2363 = vmatpush.msra.mxu0 0.0
    %v2364 = vand.u32 %v88, 4294901760
    %v2365 = vsub.f32 %v88, %v2364
    %v2366 = vand.u32 %v2365, 4294901760
    %2367 = vmatpush.msra.mxu0 %v2366
    %v2368 = vand.u32 %v87, 4294901760
    %v2369 = vsub.f32 %v87, %v2368
    %v2370 = vand.u32 %v2369, 4294901760
    %2371 = vmatpush.msra.mxu0 %v2370
    %v2372 = vand.u32 %v86, 4294901760
    %v2373 = vsub.f32 %v86, %v2372
    %v2374 = vand.u32 %v2373, 4294901760
    %2375 = vmatpush.msra.mxu0 %v2374
    %v2376 = vand.u32 %v85, 4294901760
    %v2377 = vsub.f32 %v85, %v2376
    %v2378 = vand.u32 %v2377, 4294901760
    %2379 = vmatpush.msra.mxu0 %v2378
    %v2380 = vand.u32 %v2000, 4294901760
    %2381 = vmatmul.f32.gmra.mxu0 %v2380
    %v2382 = vpop.f32.mrf.mxu0
    %v2383 = vadd.f32 %v2350, %v2382
    %2384 = vdwg.mxu0
    %2385 = vmatpush.msra.mxu0 0.0
    %2386 = vmatpush.msra.mxu0 0.0
    %2387 = vmatpush.msra.mxu0 0.0
    %2388 = vmatpush.msra.mxu0 0.0
    %2389 = vmatpush.msra.mxu0 0.0
    %2390 = vmatpush.msra.mxu0 0.0
    %2391 = vmatpush.msra.mxu0 0.0
    %2392 = vmatpush.msra.mxu0 0.0
    %2393 = vmatpush.msra.mxu0 0.0
    %2394 = vmatpush.msra.mxu0 0.0
    %2395 = vmatpush.msra.mxu0 0.0
    %2396 = vmatpush.msra.mxu0 0.0
    %v2397 = vand.u32 %v88, 4294901760
    %2398 = vmatpush.msra.mxu0 %v2397
    %v2399 = vand.u32 %v87, 4294901760
    %2400 = vmatpush.msra.mxu0 %v2399
    %v2401 = vand.u32 %v86, 4294901760
    %2402 = vmatpush.msra.mxu0 %v2401
    %v2403 = vand.u32 %v85, 4294901760
    %2404 = vmatpush.msra.mxu0 %v2403
    %v2405 = vand.u32 %v2000, 4294901760
    %2406 = vmatmul.f32.gmra.mxu0 %v2405
    %v2407 = vpop.f32.mrf.mxu0
    %v2408 = vadd.f32 %v2383, %v2407
    %2409 = vdwg.mxu0
    %v2411 = vrot.slane %v2408, 2
    %v2413 = vadd.f32 %v280, %v2411
    %v2414 = vxor.u32 %v2413, 2147483648
    %v2415 = vmul.f32 %v2414, 1.442695
    %v2416 = vpow.pop %v2415
    %v2417 = vadd.f32 %v2416, 1.0
    %v2418 = vrcp.pop %v2417
    %v2419 = vmul.f32 %v2417, %v2418
    %v2420 = vsub.f32 1.0, %v2419
    %v2421 = vmul.f32 %v2418, %v2420
    %v2422 = vadd.f32 %v2418, %v2421
    %vm2423 = vweird.f32 %v2417
    %vm2424 = vweird.f32 %v2418
    %vm2425 = vmor %vm2423, %vm2424
    %v2426 = vsel %vm2425, %v2418, %v2422
    %v2427 = vand.u32 2147483647, %v2417
    %vm2428 = vcmp.eq.f32.partialorder %v2427, 8.507059e+37
    %v2429 = vand.u32 %v2417, 2147483648
    %v2430 = vor.u32 1.1754944e-38, %v2429
    %v2431 = vsel %vm2428, %v2430, %v2426
    %v2432 = vmul.f32 1.0, %v2431
    %v2433 = vtanh.pop %v2413
    %v2435 = vrot.slane %v1799, 6
    %v2437 = vmul.f32 %v2432, %v2435
    %2439 = vrot.lane.b32.xlu0 %v2433, 64
    %v2440 = vpop.permute.xlu0 %2439
    %v2442 = vmul.f32 %v2432, %v2440
    %2444 = vrot.lane.b32.xlu0 %v2442, 32
    %v2445 = vpop.permute.xlu0 %2444
    %v2447 = vadd.f32 %v2437, %v2445
    %v2448 = vtanh.pop %v2447
    %2450 = vrot.lane.b32.xlu0 %v2448, 64
    %v2451 = vpop.permute.xlu0 %2450
    %v2453 = vmul.f32 %v2432, %v2451
    %2455 = vrot.lane.b32.xlu0 %v2224, 32
    %v2456 = vpop.permute.xlu0 %2455
    %v2457 = vsel %vm286, %v2456, 0
    %2459 = vmatpush.msra.mxu0 0.0
    %2460 = vmatpush.msra.mxu0 0.0
    %2461 = vmatpush.msra.mxu0 0.0
    %2462 = vmatpush.msra.mxu0 0.0
    %2463 = vmatpush.msra.mxu0 0.0
    %2464 = vmatpush.msra.mxu0 0.0
    %2465 = vmatpush.msra.mxu0 0.0
    %2466 = vmatpush.msra.mxu0 0.0
    %2467 = vmatpush.msra.mxu0 0.0
    %2468 = vmatpush.msra.mxu0 0.0
    %2469 = vmatpush.msra.mxu0 0.0
    %2470 = vmatpush.msra.mxu0 0.0
    %v2471 = vand.u32 %v92, 4294901760
    %2472 = vmatpush.msra.mxu0 %v2471
    %v2473 = vand.u32 %v91, 4294901760
    %2474 = vmatpush.msra.mxu0 %v2473
    %v2475 = vand.u32 %v90, 4294901760
    %2476 = vmatpush.msra.mxu0 %v2475
    %v2477 = vand.u32 %v89, 4294901760
    %2478 = vmatpush.msra.mxu0 %v2477
    %v2479 = vand.u32 %v2457, 4294901760
    %v2480 = vsub.f32 %v2457, %v2479
    %v2481 = vand.u32 %v2480, 4294901760
    %v2482 = vsub.f32 %v2480, %v2481
    %v2483 = vand.u32 %v2482, 4294901760
    %2484 = vmatmul.f32.gmra.mxu0 %v2483
    %v2485 = vpop.f32.mrf.mxu0
    %v2486 = vadd.f32 0.0, %v2485
    %2487 = vdwg.mxu0
    %2488 = vmatpush.msra.mxu0 0.0
    %2489 = vmatpush.msra.mxu0 0.0
    %2490 = vmatpush.msra.mxu0 0.0
    %2491 = vmatpush.msra.mxu0 0.0
    %2492 = vmatpush.msra.mxu0 0.0
    %2493 = vmatpush.msra.mxu0 0.0
    %2494 = vmatpush.msra.mxu0 0.0
    %2495 = vmatpush.msra.mxu0 0.0
    %2496 = vmatpush.msra.mxu0 0.0
    %2497 = vmatpush.msra.mxu0 0.0
    %2498 = vmatpush.msra.mxu0 0.0
    %2499 = vmatpush.msra.mxu0 0.0
    %v2500 = vand.u32 %v92, 4294901760
    %v2501 = vsub.f32 %v92, %v2500
    %v2502 = vand.u32 %v2501, 4294901760
    %v2503 = vsub.f32 %v2501, %v2502
    %v2504 = vand.u32 %v2503, 4294901760
    %2505 = vmatpush.msra.mxu0 %v2504
    %v2506 = vand.u32 %v91, 4294901760
    %v2507 = vsub.f32 %v91, %v2506
    %v2508 = vand.u32 %v2507, 4294901760
    %v2509 = vsub.f32 %v2507, %v2508
    %v2510 = vand.u32 %v2509, 4294901760
    %2511 = vmatpush.msra.mxu0 %v2510
    %v2512 = vand.u32 %v90, 4294901760
    %v2513 = vsub.f32 %v90, %v2512
    %v2514 = vand.u32 %v2513, 4294901760
    %v2515 = vsub.f32 %v2513, %v2514
    %v2516 = vand.u32 %v2515, 4294901760
    %2517 = vmatpush.msra.mxu0 %v2516
    %v2518 = vand.u32 %v89, 4294901760
    %v2519 = vsub.f32 %v89, %v2518
    %v2520 = vand.u32 %v2519, 4294901760
    %v2521 = vsub.f32 %v2519, %v2520
    %v2522 = vand.u32 %v2521, 4294901760
    %2523 = vmatpush.msra.mxu0 %v2522
    %v2524 = vand.u32 %v2457, 4294901760
    %2525 = vmatmul.f32.gmra.mxu0 %v2524
    %v2526 = vpop.f32.mrf.mxu0
    %v2527 = vadd.f32 %v2486, %v2526
    %2528 = vdwg.mxu0
    %2529 = vmatpush.msra.mxu0 0.0
    %2530 = vmatpush.msra.mxu0 0.0
    %2531 = vmatpush.msra.mxu0 0.0
    %2532 = vmatpush.msra.mxu0 0.0
    %2533 = vmatpush.msra.mxu0 0.0
    %2534 = vmatpush.msra.mxu0 0.0
    %2535 = vmatpush.msra.mxu0 0.0
    %2536 = vmatpush.msra.mxu0 0.0
    %2537 = vmatpush.msra.mxu0 0.0
    %2538 = vmatpush.msra.mxu0 0.0
    %2539 = vmatpush.msra.mxu0 0.0
    %2540 = vmatpush.msra.mxu0 0.0
    %v2541 = vand.u32 %v92, 4294901760
    %v2542 = vsub.f32 %v92, %v2541
    %2543 = vmatpush.msra.mxu0 %v2542
    %v2544 = vand.u32 %v91, 4294901760
    %v2545 = vsub.f32 %v91, %v2544
    %2546 = vmatpush.msra.mxu0 %v2545
    %v2547 = vand.u32 %v90, 4294901760
    %v2548 = vsub.f32 %v90, %v2547
    %2549 = vmatpush.msra.mxu0 %v2548
    %v2550 = vand.u32 %v89, 4294901760
    %v2551 = vsub.f32 %v89, %v2550
    %2552 = vmatpush.msra.mxu0 %v2551
    %v2553 = vand.u32 %v2457, 4294901760
    %v2554 = vsub.f32 %v2457, %v2553
    %2555 = vmatmul.f32.gmra.mxu0 %v2554
    %v2556 = vpop.f32.mrf.mxu0
    %v2557 = vadd.f32 %v2527, %v2556
    %2558 = vdwg.mxu0
    %2559 = vmatpush.msra.mxu0 0.0
    %2560 = vmatpush.msra.mxu0 0.0
    %2561 = vmatpush.msra.mxu0 0.0
    %2562 = vmatpush.msra.mxu0 0.0
    %2563 = vmatpush.msra.mxu0 0.0
    %2564 = vmatpush.msra.mxu0 0.0
    %2565 = vmatpush.msra.mxu0 0.0
    %2566 = vmatpush.msra.mxu0 0.0
    %2567 = vmatpush.msra.mxu0 0.0
    %2568 = vmatpush.msra.mxu0 0.0
    %2569 = vmatpush.msra.mxu0 0.0
    %2570 = vmatpush.msra.mxu0 0.0
    %v2571 = vand.u32 %v92, 4294901760
    %2572 = vmatpush.msra.mxu0 %v2571
    %v2573 = vand.u32 %v91, 4294901760
    %2574 = vmatpush.msra.mxu0 %v2573
    %v2575 = vand.u32 %v90, 4294901760
    %2576 = vmatpush.msra.mxu0 %v2575
    %v2577 = vand.u32 %v89, 4294901760
    %2578 = vmatpush.msra.mxu0 %v2577
    %v2579 = vand.u32 %v2457, 4294901760
    %v2580 = vsub.f32 %v2457, %v2579
    %v2581 = vand.u32 %v2580, 4294901760
    %2582 = vmatmul.f32.gmra.mxu0 %v2581
    %v2583 = vpop.f32.mrf.mxu0
    %v2584 = vadd.f32 %v2557, %v2583
    %2585 = vdwg.mxu0
    %2586 = vmatpush.msra.mxu0 0.0
    %2587 = vmatpush.msra.mxu0 0.0
    %2588 = vmatpush.msra.mxu0 0.0
    %2589 = vmatpush.msra.mxu0 0.0
    %2590 = vmatpush.msra.mxu0 0.0
    %2591 = vmatpush.msra.mxu0 0.0
    %2592 = vmatpush.msra.mxu0 0.0
    %2593 = vmatpush.msra.mxu0 0.0
    %2594 = vmatpush.msra.mxu0 0.0
    %2595 = vmatpush.msra.mxu0 0.0
    %2596 = vmatpush.msra.mxu0 0.0
    %2597 = vmatpush.msra.mxu0 0.0
    %v2598 = vand.u32 %v92, 4294901760
    %v2599 = vsub.f32 %v92, %v2598
    %v2600 = vand.u32 %v2599, 4294901760
    %2601 = vmatpush.msra.mxu0 %v2600
    %v2602 = vand.u32 %v91, 4294901760
    %v2603 = vsub.f32 %v91, %v2602
    %v2604 = vand.u32 %v2603, 4294901760
    %2605 = vmatpush.msra.mxu0 %v2604
    %v2606 = vand.u32 %v90, 4294901760
    %v2607 = vsub.f32 %v90, %v2606
    %v2608 = vand.u32 %v2607, 4294901760
    %2609 = vmatpush.msra.mxu0 %v2608
    %v2610 = vand.u32 %v89, 4294901760
    %v2611 = vsub.f32 %v89, %v2610
    %v2612 = vand.u32 %v2611, 4294901760
    %2613 = vmatpush.msra.mxu0 %v2612
    %v2614 = vand.u32 %v2457, 4294901760
    %2615 = vmatmul.f32.gmra.mxu0 %v2614
    %v2616 = vpop.f32.mrf.mxu0
    %v2617 = vadd.f32 %v2584, %v2616
    %2618 = vdwg.mxu0
    %2619 = vmatpush.msra.mxu0 0.0
    %2620 = vmatpush.msra.mxu0 0.0
    %2621 = vmatpush.msra.mxu0 0.0
    %2622 = vmatpush.msra.mxu0 0.0
    %2623 = vmatpush.msra.mxu0 0.0
    %2624 = vmatpush.msra.mxu0 0.0
    %2625 = vmatpush.msra.mxu0 0.0
    %2626 = vmatpush.msra.mxu0 0.0
    %2627 = vmatpush.msra.mxu0 0.0
    %2628 = vmatpush.msra.mxu0 0.0
    %2629 = vmatpush.msra.mxu0 0.0
    %2630 = vmatpush.msra.mxu0 0.0
    %v2631 = vand.u32 %v92, 4294901760
    %2632 = vmatpush.msra.mxu0 %v2631
    %v2633 = vand.u32 %v91, 4294901760
    %2634 = vmatpush.msra.mxu0 %v2633
    %v2635 = vand.u32 %v90, 4294901760
    %2636 = vmatpush.msra.mxu0 %v2635
    %v2637 = vand.u32 %v89, 4294901760
    %2638 = vmatpush.msra.mxu0 %v2637
    %v2639 = vand.u32 %v2457, 4294901760
    %2640 = vmatmul.f32.gmra.mxu0 %v2639
    %v2641 = vpop.f32.mrf.mxu0
    %v2642 = vadd.f32 %v2617, %v2641
    %2643 = vdwg.mxu0
    %v2645 = vrot.slane %v2453, 6
    %2646 = vrot.lane.b32.xlu0 %v2645, 32
    %v2647 = vpop.permute.xlu0 %2646
    %v2648 = vsel %vm286, %v2647, 0
    %2650 = vmatpush.msra.mxu0 0.0
    %2651 = vmatpush.msra.mxu0 0.0
    %2652 = vmatpush.msra.mxu0 0.0
    %2653 = vmatpush.msra.mxu0 0.0
    %2654 = vmatpush.msra.mxu0 0.0
    %2655 = vmatpush.msra.mxu0 0.0
    %2656 = vmatpush.msra.mxu0 0.0
    %2657 = vmatpush.msra.mxu0 0.0
    %2658 = vmatpush.msra.mxu0 0.0
    %2659 = vmatpush.msra.mxu0 0.0
    %2660 = vmatpush.msra.mxu0 0.0
    %2661 = vmatpush.msra.mxu0 0.0
    %v2662 = vand.u32 %v84, 4294901760
    %2663 = vmatpush.msra.mxu0 %v2662
    %v2664 = vand.u32 %v83, 4294901760
    %2665 = vmatpush.msra.mxu0 %v2664
    %v2666 = vand.u32 %v82, 4294901760
    %2667 = vmatpush.msra.mxu0 %v2666
    %v2668 = vand.u32 %v81, 4294901760
    %2669 = vmatpush.msra.mxu0 %v2668
    %v2670 = vand.u32 %v2648, 4294901760
    %v2671 = vsub.f32 %v2648, %v2670
    %v2672 = vand.u32 %v2671, 4294901760
    %v2673 = vsub.f32 %v2671, %v2672
    %v2674 = vand.u32 %v2673, 4294901760
    %2675 = vmatmul.f32.gmra.mxu0 %v2674
    %v2676 = vpop.f32.mrf.mxu0
    %v2677 = vadd.f32 %v2642, %v2676
    %2678 = vdwg.mxu0
    %2679 = vmatpush.msra.mxu0 0.0
    %2680 = vmatpush.msra.mxu0 0.0
    %2681 = vmatpush.msra.mxu0 0.0
    %2682 = vmatpush.msra.mxu0 0.0
    %2683 = vmatpush.msra.mxu0 0.0
    %2684 = vmatpush.msra.mxu0 0.0
    %2685 = vmatpush.msra.mxu0 0.0
    %2686 = vmatpush.msra.mxu0 0.0
    %2687 = vmatpush.msra.mxu0 0.0
    %2688 = vmatpush.msra.mxu0 0.0
    %2689 = vmatpush.msra.mxu0 0.0
    %2690 = vmatpush.msra.mxu0 0.0
    %v2691 = vand.u32 %v84, 4294901760
    %v2692 = vsub.f32 %v84, %v2691
    %v2693 = vand.u32 %v2692, 4294901760
    %v2694 = vsub.f32 %v2692, %v2693
    %v2695 = vand.u32 %v2694, 4294901760
    %2696 = vmatpush.msra.mxu0 %v2695
    %v2697 = vand.u32 %v83, 4294901760
    %v2698 = vsub.f32 %v83, %v2697
    %v2699 = vand.u32 %v2698, 4294901760
    %v2700 = vsub.f32 %v2698, %v2699
    %v2701 = vand.u32 %v2700, 4294901760
    %2702 = vmatpush.msra.mxu0 %v2701
    %v2703 = vand.u32 %v82, 4294901760
    %v2704 = vsub.f32 %v82, %v2703
    %v2705 = vand.u32 %v2704, 4294901760
    %v2706 = vsub.f32 %v2704, %v2705
    %v2707 = vand.u32 %v2706, 4294901760
    %2708 = vmatpush.msra.mxu0 %v2707
    %v2709 = vand.u32 %v81, 4294901760
    %v2710 = vsub.f32 %v81, %v2709
    %v2711 = vand.u32 %v2710, 4294901760
    %v2712 = vsub.f32 %v2710, %v2711
    %v2713 = vand.u32 %v2712, 4294901760
    %2714 = vmatpush.msra.mxu0 %v2713
    %v2715 = vand.u32 %v2648, 4294901760
    %2716 = vmatmul.f32.gmra.mxu0 %v2715
    %v2717 = vpop.f32.mrf.mxu0
    %v2718 = vadd.f32 %v2677, %v2717
    %2719 = vdwg.mxu0
    %2720 = vmatpush.msra.mxu0 0.0
    %2721 = vmatpush.msra.mxu0 0.0
    %2722 = vmatpush.msra.mxu0 0.0
    %2723 = vmatpush.msra.mxu0 0.0
    %2724 = vmatpush.msra.mxu0 0.0
    %2725 = vmatpush.msra.mxu0 0.0
    %2726 = vmatpush.msra.mxu0 0.0
    %2727 = vmatpush.msra.mxu0 0.0
    %2728 = vmatpush.msra.mxu0 0.0
    %2729 = vmatpush.msra.mxu0 0.0
    %2730 = vmatpush.msra.mxu0 0.0
    %2731 = vmatpush.msra.mxu0 0.0
    %v2732 = vand.u32 %v84, 4294901760
    %v2733 = vsub.f32 %v84, %v2732
    %2734 = vmatpush.msra.mxu0 %v2733
    %v2735 = vand.u32 %v83, 4294901760
    %v2736 = vsub.f32 %v83, %v2735
    %2737 = vmatpush.msra.mxu0 %v2736
    %v2738 = vand.u32 %v82, 4294901760
    %v2739 = vsub.f32 %v82, %v2738
    %2740 = vmatpush.msra.mxu0 %v2739
    %v2741 = vand.u32 %v81, 4294901760
    %v2742 = vsub.f32 %v81, %v2741
    %2743 = vmatpush.msra.mxu0 %v2742
    %v2744 = vand.u32 %v2648, 4294901760
    %v2745 = vsub.f32 %v2648, %v2744
    %2746 = vmatmul.f32.gmra.mxu0 %v2745
    %v2747 = vpop.f32.mrf.mxu0
    %v2748 = vadd.f32 %v2718, %v2747
    %2749 = vdwg.mxu0
    %2750 = vmatpush.msra.mxu0 0.0
    %2751 = vmatpush.msra.mxu0 0.0
    %2752 = vmatpush.msra.mxu0 0.0
    %2753 = vmatpush.msra.mxu0 0.0
    %2754 = vmatpush.msra.mxu0 0.0
    %2755 = vmatpush.msra.mxu0 0.0
    %2756 = vmatpush.msra.mxu0 0.0
    %2757 = vmatpush.msra.mxu0 0.0
    %2758 = vmatpush.msra.mxu0 0.0
    %2759 = vmatpush.msra.mxu0 0.0
    %2760 = vmatpush.msra.mxu0 0.0
    %2761 = vmatpush.msra.mxu0 0.0
    %v2762 = vand.u32 %v84, 4294901760
    %2763 = vmatpush.msra.mxu0 %v2762
    %v2764 = vand.u32 %v83, 4294901760
    %2765 = vmatpush.msra.mxu0 %v2764
    %v2766 = vand.u32 %v82, 4294901760
    %2767 = vmatpush.msra.mxu0 %v2766
    %v2768 = vand.u32 %v81, 4294901760
    %2769 = vmatpush.msra.mxu0 %v2768
    %v2770 = vand.u32 %v2648, 4294901760
    %v2771 = vsub.f32 %v2648, %v2770
    %v2772 = vand.u32 %v2771, 4294901760
    %2773 = vmatmul.f32.gmra.mxu0 %v2772
    %v2774 = vpop.f32.mrf.mxu0
    %v2775 = vadd.f32 %v2748, %v2774
    %2776 = vdwg.mxu0
    %2777 = vmatpush.msra.mxu0 0.0
    %2778 = vmatpush.msra.mxu0 0.0
    %2779 = vmatpush.msra.mxu0 0.0
    %2780 = vmatpush.msra.mxu0 0.0
    %2781 = vmatpush.msra.mxu0 0.0
    %2782 = vmatpush.msra.mxu0 0.0
    %2783 = vmatpush.msra.mxu0 0.0
    %2784 = vmatpush.msra.mxu0 0.0
    %2785 = vmatpush.msra.mxu0 0.0
    %2786 = vmatpush.msra.mxu0 0.0
    %2787 = vmatpush.msra.mxu0 0.0
    %2788 = vmatpush.msra.mxu0 0.0
    %v2789 = vand.u32 %v84, 4294901760
    %v2790 = vsub.f32 %v84, %v2789
    %v2791 = vand.u32 %v2790, 4294901760
    %2792 = vmatpush.msra.mxu0 %v2791
    %v2793 = vand.u32 %v83, 4294901760
    %v2794 = vsub.f32 %v83, %v2793
    %v2795 = vand.u32 %v2794, 4294901760
    %2796 = vmatpush.msra.mxu0 %v2795
    %v2797 = vand.u32 %v82, 4294901760
    %v2798 = vsub.f32 %v82, %v2797
    %v2799 = vand.u32 %v2798, 4294901760
    %2800 = vmatpush.msra.mxu0 %v2799
    %v2801 = vand.u32 %v81, 4294901760
    %v2802 = vsub.f32 %v81, %v2801
    %v2803 = vand.u32 %v2802, 4294901760
    %2804 = vmatpush.msra.mxu0 %v2803
    %v2805 = vand.u32 %v2648, 4294901760
    %2806 = vmatmul.f32.gmra.mxu0 %v2805
    %v2807 = vpop.f32.mrf.mxu0
    %v2808 = vadd.f32 %v2775, %v2807
    %2809 = vdwg.mxu0
    %2810 = vmatpush.msra.mxu0 0.0
    %2811 = vmatpush.msra.mxu0 0.0
    %2812 = vmatpush.msra.mxu0 0.0
    %2813 = vmatpush.msra.mxu0 0.0
    %2814 = vmatpush.msra.mxu0 0.0
    %2815 = vmatpush.msra.mxu0 0.0
    %2816 = vmatpush.msra.mxu0 0.0
    %2817 = vmatpush.msra.mxu0 0.0
    %2818 = vmatpush.msra.mxu0 0.0
    %2819 = vmatpush.msra.mxu0 0.0
    %2820 = vmatpush.msra.mxu0 0.0
    %2821 = vmatpush.msra.mxu0 0.0
    %v2822 = vand.u32 %v84, 4294901760
    %2823 = vmatpush.msra.mxu0 %v2822
    %v2824 = vand.u32 %v83, 4294901760
    %2825 = vmatpush.msra.mxu0 %v2824
    %v2826 = vand.u32 %v82, 4294901760
    %2827 = vmatpush.msra.mxu0 %v2826
    %v2828 = vand.u32 %v81, 4294901760
    %2829 = vmatpush.msra.mxu0 %v2828
    %v2830 = vand.u32 %v2648, 4294901760
    %2831 = vmatmul.f32.gmra.mxu0 %v2830
    %v2832 = vpop.f32.mrf.mxu0
    %v2833 = vadd.f32 %v2808, %v2832
    %2834 = vdwg.mxu0
    %v2835 = vadd.f32 %v2833, %v889
    %v2836 = vxor.u32 %v2835, 2147483648
    %v2837 = vmul.f32 %v2836, 1.442695
    %v2838 = vpow.pop %v2837
    %v2839 = vadd.f32 %v2838, 1.0
    %v2840 = vrcp.pop %v2839
    %v2841 = vmul.f32 %v2839, %v2840
    %v2842 = vsub.f32 1.0, %v2841
    %v2843 = vmul.f32 %v2840, %v2842
    %v2844 = vadd.f32 %v2840, %v2843
    %vm2845 = vweird.f32 %v2839
    %vm2846 = vweird.f32 %v2840
    %vm2847 = vmor %vm2845, %vm2846
    %v2848 = vsel %vm2847, %v2840, %v2844
    %v2849 = vand.u32 2147483647, %v2839
    %vm2850 = vcmp.eq.f32.partialorder %v2849, 8.507059e+37
    %v2851 = vand.u32 %v2839, 2147483648
    %v2852 = vor.u32 1.1754944e-38, %v2851
    %v2853 = vsel %vm2850, %v2852, %v2848
    %v2854 = vmul.f32 1.0, %v2853
    %v2855 = vtanh.pop %v2835
    %v2856 = vmul.f32 %v2854, %v2218
    %2858 = vrot.lane.b32.xlu0 %v2855, 64
    %v2859 = vpop.permute.xlu0 %2858
    %v2861 = vmul.f32 %v2854, %v2859
    %2863 = vrot.lane.b32.xlu0 %v2861, 32
    %v2864 = vpop.permute.xlu0 %2863
    %v2866 = vadd.f32 %v2856, %v2864
    %v2867 = vtanh.pop %v2866
    %2869 = vrot.lane.b32.xlu0 %v2867, 64
    %v2870 = vpop.permute.xlu0 %2869
    %v2872 = vmul.f32 %v2854, %v2870
    %2873 = vmatpush.msra.mxu0 0.0
    %2874 = vmatpush.msra.mxu0 0.0
    %2875 = vmatpush.msra.mxu0 0.0
    %2876 = vmatpush.msra.mxu0 0.0
    %2877 = vmatpush.msra.mxu0 0.0
    %2878 = vmatpush.msra.mxu0 0.0
    %2879 = vmatpush.msra.mxu0 0.0
    %2880 = vmatpush.msra.mxu0 0.0
    %2881 = vmatpush.msra.mxu0 0.0
    %2882 = vmatpush.msra.mxu0 0.0
    %2883 = vmatpush.msra.mxu0 0.0
    %2884 = vmatpush.msra.mxu0 0.0
    %v2885 = vand.u32 %v88, 4294901760
    %2886 = vmatpush.msra.mxu0 %v2885
    %v2887 = vand.u32 %v87, 4294901760
    %2888 = vmatpush.msra.mxu0 %v2887
    %v2889 = vand.u32 %v86, 4294901760
    %2890 = vmatpush.msra.mxu0 %v2889
    %v2891 = vand.u32 %v85, 4294901760
    %2892 = vmatpush.msra.mxu0 %v2891
    %v2893 = vand.u32 %v2648, 4294901760
    %v2894 = vsub.f32 %v2648, %v2893
    %v2895 = vand.u32 %v2894, 4294901760
    %v2896 = vsub.f32 %v2894, %v2895
    %v2897 = vand.u32 %v2896, 4294901760
    %2898 = vmatmul.f32.gmra.mxu0 %v2897
    %v2899 = vpop.f32.mrf.mxu0
    %v2900 = vadd.f32 0.0, %v2899
    %2901 = vdwg.mxu0
    %2902 = vmatpush.msra.mxu0 0.0
    %2903 = vmatpush.msra.mxu0 0.0
    %2904 = vmatpush.msra.mxu0 0.0
    %2905 = vmatpush.msra.mxu0 0.0
    %2906 = vmatpush.msra.mxu0 0.0
    %2907 = vmatpush.msra.mxu0 0.0
    %2908 = vmatpush.msra.mxu0 0.0
    %2909 = vmatpush.msra.mxu0 0.0
    %2910 = vmatpush.msra.mxu0 0.0
    %2911 = vmatpush.msra.mxu0 0.0
    %2912 = vmatpush.msra.mxu0 0.0
    %2913 = vmatpush.msra.mxu0 0.0
    %v2914 = vand.u32 %v88, 4294901760
    %v2915 = vsub.f32 %v88, %v2914
    %v2916 = vand.u32 %v2915, 4294901760
    %v2917 = vsub.f32 %v2915, %v2916
    %v2918 = vand.u32 %v2917, 4294901760
    %2919 = vmatpush.msra.mxu0 %v2918
    %v2920 = vand.u32 %v87, 4294901760
    %v2921 = vsub.f32 %v87, %v2920
    %v2922 = vand.u32 %v2921, 4294901760
    %v2923 = vsub.f32 %v2921, %v2922
    %v2924 = vand.u32 %v2923, 4294901760
    %2925 = vmatpush.msra.mxu0 %v2924
    %v2926 = vand.u32 %v86, 4294901760
    %v2927 = vsub.f32 %v86, %v2926
    %v2928 = vand.u32 %v2927, 4294901760
    %v2929 = vsub.f32 %v2927, %v2928
    %v2930 = vand.u32 %v2929, 4294901760
    %2931 = vmatpush.msra.mxu0 %v2930
    %v2932 = vand.u32 %v85, 4294901760
    %v2933 = vsub.f32 %v85, %v2932
    %v2934 = vand.u32 %v2933, 4294901760
    %v2935 = vsub.f32 %v2933, %v2934
    %v2936 = vand.u32 %v2935, 4294901760
    %2937 = vmatpush.msra.mxu0 %v2936
    %v2938 = vand.u32 %v2648, 4294901760
    %2939 = vmatmul.f32.gmra.mxu0 %v2938
    %v2940 = vpop.f32.mrf.mxu0
    %v2941 = vadd.f32 %v2900, %v2940
    %2942 = vdwg.mxu0
    %2943 = vmatpush.msra.mxu0 0.0
    %2944 = vmatpush.msra.mxu0 0.0
    %2945 = vmatpush.msra.mxu0 0.0
    %2946 = vmatpush.msra.mxu0 0.0
    %2947 = vmatpush.msra.mxu0 0.0
    %2948 = vmatpush.msra.mxu0 0.0
    %2949 = vmatpush.msra.mxu0 0.0
    %2950 = vmatpush.msra.mxu0 0.0
    %2951 = vmatpush.msra.mxu0 0.0
    %2952 = vmatpush.msra.mxu0 0.0
    %2953 = vmatpush.msra.mxu0 0.0
    %2954 = vmatpush.msra.mxu0 0.0
    %v2955 = vand.u32 %v88, 4294901760
    %v2956 = vsub.f32 %v88, %v2955
    %2957 = vmatpush.msra.mxu0 %v2956
    %v2958 = vand.u32 %v87, 4294901760
    %v2959 = vsub.f32 %v87, %v2958
    %2960 = vmatpush.msra.mxu0 %v2959
    %v2961 = vand.u32 %v86, 4294901760
    %v2962 = vsub.f32 %v86, %v2961
    %2963 = vmatpush.msra.mxu0 %v2962
    %v2964 = vand.u32 %v85, 4294901760
    %v2965 = vsub.f32 %v85, %v2964
    %2966 = vmatpush.msra.mxu0 %v2965
    %v2967 = vand.u32 %v2648, 4294901760
    %v2968 = vsub.f32 %v2648, %v2967
    %2969 = vmatmul.f32.gmra.mxu0 %v2968
    %v2970 = vpop.f32.mrf.mxu0
    %v2971 = vadd.f32 %v2941, %v2970
    %2972 = vdwg.mxu0
    %2973 = vmatpush.msra.mxu0 0.0
    %2974 = vmatpush.msra.mxu0 0.0
    %2975 = vmatpush.msra.mxu0 0.0
    %2976 = vmatpush.msra.mxu0 0.0
    %2977 = vmatpush.msra.mxu0 0.0
    %2978 = vmatpush.msra.mxu0 0.0
    %2979 = vmatpush.msra.mxu0 0.0
    %2980 = vmatpush.msra.mxu0 0.0
    %2981 = vmatpush.msra.mxu0 0.0
    %2982 = vmatpush.msra.mxu0 0.0
    %2983 = vmatpush.msra.mxu0 0.0
    %2984 = vmatpush.msra.mxu0 0.0
    %v2985 = vand.u32 %v88, 4294901760
    %2986 = vmatpush.msra.mxu0 %v2985
    %v2987 = vand.u32 %v87, 4294901760
    %2988 = vmatpush.msra.mxu0 %v2987
    %v2989 = vand.u32 %v86, 4294901760
    %2990 = vmatpush.msra.mxu0 %v2989
    %v2991 = vand.u32 %v85, 4294901760
    %2992 = vmatpush.msra.mxu0 %v2991
    %v2993 = vand.u32 %v2648, 4294901760
    %v2994 = vsub.f32 %v2648, %v2993
    %v2995 = vand.u32 %v2994, 4294901760
    %2996 = vmatmul.f32.gmra.mxu0 %v2995
    %v2997 = vpop.f32.mrf.mxu0
    %v2998 = vadd.f32 %v2971, %v2997
    %2999 = vdwg.mxu0
    %3000 = vmatpush.msra.mxu0 0.0
    %3001 = vmatpush.msra.mxu0 0.0
    %3002 = vmatpush.msra.mxu0 0.0
    %3003 = vmatpush.msra.mxu0 0.0
    %3004 = vmatpush.msra.mxu0 0.0
    %3005 = vmatpush.msra.mxu0 0.0
    %3006 = vmatpush.msra.mxu0 0.0
    %3007 = vmatpush.msra.mxu0 0.0
    %3008 = vmatpush.msra.mxu0 0.0
    %3009 = vmatpush.msra.mxu0 0.0
    %3010 = vmatpush.msra.mxu0 0.0
    %3011 = vmatpush.msra.mxu0 0.0
    %v3012 = vand.u32 %v88, 4294901760
    %v3013 = vsub.f32 %v88, %v3012
    %v3014 = vand.u32 %v3013, 4294901760
    %3015 = vmatpush.msra.mxu0 %v3014
    %v3016 = vand.u32 %v87, 4294901760
    %v3017 = vsub.f32 %v87, %v3016
    %v3018 = vand.u32 %v3017, 4294901760
    %3019 = vmatpush.msra.mxu0 %v3018
    %v3020 = vand.u32 %v86, 4294901760
    %v3021 = vsub.f32 %v86, %v3020
    %v3022 = vand.u32 %v3021, 4294901760
    %3023 = vmatpush.msra.mxu0 %v3022
    %v3024 = vand.u32 %v85, 4294901760
    %v3025 = vsub.f32 %v85, %v3024
    %v3026 = vand.u32 %v3025, 4294901760
    %3027 = vmatpush.msra.mxu0 %v3026
    %v3028 = vand.u32 %v2648, 4294901760
    %3029 = vmatmul.f32.gmra.mxu0 %v3028
    %v3030 = vpop.f32.mrf.mxu0
    %v3031 = vadd.f32 %v2998, %v3030
    %3032 = vdwg.mxu0
    %3033 = vmatpush.msra.mxu0 0.0
    %3034 = vmatpush.msra.mxu0 0.0
    %3035 = vmatpush.msra.mxu0 0.0
    %3036 = vmatpush.msra.mxu0 0.0
    %3037 = vmatpush.msra.mxu0 0.0
    %3038 = vmatpush.msra.mxu0 0.0
    %3039 = vmatpush.msra.mxu0 0.0
    %3040 = vmatpush.msra.mxu0 0.0
    %3041 = vmatpush.msra.mxu0 0.0
    %3042 = vmatpush.msra.mxu0 0.0
    %3043 = vmatpush.msra.mxu0 0.0
    %3044 = vmatpush.msra.mxu0 0.0
    %v3045 = vand.u32 %v88, 4294901760
    %3046 = vmatpush.msra.mxu0 %v3045
    %v3047 = vand.u32 %v87, 4294901760
    %3048 = vmatpush.msra.mxu0 %v3047
    %v3049 = vand.u32 %v86, 4294901760
    %3050 = vmatpush.msra.mxu0 %v3049
    %v3051 = vand.u32 %v85, 4294901760
    %3052 = vmatpush.msra.mxu0 %v3051
    %v3053 = vand.u32 %v2648, 4294901760
    %3054 = vmatmul.f32.gmra.mxu0 %v3053
    %v3055 = vpop.f32.mrf.mxu0
    %v3056 = vadd.f32 %v3031, %v3055
    %3057 = vdwg.mxu0
    %v3058 = vadd.f32 %v284, %v3056
    %v3059 = vxor.u32 %v3058, 2147483648
    %v3060 = vmul.f32 %v3059, 1.442695
    %v3061 = vpow.pop %v3060
    %v3062 = vadd.f32 %v3061, 1.0
    %v3063 = vrcp.pop %v3062
    %v3064 = vmul.f32 %v3062, %v3063
    %v3065 = vsub.f32 1.0, %v3064
    %v3066 = vmul.f32 %v3063, %v3065
    %v3067 = vadd.f32 %v3063, %v3066
    %vm3068 = vweird.f32 %v3062
    %vm3069 = vweird.f32 %v3063
    %vm3070 = vmor %vm3068, %vm3069
    %v3071 = vsel %vm3070, %v3063, %v3067
    %v3072 = vand.u32 2147483647, %v3062
    %vm3073 = vcmp.eq.f32.partialorder %v3072, 8.507059e+37
    %v3074 = vand.u32 %v3062, 2147483648
    %v3075 = vor.u32 1.1754944e-38, %v3074
    %v3076 = vsel %vm3073, %v3075, %v3071
    %v3077 = vmul.f32 1.0, %v3076
    %v3078 = vtanh.pop %v3058
    %v3080 = vrot.slane %v2447, 6
    %v3082 = vmul.f32 %v3077, %v3080
    %3084 = vrot.lane.b32.xlu0 %v3078, 64
    %v3085 = vpop.permute.xlu0 %3084
    %v3087 = vmul.f32 %v3077, %v3085
    %3089 = vrot.lane.b32.xlu0 %v3087, 32
    %v3090 = vpop.permute.xlu0 %3089
    %v3092 = vadd.f32 %v3082, %v3090
    %v3093 = vtanh.pop %v3092
    %3095 = vrot.lane.b32.xlu0 %v3093, 64
    %v3096 = vpop.permute.xlu0 %3095
    %v3098 = vmul.f32 %v3077, %v3096
    %3100 = vrot.lane.b32.xlu0 %v2872, 32
    %v3101 = vpop.permute.xlu0 %3100
    %v3102 = vsel %vm286, %v3101, 0
    %3104 = vmatpush.msra.mxu0 0.0
    %3105 = vmatpush.msra.mxu0 0.0
    %3106 = vmatpush.msra.mxu0 0.0
    %3107 = vmatpush.msra.mxu0 0.0
    %3108 = vmatpush.msra.mxu0 0.0
    %3109 = vmatpush.msra.mxu0 0.0
    %3110 = vmatpush.msra.mxu0 0.0
    %3111 = vmatpush.msra.mxu0 0.0
    %3112 = vmatpush.msra.mxu0 0.0
    %3113 = vmatpush.msra.mxu0 0.0
    %3114 = vmatpush.msra.mxu0 0.0
    %3115 = vmatpush.msra.mxu0 0.0
    %v3116 = vand.u32 %v92, 4294901760
    %3117 = vmatpush.msra.mxu0 %v3116
    %v3118 = vand.u32 %v91, 4294901760
    %3119 = vmatpush.msra.mxu0 %v3118
    %v3120 = vand.u32 %v90, 4294901760
    %3121 = vmatpush.msra.mxu0 %v3120
    %v3122 = vand.u32 %v89, 4294901760
    %3123 = vmatpush.msra.mxu0 %v3122
    %v3124 = vand.u32 %v3102, 4294901760
    %v3125 = vsub.f32 %v3102, %v3124
    %v3126 = vand.u32 %v3125, 4294901760
    %v3127 = vsub.f32 %v3125, %v3126
    %v3128 = vand.u32 %v3127, 4294901760
    %3129 = vmatmul.f32.gmra.mxu0 %v3128
    %v3130 = vpop.f32.mrf.mxu0
    %v3131 = vadd.f32 0.0, %v3130
    %3132 = vdwg.mxu0
    %3133 = vmatpush.msra.mxu0 0.0
    %3134 = vmatpush.msra.mxu0 0.0
    %3135 = vmatpush.msra.mxu0 0.0
    %3136 = vmatpush.msra.mxu0 0.0
    %3137 = vmatpush.msra.mxu0 0.0
    %3138 = vmatpush.msra.mxu0 0.0
    %3139 = vmatpush.msra.mxu0 0.0
    %3140 = vmatpush.msra.mxu0 0.0
    %3141 = vmatpush.msra.mxu0 0.0
    %3142 = vmatpush.msra.mxu0 0.0
    %3143 = vmatpush.msra.mxu0 0.0
    %3144 = vmatpush.msra.mxu0 0.0
    %v3145 = vand.u32 %v92, 4294901760
    %v3146 = vsub.f32 %v92, %v3145
    %v3147 = vand.u32 %v3146, 4294901760
    %v3148 = vsub.f32 %v3146, %v3147
    %v3149 = vand.u32 %v3148, 4294901760
    %3150 = vmatpush.msra.mxu0 %v3149
    %v3151 = vand.u32 %v91, 4294901760
    %v3152 = vsub.f32 %v91, %v3151
    %v3153 = vand.u32 %v3152, 4294901760
    %v3154 = vsub.f32 %v3152, %v3153
    %v3155 = vand.u32 %v3154, 4294901760
    %3156 = vmatpush.msra.mxu0 %v3155
    %v3157 = vand.u32 %v90, 4294901760
    %v3158 = vsub.f32 %v90, %v3157
    %v3159 = vand.u32 %v3158, 4294901760
    %v3160 = vsub.f32 %v3158, %v3159
    %v3161 = vand.u32 %v3160, 4294901760
    %3162 = vmatpush.msra.mxu0 %v3161
    %v3163 = vand.u32 %v89, 4294901760
    %v3164 = vsub.f32 %v89, %v3163
    %v3165 = vand.u32 %v3164, 4294901760
    %v3166 = vsub.f32 %v3164, %v3165
    %v3167 = vand.u32 %v3166, 4294901760
    %3168 = vmatpush.msra.mxu0 %v3167
    %v3169 = vand.u32 %v3102, 4294901760
    %3170 = vmatmul.f32.gmra.mxu0 %v3169
    %v3171 = vpop.f32.mrf.mxu0
    %v3172 = vadd.f32 %v3131, %v3171
    %3173 = vdwg.mxu0
    %3174 = vmatpush.msra.mxu0 0.0
    %3175 = vmatpush.msra.mxu0 0.0
    %3176 = vmatpush.msra.mxu0 0.0
    %3177 = vmatpush.msra.mxu0 0.0
    %3178 = vmatpush.msra.mxu0 0.0
    %3179 = vmatpush.msra.mxu0 0.0
    %3180 = vmatpush.msra.mxu0 0.0
    %3181 = vmatpush.msra.mxu0 0.0
    %3182 = vmatpush.msra.mxu0 0.0
    %3183 = vmatpush.msra.mxu0 0.0
    %3184 = vmatpush.msra.mxu0 0.0
    %3185 = vmatpush.msra.mxu0 0.0
    %v3186 = vand.u32 %v92, 4294901760
    %v3187 = vsub.f32 %v92, %v3186
    %3188 = vmatpush.msra.mxu0 %v3187
    %v3189 = vand.u32 %v91, 4294901760
    %v3190 = vsub.f32 %v91, %v3189
    %3191 = vmatpush.msra.mxu0 %v3190
    %v3192 = vand.u32 %v90, 4294901760
    %v3193 = vsub.f32 %v90, %v3192
    %3194 = vmatpush.msra.mxu0 %v3193
    %v3195 = vand.u32 %v89, 4294901760
    %v3196 = vsub.f32 %v89, %v3195
    %3197 = vmatpush.msra.mxu0 %v3196
    %v3198 = vand.u32 %v3102, 4294901760
    %v3199 = vsub.f32 %v3102, %v3198
    %3200 = vmatmul.f32.gmra.mxu0 %v3199
    %v3201 = vpop.f32.mrf.mxu0
    %v3202 = vadd.f32 %v3172, %v3201
    %3203 = vdwg.mxu0
    %3204 = vmatpush.msra.mxu0 0.0
    %3205 = vmatpush.msra.mxu0 0.0
    %3206 = vmatpush.msra.mxu0 0.0
    %3207 = vmatpush.msra.mxu0 0.0
    %3208 = vmatpush.msra.mxu0 0.0
    %3209 = vmatpush.msra.mxu0 0.0
    %3210 = vmatpush.msra.mxu0 0.0
    %3211 = vmatpush.msra.mxu0 0.0
    %3212 = vmatpush.msra.mxu0 0.0
    %3213 = vmatpush.msra.mxu0 0.0
    %3214 = vmatpush.msra.mxu0 0.0
    %3215 = vmatpush.msra.mxu0 0.0
    %v3216 = vand.u32 %v92, 4294901760
    %3217 = vmatpush.msra.mxu0 %v3216
    %v3218 = vand.u32 %v91, 4294901760
    %3219 = vmatpush.msra.mxu0 %v3218
    %v3220 = vand.u32 %v90, 4294901760
    %3221 = vmatpush.msra.mxu0 %v3220
    %v3222 = vand.u32 %v89, 4294901760
    %3223 = vmatpush.msra.mxu0 %v3222
    %v3224 = vand.u32 %v3102, 4294901760
    %v3225 = vsub.f32 %v3102, %v3224
    %v3226 = vand.u32 %v3225, 4294901760
    %3227 = vmatmul.f32.gmra.mxu0 %v3226
    %v3228 = vpop.f32.mrf.mxu0
    %v3229 = vadd.f32 %v3202, %v3228
    %3230 = vdwg.mxu0
    %3231 = vmatpush.msra.mxu0 0.0
    %3232 = vmatpush.msra.mxu0 0.0
    %3233 = vmatpush.msra.mxu0 0.0
    %3234 = vmatpush.msra.mxu0 0.0
    %3235 = vmatpush.msra.mxu0 0.0
    %3236 = vmatpush.msra.mxu0 0.0
    %3237 = vmatpush.msra.mxu0 0.0
    %3238 = vmatpush.msra.mxu0 0.0
    %3239 = vmatpush.msra.mxu0 0.0
    %3240 = vmatpush.msra.mxu0 0.0
    %3241 = vmatpush.msra.mxu0 0.0
    %3242 = vmatpush.msra.mxu0 0.0
    %v3243 = vand.u32 %v92, 4294901760
    %v3244 = vsub.f32 %v92, %v3243
    %v3245 = vand.u32 %v3244, 4294901760
    %3246 = vmatpush.msra.mxu0 %v3245
    %v3247 = vand.u32 %v91, 4294901760
    %v3248 = vsub.f32 %v91, %v3247
    %v3249 = vand.u32 %v3248, 4294901760
    %3250 = vmatpush.msra.mxu0 %v3249
    %v3251 = vand.u32 %v90, 4294901760
    %v3252 = vsub.f32 %v90, %v3251
    %v3253 = vand.u32 %v3252, 4294901760
    %3254 = vmatpush.msra.mxu0 %v3253
    %v3255 = vand.u32 %v89, 4294901760
    %v3256 = vsub.f32 %v89, %v3255
    %v3257 = vand.u32 %v3256, 4294901760
    %3258 = vmatpush.msra.mxu0 %v3257
    %v3259 = vand.u32 %v3102, 4294901760
    %3260 = vmatmul.f32.gmra.mxu0 %v3259
    %v3261 = vpop.f32.mrf.mxu0
    %v3262 = vadd.f32 %v3229, %v3261
    %3263 = vdwg.mxu0
    %3264 = vmatpush.msra.mxu0 0.0
    %3265 = vmatpush.msra.mxu0 0.0
    %3266 = vmatpush.msra.mxu0 0.0
    %3267 = vmatpush.msra.mxu0 0.0
    %3268 = vmatpush.msra.mxu0 0.0
    %3269 = vmatpush.msra.mxu0 0.0
    %3270 = vmatpush.msra.mxu0 0.0
    %3271 = vmatpush.msra.mxu0 0.0
    %3272 = vmatpush.msra.mxu0 0.0
    %3273 = vmatpush.msra.mxu0 0.0
    %3274 = vmatpush.msra.mxu0 0.0
    %3275 = vmatpush.msra.mxu0 0.0
    %v3276 = vand.u32 %v92, 4294901760
    %3277 = vmatpush.msra.mxu0 %v3276
    %v3278 = vand.u32 %v91, 4294901760
    %3279 = vmatpush.msra.mxu0 %v3278
    %v3280 = vand.u32 %v90, 4294901760
    %3281 = vmatpush.msra.mxu0 %v3280
    %v3282 = vand.u32 %v89, 4294901760
    %3283 = vmatpush.msra.mxu0 %v3282
    %v3284 = vand.u32 %v3102, 4294901760
    %3285 = vmatmul.f32.gmra.mxu0 %v3284
    %v3286 = vpop.f32.mrf.mxu0
    %v3287 = vadd.f32 %v3262, %v3286
    %3288 = vdwg.mxu0
    %3290 = vrot.lane.b32.xlu0 %v3098, 32
    %v3291 = vpop.permute.xlu0 %3290
    %v3292 = vsel %vm286, %v3291, 0
    %3294 = vmatpush.msra.mxu0 0.0
    %3295 = vmatpush.msra.mxu0 0.0
    %3296 = vmatpush.msra.mxu0 0.0
    %3297 = vmatpush.msra.mxu0 0.0
    %3298 = vmatpush.msra.mxu0 0.0
    %3299 = vmatpush.msra.mxu0 0.0
    %3300 = vmatpush.msra.mxu0 0.0
    %3301 = vmatpush.msra.mxu0 0.0
    %3302 = vmatpush.msra.mxu0 0.0
    %3303 = vmatpush.msra.mxu0 0.0
    %3304 = vmatpush.msra.mxu0 0.0
    %3305 = vmatpush.msra.mxu0 0.0
    %v3306 = vand.u32 %v84, 4294901760
    %3307 = vmatpush.msra.mxu0 %v3306
    %v3308 = vand.u32 %v83, 4294901760
    %3309 = vmatpush.msra.mxu0 %v3308
    %v3310 = vand.u32 %v82, 4294901760
    %3311 = vmatpush.msra.mxu0 %v3310
    %v3312 = vand.u32 %v81, 4294901760
    %3313 = vmatpush.msra.mxu0 %v3312
    %v3314 = vand.u32 %v3292, 4294901760
    %v3315 = vsub.f32 %v3292, %v3314
    %v3316 = vand.u32 %v3315, 4294901760
    %v3317 = vsub.f32 %v3315, %v3316
    %v3318 = vand.u32 %v3317, 4294901760
    %3319 = vmatmul.f32.gmra.mxu0 %v3318
    %v3320 = vpop.f32.mrf.mxu0
    %v3321 = vadd.f32 %v3287, %v3320
    %3322 = vdwg.mxu0
    %3323 = vmatpush.msra.mxu0 0.0
    %3324 = vmatpush.msra.mxu0 0.0
    %3325 = vmatpush.msra.mxu0 0.0
    %3326 = vmatpush.msra.mxu0 0.0
    %3327 = vmatpush.msra.mxu0 0.0
    %3328 = vmatpush.msra.mxu0 0.0
    %3329 = vmatpush.msra.mxu0 0.0
    %3330 = vmatpush.msra.mxu0 0.0
    %3331 = vmatpush.msra.mxu0 0.0
    %3332 = vmatpush.msra.mxu0 0.0
    %3333 = vmatpush.msra.mxu0 0.0
    %3334 = vmatpush.msra.mxu0 0.0
    %v3335 = vand.u32 %v84, 4294901760
    %v3336 = vsub.f32 %v84, %v3335
    %v3337 = vand.u32 %v3336, 4294901760
    %v3338 = vsub.f32 %v3336, %v3337
    %v3339 = vand.u32 %v3338, 4294901760
    %3340 = vmatpush.msra.mxu0 %v3339
    %v3341 = vand.u32 %v83, 4294901760
    %v3342 = vsub.f32 %v83, %v3341
    %v3343 = vand.u32 %v3342, 4294901760
    %v3344 = vsub.f32 %v3342, %v3343
    %v3345 = vand.u32 %v3344, 4294901760
    %3346 = vmatpush.msra.mxu0 %v3345
    %v3347 = vand.u32 %v82, 4294901760
    %v3348 = vsub.f32 %v82, %v3347
    %v3349 = vand.u32 %v3348, 4294901760
    %v3350 = vsub.f32 %v3348, %v3349
    %v3351 = vand.u32 %v3350, 4294901760
    %3352 = vmatpush.msra.mxu0 %v3351
    %v3353 = vand.u32 %v81, 4294901760
    %v3354 = vsub.f32 %v81, %v3353
    %v3355 = vand.u32 %v3354, 4294901760
    %v3356 = vsub.f32 %v3354, %v3355
    %v3357 = vand.u32 %v3356, 4294901760
    %3358 = vmatpush.msra.mxu0 %v3357
    %v3359 = vand.u32 %v3292, 4294901760
    %3360 = vmatmul.f32.gmra.mxu0 %v3359
    %v3361 = vpop.f32.mrf.mxu0
    %v3362 = vadd.f32 %v3321, %v3361
    %3363 = vdwg.mxu0
    %3364 = vmatpush.msra.mxu0 0.0
    %3365 = vmatpush.msra.mxu0 0.0
    %3366 = vmatpush.msra.mxu0 0.0
    %3367 = vmatpush.msra.mxu0 0.0
    %3368 = vmatpush.msra.mxu0 0.0
    %3369 = vmatpush.msra.mxu0 0.0
    %3370 = vmatpush.msra.mxu0 0.0
    %3371 = vmatpush.msra.mxu0 0.0
    %3372 = vmatpush.msra.mxu0 0.0
    %3373 = vmatpush.msra.mxu0 0.0
    %3374 = vmatpush.msra.mxu0 0.0
    %3375 = vmatpush.msra.mxu0 0.0
    %v3376 = vand.u32 %v84, 4294901760
    %v3377 = vsub.f32 %v84, %v3376
    %3378 = vmatpush.msra.mxu0 %v3377
    %v3379 = vand.u32 %v83, 4294901760
    %v3380 = vsub.f32 %v83, %v3379
    %3381 = vmatpush.msra.mxu0 %v3380
    %v3382 = vand.u32 %v82, 4294901760
    %v3383 = vsub.f32 %v82, %v3382
    %3384 = vmatpush.msra.mxu0 %v3383
    %v3385 = vand.u32 %v81, 4294901760
    %v3386 = vsub.f32 %v81, %v3385
    %3387 = vmatpush.msra.mxu0 %v3386
    %v3388 = vand.u32 %v3292, 4294901760
    %v3389 = vsub.f32 %v3292, %v3388
    %3390 = vmatmul.f32.gmra.mxu0 %v3389
    %v3391 = vpop.f32.mrf.mxu0
    %v3392 = vadd.f32 %v3362, %v3391
    %3393 = vdwg.mxu0
    %3394 = vmatpush.msra.mxu0 0.0
    %3395 = vmatpush.msra.mxu0 0.0
    %3396 = vmatpush.msra.mxu0 0.0
    %3397 = vmatpush.msra.mxu0 0.0
    %3398 = vmatpush.msra.mxu0 0.0
    %3399 = vmatpush.msra.mxu0 0.0
    %3400 = vmatpush.msra.mxu0 0.0
    %3401 = vmatpush.msra.mxu0 0.0
    %3402 = vmatpush.msra.mxu0 0.0
    %3403 = vmatpush.msra.mxu0 0.0
    %3404 = vmatpush.msra.mxu0 0.0
    %3405 = vmatpush.msra.mxu0 0.0
    %v3406 = vand.u32 %v84, 4294901760
    %3407 = vmatpush.msra.mxu0 %v3406
    %v3408 = vand.u32 %v83, 4294901760
    %3409 = vmatpush.msra.mxu0 %v3408
    %v3410 = vand.u32 %v82, 4294901760
    %3411 = vmatpush.msra.mxu0 %v3410
    %v3412 = vand.u32 %v81, 4294901760
    %3413 = vmatpush.msra.mxu0 %v3412
    %v3414 = vand.u32 %v3292, 4294901760
    %v3415 = vsub.f32 %v3292, %v3414
    %v3416 = vand.u32 %v3415, 4294901760
    %3417 = vmatmul.f32.gmra.mxu0 %v3416
    %v3418 = vpop.f32.mrf.mxu0
    %v3419 = vadd.f32 %v3392, %v3418
    %3420 = vdwg.mxu0
    %3421 = vmatpush.msra.mxu0 0.0
    %3422 = vmatpush.msra.mxu0 0.0
    %3423 = vmatpush.msra.mxu0 0.0
    %3424 = vmatpush.msra.mxu0 0.0
    %3425 = vmatpush.msra.mxu0 0.0
    %3426 = vmatpush.msra.mxu0 0.0
    %3427 = vmatpush.msra.mxu0 0.0
    %3428 = vmatpush.msra.mxu0 0.0
    %3429 = vmatpush.msra.mxu0 0.0
    %3430 = vmatpush.msra.mxu0 0.0
    %3431 = vmatpush.msra.mxu0 0.0
    %3432 = vmatpush.msra.mxu0 0.0
    %v3433 = vand.u32 %v84, 4294901760
    %v3434 = vsub.f32 %v84, %v3433
    %v3435 = vand.u32 %v3434, 4294901760
    %3436 = vmatpush.msra.mxu0 %v3435
    %v3437 = vand.u32 %v83, 4294901760
    %v3438 = vsub.f32 %v83, %v3437
    %v3439 = vand.u32 %v3438, 4294901760
    %3440 = vmatpush.msra.mxu0 %v3439
    %v3441 = vand.u32 %v82, 4294901760
    %v3442 = vsub.f32 %v82, %v3441
    %v3443 = vand.u32 %v3442, 4294901760
    %3444 = vmatpush.msra.mxu0 %v3443
    %v3445 = vand.u32 %v81, 4294901760
    %v3446 = vsub.f32 %v81, %v3445
    %v3447 = vand.u32 %v3446, 4294901760
    %3448 = vmatpush.msra.mxu0 %v3447
    %v3449 = vand.u32 %v3292, 4294901760
    %3450 = vmatmul.f32.gmra.mxu0 %v3449
    %v3451 = vpop.f32.mrf.mxu0
    %v3452 = vadd.f32 %v3419, %v3451
    %3453 = vdwg.mxu0
    %3454 = vmatpush.msra.mxu0 0.0
    %3455 = vmatpush.msra.mxu0 0.0
    %3456 = vmatpush.msra.mxu0 0.0
    %3457 = vmatpush.msra.mxu0 0.0
    %3458 = vmatpush.msra.mxu0 0.0
    %3459 = vmatpush.msra.mxu0 0.0
    %3460 = vmatpush.msra.mxu0 0.0
    %3461 = vmatpush.msra.mxu0 0.0
    %3462 = vmatpush.msra.mxu0 0.0
    %3463 = vmatpush.msra.mxu0 0.0
    %3464 = vmatpush.msra.mxu0 0.0
    %3465 = vmatpush.msra.mxu0 0.0
    %v3466 = vand.u32 %v84, 4294901760
    %3467 = vmatpush.msra.mxu0 %v3466
    %v3468 = vand.u32 %v83, 4294901760
    %3469 = vmatpush.msra.mxu0 %v3468
    %v3470 = vand.u32 %v82, 4294901760
    %3471 = vmatpush.msra.mxu0 %v3470
    %v3472 = vand.u32 %v81, 4294901760
    %3473 = vmatpush.msra.mxu0 %v3472
    %v3474 = vand.u32 %v3292, 4294901760
    %3475 = vmatmul.f32.gmra.mxu0 %v3474
    %v3476 = vpop.f32.mrf.mxu0
    %v3477 = vadd.f32 %v3452, %v3476
    %3478 = vdwg.mxu0
    %v3479 = vadd.f32 %v3477, %v889
    %v3480 = vxor.u32 %v3479, 2147483648
    %v3481 = vmul.f32 %v3480, 1.442695
    %v3482 = vpow.pop %v3481
    %v3483 = vadd.f32 %v3482, 1.0
    %v3484 = vrcp.pop %v3483
    %v3485 = vmul.f32 %v3483, %v3484
    %v3486 = vsub.f32 1.0, %v3485
    %v3487 = vmul.f32 %v3484, %v3486
    %v3488 = vadd.f32 %v3484, %v3487
    %vm3489 = vweird.f32 %v3483
    %vm3490 = vweird.f32 %v3484
    %vm3491 = vmor %vm3489, %vm3490
    %v3492 = vsel %vm3491, %v3484, %v3488
    %v3493 = vand.u32 2147483647, %v3483
    %vm3494 = vcmp.eq.f32.partialorder %v3493, 8.507059e+37
    %v3495 = vand.u32 %v3483, 2147483648
    %v3496 = vor.u32 1.1754944e-38, %v3495
    %v3497 = vsel %vm3494, %v3496, %v3492
    %v3498 = vmul.f32 1.0, %v3497
    %v3499 = vtanh.pop %v3479
    %v3500 = vmul.f32 %v3498, %v2866
    %3502 = vrot.lane.b32.xlu0 %v3499, 64
    %v3503 = vpop.permute.xlu0 %3502
    %v3505 = vmul.f32 %v3498, %v3503
    %3507 = vrot.lane.b32.xlu0 %v3505, 32
    %v3508 = vpop.permute.xlu0 %3507
    %v3510 = vadd.f32 %v3500, %v3508
    %v3511 = vtanh.pop %v3510
    %3513 = vrot.lane.b32.xlu0 %v3511, 64
    %v3514 = vpop.permute.xlu0 %3513
    %v3516 = vmul.f32 %v3498, %v3514
    %3517 = vmatpush.msra.mxu0 0.0
    %3518 = vmatpush.msra.mxu0 0.0
    %3519 = vmatpush.msra.mxu0 0.0
    %3520 = vmatpush.msra.mxu0 0.0
    %3521 = vmatpush.msra.mxu0 0.0
    %3522 = vmatpush.msra.mxu0 0.0
    %3523 = vmatpush.msra.mxu0 0.0
    %3524 = vmatpush.msra.mxu0 0.0
    %3525 = vmatpush.msra.mxu0 0.0
    %3526 = vmatpush.msra.mxu0 0.0
    %3527 = vmatpush.msra.mxu0 0.0
    %3528 = vmatpush.msra.mxu0 0.0
    %v3529 = vand.u32 %v88, 4294901760
    %3530 = vmatpush.msra.mxu0 %v3529
    %v3531 = vand.u32 %v87, 4294901760
    %3532 = vmatpush.msra.mxu0 %v3531
    %v3533 = vand.u32 %v86, 4294901760
    %3534 = vmatpush.msra.mxu0 %v3533
    %v3535 = vand.u32 %v85, 4294901760
    %3536 = vmatpush.msra.mxu0 %v3535
    %v3537 = vand.u32 %v3292, 4294901760
    %v3538 = vsub.f32 %v3292, %v3537
    %v3539 = vand.u32 %v3538, 4294901760
    %v3540 = vsub.f32 %v3538, %v3539
    %v3541 = vand.u32 %v3540, 4294901760
    %3542 = vmatmul.f32.gmra.mxu0 %v3541
    %v3543 = vpop.f32.mrf.mxu0
    %v3544 = vadd.f32 0.0, %v3543
    %3545 = vdwg.mxu0
    %3546 = vmatpush.msra.mxu0 0.0
    %3547 = vmatpush.msra.mxu0 0.0
    %3548 = vmatpush.msra.mxu0 0.0
    %3549 = vmatpush.msra.mxu0 0.0
    %3550 = vmatpush.msra.mxu0 0.0
    %3551 = vmatpush.msra.mxu0 0.0
    %3552 = vmatpush.msra.mxu0 0.0
    %3553 = vmatpush.msra.mxu0 0.0
    %3554 = vmatpush.msra.mxu0 0.0
    %3555 = vmatpush.msra.mxu0 0.0
    %3556 = vmatpush.msra.mxu0 0.0
    %3557 = vmatpush.msra.mxu0 0.0
    %v3558 = vand.u32 %v88, 4294901760
    %v3559 = vsub.f32 %v88, %v3558
    %v3560 = vand.u32 %v3559, 4294901760
    %v3561 = vsub.f32 %v3559, %v3560
    %v3562 = vand.u32 %v3561, 4294901760
    %3563 = vmatpush.msra.mxu0 %v3562
    %v3564 = vand.u32 %v87, 4294901760
    %v3565 = vsub.f32 %v87, %v3564
    %v3566 = vand.u32 %v3565, 4294901760
    %v3567 = vsub.f32 %v3565, %v3566
    %v3568 = vand.u32 %v3567, 4294901760
    %3569 = vmatpush.msra.mxu0 %v3568
    %v3570 = vand.u32 %v86, 4294901760
    %v3571 = vsub.f32 %v86, %v3570
    %v3572 = vand.u32 %v3571, 4294901760
    %v3573 = vsub.f32 %v3571, %v3572
    %v3574 = vand.u32 %v3573, 4294901760
    %3575 = vmatpush.msra.mxu0 %v3574
    %v3576 = vand.u32 %v85, 4294901760
    %v3577 = vsub.f32 %v85, %v3576
    %v3578 = vand.u32 %v3577, 4294901760
    %v3579 = vsub.f32 %v3577, %v3578
    %v3580 = vand.u32 %v3579, 4294901760
    %3581 = vmatpush.msra.mxu0 %v3580
    %v3582 = vand.u32 %v3292, 4294901760
    %3583 = vmatmul.f32.gmra.mxu0 %v3582
    %v3584 = vpop.f32.mrf.mxu0
    %v3585 = vadd.f32 %v3544, %v3584
    %3586 = vdwg.mxu0
    %3587 = vmatpush.msra.mxu0 0.0
    %3588 = vmatpush.msra.mxu0 0.0
    %3589 = vmatpush.msra.mxu0 0.0
    %3590 = vmatpush.msra.mxu0 0.0
    %3591 = vmatpush.msra.mxu0 0.0
    %3592 = vmatpush.msra.mxu0 0.0
    %3593 = vmatpush.msra.mxu0 0.0
    %3594 = vmatpush.msra.mxu0 0.0
    %3595 = vmatpush.msra.mxu0 0.0
    %3596 = vmatpush.msra.mxu0 0.0
    %3597 = vmatpush.msra.mxu0 0.0
    %3598 = vmatpush.msra.mxu0 0.0
    %v3599 = vand.u32 %v88, 4294901760
    %v3600 = vsub.f32 %v88, %v3599
    %3601 = vmatpush.msra.mxu0 %v3600
    %v3602 = vand.u32 %v87, 4294901760
    %v3603 = vsub.f32 %v87, %v3602
    %3604 = vmatpush.msra.mxu0 %v3603
    %v3605 = vand.u32 %v86, 4294901760
    %v3606 = vsub.f32 %v86, %v3605
    %3607 = vmatpush.msra.mxu0 %v3606
    %v3608 = vand.u32 %v85, 4294901760
    %v3609 = vsub.f32 %v85, %v3608
    %3610 = vmatpush.msra.mxu0 %v3609
    %v3611 = vand.u32 %v3292, 4294901760
    %v3612 = vsub.f32 %v3292, %v3611
    %3613 = vmatmul.f32.gmra.mxu0 %v3612
    %v3614 = vpop.f32.mrf.mxu0
    %v3615 = vadd.f32 %v3585, %v3614
    %3616 = vdwg.mxu0
    %3617 = vmatpush.msra.mxu0 0.0
    %3618 = vmatpush.msra.mxu0 0.0
    %3619 = vmatpush.msra.mxu0 0.0
    %3620 = vmatpush.msra.mxu0 0.0
    %3621 = vmatpush.msra.mxu0 0.0
    %3622 = vmatpush.msra.mxu0 0.0
    %3623 = vmatpush.msra.mxu0 0.0
    %3624 = vmatpush.msra.mxu0 0.0
    %3625 = vmatpush.msra.mxu0 0.0
    %3626 = vmatpush.msra.mxu0 0.0
    %3627 = vmatpush.msra.mxu0 0.0
    %3628 = vmatpush.msra.mxu0 0.0
    %v3629 = vand.u32 %v88, 4294901760
    %3630 = vmatpush.msra.mxu0 %v3629
    %v3631 = vand.u32 %v87, 4294901760
    %3632 = vmatpush.msra.mxu0 %v3631
    %v3633 = vand.u32 %v86, 4294901760
    %3634 = vmatpush.msra.mxu0 %v3633
    %v3635 = vand.u32 %v85, 4294901760
    %3636 = vmatpush.msra.mxu0 %v3635
    %v3637 = vand.u32 %v3292, 4294901760
    %v3638 = vsub.f32 %v3292, %v3637
    %v3639 = vand.u32 %v3638, 4294901760
    %3640 = vmatmul.f32.gmra.mxu0 %v3639
    %v3641 = vpop.f32.mrf.mxu0
    %v3642 = vadd.f32 %v3615, %v3641
    %3643 = vdwg.mxu0
    %3644 = vmatpush.msra.mxu0 0.0
    %3645 = vmatpush.msra.mxu0 0.0
    %3646 = vmatpush.msra.mxu0 0.0
    %3647 = vmatpush.msra.mxu0 0.0
    %3648 = vmatpush.msra.mxu0 0.0
    %3649 = vmatpush.msra.mxu0 0.0
    %3650 = vmatpush.msra.mxu0 0.0
    %3651 = vmatpush.msra.mxu0 0.0
    %3652 = vmatpush.msra.mxu0 0.0
    %3653 = vmatpush.msra.mxu0 0.0
    %3654 = vmatpush.msra.mxu0 0.0
    %3655 = vmatpush.msra.mxu0 0.0
    %v3656 = vand.u32 %v88, 4294901760
    %v3657 = vsub.f32 %v88, %v3656
    %v3658 = vand.u32 %v3657, 4294901760
    %3659 = vmatpush.msra.mxu0 %v3658
    %v3660 = vand.u32 %v87, 4294901760
    %v3661 = vsub.f32 %v87, %v3660
    %v3662 = vand.u32 %v3661, 4294901760
    %3663 = vmatpush.msra.mxu0 %v3662
    %v3664 = vand.u32 %v86, 4294901760
    %v3665 = vsub.f32 %v86, %v3664
    %v3666 = vand.u32 %v3665, 4294901760
    %3667 = vmatpush.msra.mxu0 %v3666
    %v3668 = vand.u32 %v85, 4294901760
    %v3669 = vsub.f32 %v85, %v3668
    %v3670 = vand.u32 %v3669, 4294901760
    %3671 = vmatpush.msra.mxu0 %v3670
    %v3672 = vand.u32 %v3292, 4294901760
    %3673 = vmatmul.f32.gmra.mxu0 %v3672
    %v3674 = vpop.f32.mrf.mxu0
    %v3675 = vadd.f32 %v3642, %v3674
    %3676 = vdwg.mxu0
    %3677 = vmatpush.msra.mxu0 0.0
    %3678 = vmatpush.msra.mxu0 0.0
    %3679 = vmatpush.msra.mxu0 0.0
    %3680 = vmatpush.msra.mxu0 0.0
    %3681 = vmatpush.msra.mxu0 0.0
    %3682 = vmatpush.msra.mxu0 0.0
    %3683 = vmatpush.msra.mxu0 0.0
    %3684 = vmatpush.msra.mxu0 0.0
    %3685 = vmatpush.msra.mxu0 0.0
    %3686 = vmatpush.msra.mxu0 0.0
    %3687 = vmatpush.msra.mxu0 0.0
    %3688 = vmatpush.msra.mxu0 0.0
    %v3689 = vand.u32 %v88, 4294901760
    %3690 = vmatpush.msra.mxu0 %v3689
    %v3691 = vand.u32 %v87, 4294901760
    %3692 = vmatpush.msra.mxu0 %v3691
    %v3693 = vand.u32 %v86, 4294901760
    %3694 = vmatpush.msra.mxu0 %v3693
    %v3695 = vand.u32 %v85, 4294901760
    %3696 = vmatpush.msra.mxu0 %v3695
    %v3697 = vand.u32 %v3292, 4294901760
    %3698 = vmatmul.f32.gmra.mxu0 %v3697
    %v3699 = vpop.f32.mrf.mxu0
    %v3700 = vadd.f32 %v3675, %v3699
    %3701 = vdwg.mxu0
    %v3703 = vrot.slane %v3700, 6
    %v3705 = vadd.f32 %v284, %v3703
    %v3706 = vxor.u32 %v3705, 2147483648
    %v3707 = vmul.f32 %v3706, 1.442695
    %v3708 = vpow.pop %v3707
    %v3709 = vadd.f32 %v3708, 1.0
    %v3710 = vrcp.pop %v3709
    %v3711 = vmul.f32 %v3709, %v3710
    %v3712 = vsub.f32 1.0, %v3711
    %v3713 = vmul.f32 %v3710, %v3712
    %v3714 = vadd.f32 %v3710, %v3713
    %vm3715 = vweird.f32 %v3709
    %vm3716 = vweird.f32 %v3710
    %vm3717 = vmor %vm3715, %vm3716
    %v3718 = vsel %vm3717, %v3710, %v3714
    %v3719 = vand.u32 2147483647, %v3709
    %vm3720 = vcmp.eq.f32.partialorder %v3719, 8.507059e+37
    %v3721 = vand.u32 %v3709, 2147483648
    %v3722 = vor.u32 1.1754944e-38, %v3721
    %v3723 = vsel %vm3720, %v3722, %v3718
    %v3724 = vmul.f32 1.0, %v3723
    %v3725 = vtanh.pop %v3705
    %v3727 = vrot.slane %v3092, 6
    %v3729 = vmul.f32 %v3724, %v3727
    %3731 = vrot.lane.b32.xlu0 %v3725, 64
    %v3732 = vpop.permute.xlu0 %3731
    %v3734 = vmul.f32 %v3724, %v3732
    %3736 = vrot.lane.b32.xlu0 %v3734, 32
    %v3737 = vpop.permute.xlu0 %3736
    %v3739 = vadd.f32 %v3729, %v3737
    %v3740 = vtanh.pop %v3739
    %3742 = vrot.lane.b32.xlu0 %v3740, 64
    %v3743 = vpop.permute.xlu0 %3742
    %v3745 = vmul.f32 %v3724, %v3743
    %3747 = vrot.lane.b32.xlu0 %v3516, 32
    %v3748 = vpop.permute.xlu0 %3747
    %v3749 = vsel %vm286, %v3748, 0
    %3751 = vmatpush.msra.mxu0 0.0
    %3752 = vmatpush.msra.mxu0 0.0
    %3753 = vmatpush.msra.mxu0 0.0
    %3754 = vmatpush.msra.mxu0 0.0
    %3755 = vmatpush.msra.mxu0 0.0
    %3756 = vmatpush.msra.mxu0 0.0
    %3757 = vmatpush.msra.mxu0 0.0
    %3758 = vmatpush.msra.mxu0 0.0
    %3759 = vmatpush.msra.mxu0 0.0
    %3760 = vmatpush.msra.mxu0 0.0
    %3761 = vmatpush.msra.mxu0 0.0
    %3762 = vmatpush.msra.mxu0 0.0
    %v3763 = vand.u32 %v92, 4294901760
    %3764 = vmatpush.msra.mxu0 %v3763
    %v3765 = vand.u32 %v91, 4294901760
    %3766 = vmatpush.msra.mxu0 %v3765
    %v3767 = vand.u32 %v90, 4294901760
    %3768 = vmatpush.msra.mxu0 %v3767
    %v3769 = vand.u32 %v89, 4294901760
    %3770 = vmatpush.msra.mxu0 %v3769
    %v3771 = vand.u32 %v3749, 4294901760
    %v3772 = vsub.f32 %v3749, %v3771
    %v3773 = vand.u32 %v3772, 4294901760
    %v3774 = vsub.f32 %v3772, %v3773
    %v3775 = vand.u32 %v3774, 4294901760
    %3776 = vmatmul.f32.gmra.mxu0 %v3775
    %v3777 = vpop.f32.mrf.mxu0
    %v3778 = vadd.f32 0.0, %v3777
    %3779 = vdwg.mxu0
    %3780 = vmatpush.msra.mxu0 0.0
    %3781 = vmatpush.msra.mxu0 0.0
    %3782 = vmatpush.msra.mxu0 0.0
    %3783 = vmatpush.msra.mxu0 0.0
    %3784 = vmatpush.msra.mxu0 0.0
    %3785 = vmatpush.msra.mxu0 0.0
    %3786 = vmatpush.msra.mxu0 0.0
    %3787 = vmatpush.msra.mxu0 0.0
    %3788 = vmatpush.msra.mxu0 0.0
    %3789 = vmatpush.msra.mxu0 0.0
    %3790 = vmatpush.msra.mxu0 0.0
    %3791 = vmatpush.msra.mxu0 0.0
    %v3792 = vand.u32 %v92, 4294901760
    %v3793 = vsub.f32 %v92, %v3792
    %v3794 = vand.u32 %v3793, 4294901760
    %v3795 = vsub.f32 %v3793, %v3794
    %v3796 = vand.u32 %v3795, 4294901760
    %3797 = vmatpush.msra.mxu0 %v3796
    %v3798 = vand.u32 %v91, 4294901760
    %v3799 = vsub.f32 %v91, %v3798
    %v3800 = vand.u32 %v3799, 4294901760
    %v3801 = vsub.f32 %v3799, %v3800
    %v3802 = vand.u32 %v3801, 4294901760
    %3803 = vmatpush.msra.mxu0 %v3802
    %v3804 = vand.u32 %v90, 4294901760
    %v3805 = vsub.f32 %v90, %v3804
    %v3806 = vand.u32 %v3805, 4294901760
    %v3807 = vsub.f32 %v3805, %v3806
    %v3808 = vand.u32 %v3807, 4294901760
    %3809 = vmatpush.msra.mxu0 %v3808
    %v3810 = vand.u32 %v89, 4294901760
    %v3811 = vsub.f32 %v89, %v3810
    %v3812 = vand.u32 %v3811, 4294901760
    %v3813 = vsub.f32 %v3811, %v3812
    %v3814 = vand.u32 %v3813, 4294901760
    %3815 = vmatpush.msra.mxu0 %v3814
    %v3816 = vand.u32 %v3749, 4294901760
    %3817 = vmatmul.f32.gmra.mxu0 %v3816
    %v3818 = vpop.f32.mrf.mxu0
    %v3819 = vadd.f32 %v3778, %v3818
    %3820 = vdwg.mxu0
    %3821 = vmatpush.msra.mxu0 0.0
    %3822 = vmatpush.msra.mxu0 0.0
    %3823 = vmatpush.msra.mxu0 0.0
    %3824 = vmatpush.msra.mxu0 0.0
    %3825 = vmatpush.msra.mxu0 0.0
    %3826 = vmatpush.msra.mxu0 0.0
    %3827 = vmatpush.msra.mxu0 0.0
    %3828 = vmatpush.msra.mxu0 0.0
    %3829 = vmatpush.msra.mxu0 0.0
    %3830 = vmatpush.msra.mxu0 0.0
    %3831 = vmatpush.msra.mxu0 0.0
    %3832 = vmatpush.msra.mxu0 0.0
    %v3833 = vand.u32 %v92, 4294901760
    %v3834 = vsub.f32 %v92, %v3833
    %3835 = vmatpush.msra.mxu0 %v3834
    %v3836 = vand.u32 %v91, 4294901760
    %v3837 = vsub.f32 %v91, %v3836
    %3838 = vmatpush.msra.mxu0 %v3837
    %v3839 = vand.u32 %v90, 4294901760
    %v3840 = vsub.f32 %v90, %v3839
    %3841 = vmatpush.msra.mxu0 %v3840
    %v3842 = vand.u32 %v89, 4294901760
    %v3843 = vsub.f32 %v89, %v3842
    %3844 = vmatpush.msra.mxu0 %v3843
    %v3845 = vand.u32 %v3749, 4294901760
    %v3846 = vsub.f32 %v3749, %v3845
    %3847 = vmatmul.f32.gmra.mxu0 %v3846
    %v3848 = vpop.f32.mrf.mxu0
    %v3849 = vadd.f32 %v3819, %v3848
    %3850 = vdwg.mxu0
    %3851 = vmatpush.msra.mxu0 0.0
    %3852 = vmatpush.msra.mxu0 0.0
    %3853 = vmatpush.msra.mxu0 0.0
    %3854 = vmatpush.msra.mxu0 0.0
    %3855 = vmatpush.msra.mxu0 0.0
    %3856 = vmatpush.msra.mxu0 0.0
    %3857 = vmatpush.msra.mxu0 0.0
    %3858 = vmatpush.msra.mxu0 0.0
    %3859 = vmatpush.msra.mxu0 0.0
    %3860 = vmatpush.msra.mxu0 0.0
    %3861 = vmatpush.msra.mxu0 0.0
    %3862 = vmatpush.msra.mxu0 0.0
    %v3863 = vand.u32 %v92, 4294901760
    %3864 = vmatpush.msra.mxu0 %v3863
    %v3865 = vand.u32 %v91, 4294901760
    %3866 = vmatpush.msra.mxu0 %v3865
    %v3867 = vand.u32 %v90, 4294901760
    %3868 = vmatpush.msra.mxu0 %v3867
    %v3869 = vand.u32 %v89, 4294901760
    %3870 = vmatpush.msra.mxu0 %v3869
    %v3871 = vand.u32 %v3749, 4294901760
    %v3872 = vsub.f32 %v3749, %v3871
    %v3873 = vand.u32 %v3872, 4294901760
    %3874 = vmatmul.f32.gmra.mxu0 %v3873
    %v3875 = vpop.f32.mrf.mxu0
    %v3876 = vadd.f32 %v3849, %v3875
    %3877 = vdwg.mxu0
    %3878 = vmatpush.msra.mxu0 0.0
    %3879 = vmatpush.msra.mxu0 0.0
    %3880 = vmatpush.msra.mxu0 0.0
    %3881 = vmatpush.msra.mxu0 0.0
    %3882 = vmatpush.msra.mxu0 0.0
    %3883 = vmatpush.msra.mxu0 0.0
    %3884 = vmatpush.msra.mxu0 0.0
    %3885 = vmatpush.msra.mxu0 0.0
    %3886 = vmatpush.msra.mxu0 0.0
    %3887 = vmatpush.msra.mxu0 0.0
    %3888 = vmatpush.msra.mxu0 0.0
    %3889 = vmatpush.msra.mxu0 0.0
    %v3890 = vand.u32 %v92, 4294901760
    %v3891 = vsub.f32 %v92, %v3890
    %v3892 = vand.u32 %v3891, 4294901760
    %3893 = vmatpush.msra.mxu0 %v3892
    %v3894 = vand.u32 %v91, 4294901760
    %v3895 = vsub.f32 %v91, %v3894
    %v3896 = vand.u32 %v3895, 4294901760
    %3897 = vmatpush.msra.mxu0 %v3896
    %v3898 = vand.u32 %v90, 4294901760
    %v3899 = vsub.f32 %v90, %v3898
    %v3900 = vand.u32 %v3899, 4294901760
    %3901 = vmatpush.msra.mxu0 %v3900
    %v3902 = vand.u32 %v89, 4294901760
    %v3903 = vsub.f32 %v89, %v3902
    %v3904 = vand.u32 %v3903, 4294901760
    %3905 = vmatpush.msra.mxu0 %v3904
    %v3906 = vand.u32 %v3749, 4294901760
    %3907 = vmatmul.f32.gmra.mxu0 %v3906
    %v3908 = vpop.f32.mrf.mxu0
    %v3909 = vadd.f32 %v3876, %v3908
    %3910 = vdwg.mxu0
    %3911 = vmatpush.msra.mxu0 0.0
    %3912 = vmatpush.msra.mxu0 0.0
    %3913 = vmatpush.msra.mxu0 0.0
    %3914 = vmatpush.msra.mxu0 0.0
    %3915 = vmatpush.msra.mxu0 0.0
    %3916 = vmatpush.msra.mxu0 0.0
    %3917 = vmatpush.msra.mxu0 0.0
    %3918 = vmatpush.msra.mxu0 0.0
    %3919 = vmatpush.msra.mxu0 0.0
    %3920 = vmatpush.msra.mxu0 0.0
    %3921 = vmatpush.msra.mxu0 0.0
    %3922 = vmatpush.msra.mxu0 0.0
    %v3923 = vand.u32 %v92, 4294901760
    %3924 = vmatpush.msra.mxu0 %v3923
    %v3925 = vand.u32 %v91, 4294901760
    %3926 = vmatpush.msra.mxu0 %v3925
    %v3927 = vand.u32 %v90, 4294901760
    %3928 = vmatpush.msra.mxu0 %v3927
    %v3929 = vand.u32 %v89, 4294901760
    %3930 = vmatpush.msra.mxu0 %v3929
    %v3931 = vand.u32 %v3749, 4294901760
    %3932 = vmatmul.f32.gmra.mxu0 %v3931
    %v3933 = vpop.f32.mrf.mxu0
    %v3934 = vadd.f32 %v3909, %v3933
    %3935 = vdwg.mxu0
    %v3937 = vrot.slane %v3745, 2
    %3938 = vrot.lane.b32.xlu0 %v3937, 32
    %v3939 = vpop.permute.xlu0 %3938
    %v3940 = vsel %vm286, %v3939, 0
    %3942 = vmatpush.msra.mxu0 0.0
    %3943 = vmatpush.msra.mxu0 0.0
    %3944 = vmatpush.msra.mxu0 0.0
    %3945 = vmatpush.msra.mxu0 0.0
    %3946 = vmatpush.msra.mxu0 0.0
    %3947 = vmatpush.msra.mxu0 0.0
    %3948 = vmatpush.msra.mxu0 0.0
    %3949 = vmatpush.msra.mxu0 0.0
    %3950 = vmatpush.msra.mxu0 0.0
    %3951 = vmatpush.msra.mxu0 0.0
    %3952 = vmatpush.msra.mxu0 0.0
    %3953 = vmatpush.msra.mxu0 0.0
    %v3954 = vand.u32 %v84, 4294901760
    %3955 = vmatpush.msra.mxu0 %v3954
    %v3956 = vand.u32 %v83, 4294901760
    %3957 = vmatpush.msra.mxu0 %v3956
    %v3958 = vand.u32 %v82, 4294901760
    %3959 = vmatpush.msra.mxu0 %v3958
    %v3960 = vand.u32 %v81, 4294901760
    %3961 = vmatpush.msra.mxu0 %v3960
    %v3962 = vand.u32 %v3940, 4294901760
    %v3963 = vsub.f32 %v3940, %v3962
    %v3964 = vand.u32 %v3963, 4294901760
    %v3965 = vsub.f32 %v3963, %v3964
    %v3966 = vand.u32 %v3965, 4294901760
    %3967 = vmatmul.f32.gmra.mxu0 %v3966
    %v3968 = vpop.f32.mrf.mxu0
    %v3969 = vadd.f32 %v3934, %v3968
    %3970 = vdwg.mxu0
    %3971 = vmatpush.msra.mxu0 0.0
    %3972 = vmatpush.msra.mxu0 0.0
    %3973 = vmatpush.msra.mxu0 0.0
    %3974 = vmatpush.msra.mxu0 0.0
    %3975 = vmatpush.msra.mxu0 0.0
    %3976 = vmatpush.msra.mxu0 0.0
    %3977 = vmatpush.msra.mxu0 0.0
    %3978 = vmatpush.msra.mxu0 0.0
    %3979 = vmatpush.msra.mxu0 0.0
    %3980 = vmatpush.msra.mxu0 0.0
    %3981 = vmatpush.msra.mxu0 0.0
    %3982 = vmatpush.msra.mxu0 0.0
    %v3983 = vand.u32 %v84, 4294901760
    %v3984 = vsub.f32 %v84, %v3983
    %v3985 = vand.u32 %v3984, 4294901760
    %v3986 = vsub.f32 %v3984, %v3985
    %v3987 = vand.u32 %v3986, 4294901760
    %3988 = vmatpush.msra.mxu0 %v3987
    %v3989 = vand.u32 %v83, 4294901760
    %v3990 = vsub.f32 %v83, %v3989
    %v3991 = vand.u32 %v3990, 4294901760
    %v3992 = vsub.f32 %v3990, %v3991
    %v3993 = vand.u32 %v3992, 4294901760
    %3994 = vmatpush.msra.mxu0 %v3993
    %v3995 = vand.u32 %v82, 4294901760
    %v3996 = vsub.f32 %v82, %v3995
    %v3997 = vand.u32 %v3996, 4294901760
    %v3998 = vsub.f32 %v3996, %v3997
    %v3999 = vand.u32 %v3998, 4294901760
    %4000 = vmatpush.msra.mxu0 %v3999
    %v4001 = vand.u32 %v81, 4294901760
    %v4002 = vsub.f32 %v81, %v4001
    %v4003 = vand.u32 %v4002, 4294901760
    %v4004 = vsub.f32 %v4002, %v4003
    %v4005 = vand.u32 %v4004, 4294901760
    %4006 = vmatpush.msra.mxu0 %v4005
    %v4007 = vand.u32 %v3940, 4294901760
    %4008 = vmatmul.f32.gmra.mxu0 %v4007
    %v4009 = vpop.f32.mrf.mxu0
    %v4010 = vadd.f32 %v3969, %v4009
    %4011 = vdwg.mxu0
    %4012 = vmatpush.msra.mxu0 0.0
    %4013 = vmatpush.msra.mxu0 0.0
    %4014 = vmatpush.msra.mxu0 0.0
    %4015 = vmatpush.msra.mxu0 0.0
    %4016 = vmatpush.msra.mxu0 0.0
    %4017 = vmatpush.msra.mxu0 0.0
    %4018 = vmatpush.msra.mxu0 0.0
    %4019 = vmatpush.msra.mxu0 0.0
    %4020 = vmatpush.msra.mxu0 0.0
    %4021 = vmatpush.msra.mxu0 0.0
    %4022 = vmatpush.msra.mxu0 0.0
    %4023 = vmatpush.msra.mxu0 0.0
    %v4024 = vand.u32 %v84, 4294901760
    %v4025 = vsub.f32 %v84, %v4024
    %4026 = vmatpush.msra.mxu0 %v4025
    %v4027 = vand.u32 %v83, 4294901760
    %v4028 = vsub.f32 %v83, %v4027
    %4029 = vmatpush.msra.mxu0 %v4028
    %v4030 = vand.u32 %v82, 4294901760
    %v4031 = vsub.f32 %v82, %v4030
    %4032 = vmatpush.msra.mxu0 %v4031
    %v4033 = vand.u32 %v81, 4294901760
    %v4034 = vsub.f32 %v81, %v4033
    %4035 = vmatpush.msra.mxu0 %v4034
    %v4036 = vand.u32 %v3940, 4294901760
    %v4037 = vsub.f32 %v3940, %v4036
    %4038 = vmatmul.f32.gmra.mxu0 %v4037
    %v4039 = vpop.f32.mrf.mxu0
    %v4040 = vadd.f32 %v4010, %v4039
    %4041 = vdwg.mxu0
    %4042 = vmatpush.msra.mxu0 0.0
    %4043 = vmatpush.msra.mxu0 0.0
    %4044 = vmatpush.msra.mxu0 0.0
    %4045 = vmatpush.msra.mxu0 0.0
    %4046 = vmatpush.msra.mxu0 0.0
    %4047 = vmatpush.msra.mxu0 0.0
    %4048 = vmatpush.msra.mxu0 0.0
    %4049 = vmatpush.msra.mxu0 0.0
    %4050 = vmatpush.msra.mxu0 0.0
    %4051 = vmatpush.msra.mxu0 0.0
    %4052 = vmatpush.msra.mxu0 0.0
    %4053 = vmatpush.msra.mxu0 0.0
    %v4054 = vand.u32 %v84, 4294901760
    %4055 = vmatpush.msra.mxu0 %v4054
    %v4056 = vand.u32 %v83, 4294901760
    %4057 = vmatpush.msra.mxu0 %v4056
    %v4058 = vand.u32 %v82, 4294901760
    %4059 = vmatpush.msra.mxu0 %v4058
    %v4060 = vand.u32 %v81, 4294901760
    %4061 = vmatpush.msra.mxu0 %v4060
    %v4062 = vand.u32 %v3940, 4294901760
    %v4063 = vsub.f32 %v3940, %v4062
    %v4064 = vand.u32 %v4063, 4294901760
    %4065 = vmatmul.f32.gmra.mxu0 %v4064
    %v4066 = vpop.f32.mrf.mxu0
    %v4067 = vadd.f32 %v4040, %v4066
    %4068 = vdwg.mxu0
    %4069 = vmatpush.msra.mxu0 0.0
    %4070 = vmatpush.msra.mxu0 0.0
    %4071 = vmatpush.msra.mxu0 0.0
    %4072 = vmatpush.msra.mxu0 0.0
    %4073 = vmatpush.msra.mxu0 0.0
    %4074 = vmatpush.msra.mxu0 0.0
    %4075 = vmatpush.msra.mxu0 0.0
    %4076 = vmatpush.msra.mxu0 0.0
    %4077 = vmatpush.msra.mxu0 0.0
    %4078 = vmatpush.msra.mxu0 0.0
    %4079 = vmatpush.msra.mxu0 0.0
    %4080 = vmatpush.msra.mxu0 0.0
    %v4081 = vand.u32 %v84, 4294901760
    %v4082 = vsub.f32 %v84, %v4081
    %v4083 = vand.u32 %v4082, 4294901760
    %4084 = vmatpush.msra.mxu0 %v4083
    %v4085 = vand.u32 %v83, 4294901760
    %v4086 = vsub.f32 %v83, %v4085
    %v4087 = vand.u32 %v4086, 4294901760
    %4088 = vmatpush.msra.mxu0 %v4087
    %v4089 = vand.u32 %v82, 4294901760
    %v4090 = vsub.f32 %v82, %v4089
    %v4091 = vand.u32 %v4090, 4294901760
    %4092 = vmatpush.msra.mxu0 %v4091
    %v4093 = vand.u32 %v81, 4294901760
    %v4094 = vsub.f32 %v81, %v4093
    %v4095 = vand.u32 %v4094, 4294901760
    %4096 = vmatpush.msra.mxu0 %v4095
    %v4097 = vand.u32 %v3940, 4294901760
    %4098 = vmatmul.f32.gmra.mxu0 %v4097
    %v4099 = vpop.f32.mrf.mxu0
    %v4100 = vadd.f32 %v4067, %v4099
    %4101 = vdwg.mxu0
    %4102 = vmatpush.msra.mxu0 0.0
    %4103 = vmatpush.msra.mxu0 0.0
    %4104 = vmatpush.msra.mxu0 0.0
    %4105 = vmatpush.msra.mxu0 0.0
    %4106 = vmatpush.msra.mxu0 0.0
    %4107 = vmatpush.msra.mxu0 0.0
    %4108 = vmatpush.msra.mxu0 0.0
    %4109 = vmatpush.msra.mxu0 0.0
    %4110 = vmatpush.msra.mxu0 0.0
    %4111 = vmatpush.msra.mxu0 0.0
    %4112 = vmatpush.msra.mxu0 0.0
    %4113 = vmatpush.msra.mxu0 0.0
    %v4114 = vand.u32 %v84, 4294901760
    %4115 = vmatpush.msra.mxu0 %v4114
    %v4116 = vand.u32 %v83, 4294901760
    %4117 = vmatpush.msra.mxu0 %v4116
    %v4118 = vand.u32 %v82, 4294901760
    %4119 = vmatpush.msra.mxu0 %v4118
    %v4120 = vand.u32 %v81, 4294901760
    %4121 = vmatpush.msra.mxu0 %v4120
    %v4122 = vand.u32 %v3940, 4294901760
    %4123 = vmatmul.f32.gmra.mxu0 %v4122
    %v4124 = vpop.f32.mrf.mxu0
    %v4125 = vadd.f32 %v4100, %v4124
    %4126 = vdwg.mxu0
    %v4127 = vadd.f32 %v4125, %v889
    %v4128 = vxor.u32 %v4127, 2147483648
    %v4129 = vmul.f32 %v4128, 1.442695
    %v4130 = vpow.pop %v4129
    %v4131 = vadd.f32 %v4130, 1.0
    %v4132 = vrcp.pop %v4131
    %v4133 = vmul.f32 %v4131, %v4132
    %v4134 = vsub.f32 1.0, %v4133
    %v4135 = vmul.f32 %v4132, %v4134
    %v4136 = vadd.f32 %v4132, %v4135
    %vm4137 = vweird.f32 %v4131
    %vm4138 = vweird.f32 %v4132
    %vm4139 = vmor %vm4137, %vm4138
    %v4140 = vsel %vm4139, %v4132, %v4136
    %v4141 = vand.u32 2147483647, %v4131
    %vm4142 = vcmp.eq.f32.partialorder %v4141, 8.507059e+37
    %v4143 = vand.u32 %v4131, 2147483648
    %v4144 = vor.u32 1.1754944e-38, %v4143
    %v4145 = vsel %vm4142, %v4144, %v4140
    %v4146 = vmul.f32 1.0, %v4145
    %v4147 = vtanh.pop %v4127
    %v4148 = vmul.f32 %v4146, %v3510
    %4150 = vrot.lane.b32.xlu0 %v4147, 64
    %v4151 = vpop.permute.xlu0 %4150
    %v4153 = vmul.f32 %v4146, %v4151
    %4155 = vrot.lane.b32.xlu0 %v4153, 32
    %v4156 = vpop.permute.xlu0 %4155
    %v4158 = vadd.f32 %v4148, %v4156
    %v4159 = vtanh.pop %v4158
    %4161 = vrot.lane.b32.xlu0 %v4159, 64
    %v4162 = vpop.permute.xlu0 %4161
    %v4164 = vmul.f32 %v4146, %v4162
    %4165 = vmatpush.msra.mxu0 0.0
    %4166 = vmatpush.msra.mxu0 0.0
    %4167 = vmatpush.msra.mxu0 0.0
    %4168 = vmatpush.msra.mxu0 0.0
    %4169 = vmatpush.msra.mxu0 0.0
    %4170 = vmatpush.msra.mxu0 0.0
    %4171 = vmatpush.msra.mxu0 0.0
    %4172 = vmatpush.msra.mxu0 0.0
    %4173 = vmatpush.msra.mxu0 0.0
    %4174 = vmatpush.msra.mxu0 0.0
    %4175 = vmatpush.msra.mxu0 0.0
    %4176 = vmatpush.msra.mxu0 0.0
    %v4177 = vand.u32 %v88, 4294901760
    %4178 = vmatpush.msra.mxu0 %v4177
    %v4179 = vand.u32 %v87, 4294901760
    %4180 = vmatpush.msra.mxu0 %v4179
    %v4181 = vand.u32 %v86, 4294901760
    %4182 = vmatpush.msra.mxu0 %v4181
    %v4183 = vand.u32 %v85, 4294901760
    %4184 = vmatpush.msra.mxu0 %v4183
    %v4185 = vand.u32 %v3940, 4294901760
    %v4186 = vsub.f32 %v3940, %v4185
    %v4187 = vand.u32 %v4186, 4294901760
    %v4188 = vsub.f32 %v4186, %v4187
    %v4189 = vand.u32 %v4188, 4294901760
    %4190 = vmatmul.f32.gmra.mxu0 %v4189
    %v4191 = vpop.f32.mrf.mxu0
    %v4192 = vadd.f32 0.0, %v4191
    %4193 = vdwg.mxu0
    %4194 = vmatpush.msra.mxu0 0.0
    %4195 = vmatpush.msra.mxu0 0.0
    %4196 = vmatpush.msra.mxu0 0.0
    %4197 = vmatpush.msra.mxu0 0.0
    %4198 = vmatpush.msra.mxu0 0.0
    %4199 = vmatpush.msra.mxu0 0.0
    %4200 = vmatpush.msra.mxu0 0.0
    %4201 = vmatpush.msra.mxu0 0.0
    %4202 = vmatpush.msra.mxu0 0.0
    %4203 = vmatpush.msra.mxu0 0.0
    %4204 = vmatpush.msra.mxu0 0.0
    %4205 = vmatpush.msra.mxu0 0.0
    %v4206 = vand.u32 %v88, 4294901760
    %v4207 = vsub.f32 %v88, %v4206
    %v4208 = vand.u32 %v4207, 4294901760
    %v4209 = vsub.f32 %v4207, %v4208
    %v4210 = vand.u32 %v4209, 4294901760
    %4211 = vmatpush.msra.mxu0 %v4210
    %v4212 = vand.u32 %v87, 4294901760
    %v4213 = vsub.f32 %v87, %v4212
    %v4214 = vand.u32 %v4213, 4294901760
    %v4215 = vsub.f32 %v4213, %v4214
    %v4216 = vand.u32 %v4215, 4294901760
    %4217 = vmatpush.msra.mxu0 %v4216
    %v4218 = vand.u32 %v86, 4294901760
    %v4219 = vsub.f32 %v86, %v4218
    %v4220 = vand.u32 %v4219, 4294901760
    %v4221 = vsub.f32 %v4219, %v4220
    %v4222 = vand.u32 %v4221, 4294901760
    %4223 = vmatpush.msra.mxu0 %v4222
    %v4224 = vand.u32 %v85, 4294901760
    %v4225 = vsub.f32 %v85, %v4224
    %v4226 = vand.u32 %v4225, 4294901760
    %v4227 = vsub.f32 %v4225, %v4226
    %v4228 = vand.u32 %v4227, 4294901760
    %4229 = vmatpush.msra.mxu0 %v4228
    %v4230 = vand.u32 %v3940, 4294901760
    %4231 = vmatmul.f32.gmra.mxu0 %v4230
    %v4232 = vpop.f32.mrf.mxu0
    %v4233 = vadd.f32 %v4192, %v4232
    %4234 = vdwg.mxu0
    %4235 = vmatpush.msra.mxu0 0.0
    %4236 = vmatpush.msra.mxu0 0.0
    %4237 = vmatpush.msra.mxu0 0.0
    %4238 = vmatpush.msra.mxu0 0.0
    %4239 = vmatpush.msra.mxu0 0.0
    %4240 = vmatpush.msra.mxu0 0.0
    %4241 = vmatpush.msra.mxu0 0.0
    %4242 = vmatpush.msra.mxu0 0.0
    %4243 = vmatpush.msra.mxu0 0.0
    %4244 = vmatpush.msra.mxu0 0.0
    %4245 = vmatpush.msra.mxu0 0.0
    %4246 = vmatpush.msra.mxu0 0.0
    %v4247 = vand.u32 %v88, 4294901760
    %v4248 = vsub.f32 %v88, %v4247
    %4249 = vmatpush.msra.mxu0 %v4248
    %v4250 = vand.u32 %v87, 4294901760
    %v4251 = vsub.f32 %v87, %v4250
    %4252 = vmatpush.msra.mxu0 %v4251
    %v4253 = vand.u32 %v86, 4294901760
    %v4254 = vsub.f32 %v86, %v4253
    %4255 = vmatpush.msra.mxu0 %v4254
    %v4256 = vand.u32 %v85, 4294901760
    %v4257 = vsub.f32 %v85, %v4256
    %4258 = vmatpush.msra.mxu0 %v4257
    %v4259 = vand.u32 %v3940, 4294901760
    %v4260 = vsub.f32 %v3940, %v4259
    %4261 = vmatmul.f32.gmra.mxu0 %v4260
    %v4262 = vpop.f32.mrf.mxu0
    %v4263 = vadd.f32 %v4233, %v4262
    %4264 = vdwg.mxu0
    %4265 = vmatpush.msra.mxu0 0.0
    %4266 = vmatpush.msra.mxu0 0.0
    %4267 = vmatpush.msra.mxu0 0.0
    %4268 = vmatpush.msra.mxu0 0.0
    %4269 = vmatpush.msra.mxu0 0.0
    %4270 = vmatpush.msra.mxu0 0.0
    %4271 = vmatpush.msra.mxu0 0.0
    %4272 = vmatpush.msra.mxu0 0.0
    %4273 = vmatpush.msra.mxu0 0.0
    %4274 = vmatpush.msra.mxu0 0.0
    %4275 = vmatpush.msra.mxu0 0.0
    %4276 = vmatpush.msra.mxu0 0.0
    %v4277 = vand.u32 %v88, 4294901760
    %4278 = vmatpush.msra.mxu0 %v4277
    %v4279 = vand.u32 %v87, 4294901760
    %4280 = vmatpush.msra.mxu0 %v4279
    %v4281 = vand.u32 %v86, 4294901760
    %4282 = vmatpush.msra.mxu0 %v4281
    %v4283 = vand.u32 %v85, 4294901760
    %4284 = vmatpush.msra.mxu0 %v4283
    %v4285 = vand.u32 %v3940, 4294901760
    %v4286 = vsub.f32 %v3940, %v4285
    %v4287 = vand.u32 %v4286, 4294901760
    %4288 = vmatmul.f32.gmra.mxu0 %v4287
    %v4289 = vpop.f32.mrf.mxu0
    %v4290 = vadd.f32 %v4263, %v4289
    %4291 = vdwg.mxu0
    %4292 = vmatpush.msra.mxu0 0.0
    %4293 = vmatpush.msra.mxu0 0.0
    %4294 = vmatpush.msra.mxu0 0.0
    %4295 = vmatpush.msra.mxu0 0.0
    %4296 = vmatpush.msra.mxu0 0.0
    %4297 = vmatpush.msra.mxu0 0.0
    %4298 = vmatpush.msra.mxu0 0.0
    %4299 = vmatpush.msra.mxu0 0.0
    %4300 = vmatpush.msra.mxu0 0.0
    %4301 = vmatpush.msra.mxu0 0.0
    %4302 = vmatpush.msra.mxu0 0.0
    %4303 = vmatpush.msra.mxu0 0.0
    %v4304 = vand.u32 %v88, 4294901760
    %v4305 = vsub.f32 %v88, %v4304
    %v4306 = vand.u32 %v4305, 4294901760
    %4307 = vmatpush.msra.mxu0 %v4306
    %v4308 = vand.u32 %v87, 4294901760
    %v4309 = vsub.f32 %v87, %v4308
    %v4310 = vand.u32 %v4309, 4294901760
    %4311 = vmatpush.msra.mxu0 %v4310
    %v4312 = vand.u32 %v86, 4294901760
    %v4313 = vsub.f32 %v86, %v4312
    %v4314 = vand.u32 %v4313, 4294901760
    %4315 = vmatpush.msra.mxu0 %v4314
    %v4316 = vand.u32 %v85, 4294901760
    %v4317 = vsub.f32 %v85, %v4316
    %v4318 = vand.u32 %v4317, 4294901760
    %4319 = vmatpush.msra.mxu0 %v4318
    %v4320 = vand.u32 %v3940, 4294901760
    %4321 = vmatmul.f32.gmra.mxu0 %v4320
    %v4322 = vpop.f32.mrf.mxu0
    %v4323 = vadd.f32 %v4290, %v4322
    %4324 = vdwg.mxu0
    %4325 = vmatpush.msra.mxu0 0.0
    %4326 = vmatpush.msra.mxu0 0.0
    %4327 = vmatpush.msra.mxu0 0.0
    %4328 = vmatpush.msra.mxu0 0.0
    %4329 = vmatpush.msra.mxu0 0.0
    %4330 = vmatpush.msra.mxu0 0.0
    %4331 = vmatpush.msra.mxu0 0.0
    %4332 = vmatpush.msra.mxu0 0.0
    %4333 = vmatpush.msra.mxu0 0.0
    %4334 = vmatpush.msra.mxu0 0.0
    %4335 = vmatpush.msra.mxu0 0.0
    %4336 = vmatpush.msra.mxu0 0.0
    %v4337 = vand.u32 %v88, 4294901760
    %4338 = vmatpush.msra.mxu0 %v4337
    %v4339 = vand.u32 %v87, 4294901760
    %4340 = vmatpush.msra.mxu0 %v4339
    %v4341 = vand.u32 %v86, 4294901760
    %4342 = vmatpush.msra.mxu0 %v4341
    %v4343 = vand.u32 %v85, 4294901760
    %4344 = vmatpush.msra.mxu0 %v4343
    %v4345 = vand.u32 %v3940, 4294901760
    %4346 = vmatmul.f32.gmra.mxu0 %v4345
    %v4347 = vpop.f32.mrf.mxu0
    %v4348 = vadd.f32 %v4323, %v4347
    %4349 = vdwg.mxu0
    %v4351 = vrot.slane %v4348, 4
    %v4353 = vadd.f32 %v284, %v4351
    %v4354 = vxor.u32 %v4353, 2147483648
    %v4355 = vmul.f32 %v4354, 1.442695
    %v4356 = vpow.pop %v4355
    %v4357 = vadd.f32 %v4356, 1.0
    %v4358 = vrcp.pop %v4357
    %v4359 = vmul.f32 %v4357, %v4358
    %v4360 = vsub.f32 1.0, %v4359
    %v4361 = vmul.f32 %v4358, %v4360
    %v4362 = vadd.f32 %v4358, %v4361
    %vm4363 = vweird.f32 %v4357
    %vm4364 = vweird.f32 %v4358
    %vm4365 = vmor %vm4363, %vm4364
    %v4366 = vsel %vm4365, %v4358, %v4362
    %v4367 = vand.u32 2147483647, %v4357
    %vm4368 = vcmp.eq.f32.partialorder %v4367, 8.507059e+37
    %v4369 = vand.u32 %v4357, 2147483648
    %v4370 = vor.u32 1.1754944e-38, %v4369
    %v4371 = vsel %vm4368, %v4370, %v4366
    %v4372 = vmul.f32 1.0, %v4371
    %v4373 = vtanh.pop %v4353
    %v4375 = vrot.slane %v3739, 6
    %v4377 = vmul.f32 %v4372, %v4375
    %4379 = vrot.lane.b32.xlu0 %v4373, 64
    %v4380 = vpop.permute.xlu0 %4379
    %v4382 = vmul.f32 %v4372, %v4380
    %4384 = vrot.lane.b32.xlu0 %v4382, 32
    %v4385 = vpop.permute.xlu0 %4384
    %v4387 = vadd.f32 %v4377, %v4385
    %v4388 = vtanh.pop %v4387
    %4390 = vrot.lane.b32.xlu0 %v4388, 64
    %v4391 = vpop.permute.xlu0 %4390
    %v4393 = vmul.f32 %v4372, %v4391
    %4395 = vrot.lane.b32.xlu0 %v4164, 32
    %v4396 = vpop.permute.xlu0 %4395
    %v4397 = vsel %vm286, %v4396, 0
    %4399 = vmatpush.msra.mxu0 0.0
    %4400 = vmatpush.msra.mxu0 0.0
    %4401 = vmatpush.msra.mxu0 0.0
    %4402 = vmatpush.msra.mxu0 0.0
    %4403 = vmatpush.msra.mxu0 0.0
    %4404 = vmatpush.msra.mxu0 0.0
    %4405 = vmatpush.msra.mxu0 0.0
    %4406 = vmatpush.msra.mxu0 0.0
    %4407 = vmatpush.msra.mxu0 0.0
    %4408 = vmatpush.msra.mxu0 0.0
    %4409 = vmatpush.msra.mxu0 0.0
    %4410 = vmatpush.msra.mxu0 0.0
    %v4411 = vand.u32 %v92, 4294901760
    %4412 = vmatpush.msra.mxu0 %v4411
    %v4413 = vand.u32 %v91, 4294901760
    %4414 = vmatpush.msra.mxu0 %v4413
    %v4415 = vand.u32 %v90, 4294901760
    %4416 = vmatpush.msra.mxu0 %v4415
    %v4417 = vand.u32 %v89, 4294901760
    %4418 = vmatpush.msra.mxu0 %v4417
    %v4419 = vand.u32 %v4397, 4294901760
    %v4420 = vsub.f32 %v4397, %v4419
    %v4421 = vand.u32 %v4420, 4294901760
    %v4422 = vsub.f32 %v4420, %v4421
    %v4423 = vand.u32 %v4422, 4294901760
    %4424 = vmatmul.f32.gmra.mxu0 %v4423
    %v4425 = vpop.f32.mrf.mxu0
    %v4426 = vadd.f32 0.0, %v4425
    %4427 = vdwg.mxu0
    %4428 = vmatpush.msra.mxu0 0.0
    %4429 = vmatpush.msra.mxu0 0.0
    %4430 = vmatpush.msra.mxu0 0.0
    %4431 = vmatpush.msra.mxu0 0.0
    %4432 = vmatpush.msra.mxu0 0.0
    %4433 = vmatpush.msra.mxu0 0.0
    %4434 = vmatpush.msra.mxu0 0.0
    %4435 = vmatpush.msra.mxu0 0.0
    %4436 = vmatpush.msra.mxu0 0.0
    %4437 = vmatpush.msra.mxu0 0.0
    %4438 = vmatpush.msra.mxu0 0.0
    %4439 = vmatpush.msra.mxu0 0.0
    %v4440 = vand.u32 %v92, 4294901760
    %v4441 = vsub.f32 %v92, %v4440
    %v4442 = vand.u32 %v4441, 4294901760
    %v4443 = vsub.f32 %v4441, %v4442
    %v4444 = vand.u32 %v4443, 4294901760
    %4445 = vmatpush.msra.mxu0 %v4444
    %v4446 = vand.u32 %v91, 4294901760
    %v4447 = vsub.f32 %v91, %v4446
    %v4448 = vand.u32 %v4447, 4294901760
    %v4449 = vsub.f32 %v4447, %v4448
    %v4450 = vand.u32 %v4449, 4294901760
    %4451 = vmatpush.msra.mxu0 %v4450
    %v4452 = vand.u32 %v90, 4294901760
    %v4453 = vsub.f32 %v90, %v4452
    %v4454 = vand.u32 %v4453, 4294901760
    %v4455 = vsub.f32 %v4453, %v4454
    %v4456 = vand.u32 %v4455, 4294901760
    %4457 = vmatpush.msra.mxu0 %v4456
    %v4458 = vand.u32 %v89, 4294901760
    %v4459 = vsub.f32 %v89, %v4458
    %v4460 = vand.u32 %v4459, 4294901760
    %v4461 = vsub.f32 %v4459, %v4460
    %v4462 = vand.u32 %v4461, 4294901760
    %4463 = vmatpush.msra.mxu0 %v4462
    %v4464 = vand.u32 %v4397, 4294901760
    %4465 = vmatmul.f32.gmra.mxu0 %v4464
    %v4466 = vpop.f32.mrf.mxu0
    %v4467 = vadd.f32 %v4426, %v4466
    %4468 = vdwg.mxu0
    %4469 = vmatpush.msra.mxu0 0.0
    %4470 = vmatpush.msra.mxu0 0.0
    %4471 = vmatpush.msra.mxu0 0.0
    %4472 = vmatpush.msra.mxu0 0.0
    %4473 = vmatpush.msra.mxu0 0.0
    %4474 = vmatpush.msra.mxu0 0.0
    %4475 = vmatpush.msra.mxu0 0.0
    %4476 = vmatpush.msra.mxu0 0.0
    %4477 = vmatpush.msra.mxu0 0.0
    %4478 = vmatpush.msra.mxu0 0.0
    %4479 = vmatpush.msra.mxu0 0.0
    %4480 = vmatpush.msra.mxu0 0.0
    %v4481 = vand.u32 %v92, 4294901760
    %v4482 = vsub.f32 %v92, %v4481
    %4483 = vmatpush.msra.mxu0 %v4482
    %v4484 = vand.u32 %v91, 4294901760
    %v4485 = vsub.f32 %v91, %v4484
    %4486 = vmatpush.msra.mxu0 %v4485
    %v4487 = vand.u32 %v90, 4294901760
    %v4488 = vsub.f32 %v90, %v4487
    %4489 = vmatpush.msra.mxu0 %v4488
    %v4490 = vand.u32 %v89, 4294901760
    %v4491 = vsub.f32 %v89, %v4490
    %4492 = vmatpush.msra.mxu0 %v4491
    %v4493 = vand.u32 %v4397, 4294901760
    %v4494 = vsub.f32 %v4397, %v4493
    %4495 = vmatmul.f32.gmra.mxu0 %v4494
    %v4496 = vpop.f32.mrf.mxu0
    %v4497 = vadd.f32 %v4467, %v4496
    %4498 = vdwg.mxu0
    %4499 = vmatpush.msra.mxu0 0.0
    %4500 = vmatpush.msra.mxu0 0.0
    %4501 = vmatpush.msra.mxu0 0.0
    %4502 = vmatpush.msra.mxu0 0.0
    %4503 = vmatpush.msra.mxu0 0.0
    %4504 = vmatpush.msra.mxu0 0.0
    %4505 = vmatpush.msra.mxu0 0.0
    %4506 = vmatpush.msra.mxu0 0.0
    %4507 = vmatpush.msra.mxu0 0.0
    %4508 = vmatpush.msra.mxu0 0.0
    %4509 = vmatpush.msra.mxu0 0.0
    %4510 = vmatpush.msra.mxu0 0.0
    %v4511 = vand.u32 %v92, 4294901760
    %4512 = vmatpush.msra.mxu0 %v4511
    %v4513 = vand.u32 %v91, 4294901760
    %4514 = vmatpush.msra.mxu0 %v4513
    %v4515 = vand.u32 %v90, 4294901760
    %4516 = vmatpush.msra.mxu0 %v4515
    %v4517 = vand.u32 %v89, 4294901760
    %4518 = vmatpush.msra.mxu0 %v4517
    %v4519 = vand.u32 %v4397, 4294901760
    %v4520 = vsub.f32 %v4397, %v4519
    %v4521 = vand.u32 %v4520, 4294901760
    %4522 = vmatmul.f32.gmra.mxu0 %v4521
    %v4523 = vpop.f32.mrf.mxu0
    %v4524 = vadd.f32 %v4497, %v4523
    %4525 = vdwg.mxu0
    %4526 = vmatpush.msra.mxu0 0.0
    %4527 = vmatpush.msra.mxu0 0.0
    %4528 = vmatpush.msra.mxu0 0.0
    %4529 = vmatpush.msra.mxu0 0.0
    %4530 = vmatpush.msra.mxu0 0.0
    %4531 = vmatpush.msra.mxu0 0.0
    %4532 = vmatpush.msra.mxu0 0.0
    %4533 = vmatpush.msra.mxu0 0.0
    %4534 = vmatpush.msra.mxu0 0.0
    %4535 = vmatpush.msra.mxu0 0.0
    %4536 = vmatpush.msra.mxu0 0.0
    %4537 = vmatpush.msra.mxu0 0.0
    %v4538 = vand.u32 %v92, 4294901760
    %v4539 = vsub.f32 %v92, %v4538
    %v4540 = vand.u32 %v4539, 4294901760
    %4541 = vmatpush.msra.mxu0 %v4540
    %v4542 = vand.u32 %v91, 4294901760
    %v4543 = vsub.f32 %v91, %v4542
    %v4544 = vand.u32 %v4543, 4294901760
    %4545 = vmatpush.msra.mxu0 %v4544
    %v4546 = vand.u32 %v90, 4294901760
    %v4547 = vsub.f32 %v90, %v4546
    %v4548 = vand.u32 %v4547, 4294901760
    %4549 = vmatpush.msra.mxu0 %v4548
    %v4550 = vand.u32 %v89, 4294901760
    %v4551 = vsub.f32 %v89, %v4550
    %v4552 = vand.u32 %v4551, 4294901760
    %4553 = vmatpush.msra.mxu0 %v4552
    %v4554 = vand.u32 %v4397, 4294901760
    %4555 = vmatmul.f32.gmra.mxu0 %v4554
    %v4556 = vpop.f32.mrf.mxu0
    %v4557 = vadd.f32 %v4524, %v4556
    %4558 = vdwg.mxu0
    %4559 = vmatpush.msra.mxu0 0.0
    %4560 = vmatpush.msra.mxu0 0.0
    %4561 = vmatpush.msra.mxu0 0.0
    %4562 = vmatpush.msra.mxu0 0.0
    %4563 = vmatpush.msra.mxu0 0.0
    %4564 = vmatpush.msra.mxu0 0.0
    %4565 = vmatpush.msra.mxu0 0.0
    %4566 = vmatpush.msra.mxu0 0.0
    %4567 = vmatpush.msra.mxu0 0.0
    %4568 = vmatpush.msra.mxu0 0.0
    %4569 = vmatpush.msra.mxu0 0.0
    %4570 = vmatpush.msra.mxu0 0.0
    %v4571 = vand.u32 %v92, 4294901760
    %4572 = vmatpush.msra.mxu0 %v4571
    %v4573 = vand.u32 %v91, 4294901760
    %4574 = vmatpush.msra.mxu0 %v4573
    %v4575 = vand.u32 %v90, 4294901760
    %4576 = vmatpush.msra.mxu0 %v4575
    %v4577 = vand.u32 %v89, 4294901760
    %4578 = vmatpush.msra.mxu0 %v4577
    %v4579 = vand.u32 %v4397, 4294901760
    %4580 = vmatmul.f32.gmra.mxu0 %v4579
    %v4581 = vpop.f32.mrf.mxu0
    %v4582 = vadd.f32 %v4557, %v4581
    %4583 = vdwg.mxu0
    %v4585 = vrot.slane %v4393, 4
    %4586 = vrot.lane.b32.xlu0 %v4585, 32
    %v4587 = vpop.permute.xlu0 %4586
    %v4588 = vsel %vm286, %v4587, 0
    %4590 = vmatpush.msra.mxu0 0.0
    %4591 = vmatpush.msra.mxu0 0.0
    %4592 = vmatpush.msra.mxu0 0.0
    %4593 = vmatpush.msra.mxu0 0.0
    %4594 = vmatpush.msra.mxu0 0.0
    %4595 = vmatpush.msra.mxu0 0.0
    %4596 = vmatpush.msra.mxu0 0.0
    %4597 = vmatpush.msra.mxu0 0.0
    %4598 = vmatpush.msra.mxu0 0.0
    %4599 = vmatpush.msra.mxu0 0.0
    %4600 = vmatpush.msra.mxu0 0.0
    %4601 = vmatpush.msra.mxu0 0.0
    %v4602 = vand.u32 %v84, 4294901760
    %4603 = vmatpush.msra.mxu0 %v4602
    %v4604 = vand.u32 %v83, 4294901760
    %4605 = vmatpush.msra.mxu0 %v4604
    %v4606 = vand.u32 %v82, 4294901760
    %4607 = vmatpush.msra.mxu0 %v4606
    %v4608 = vand.u32 %v81, 4294901760
    %4609 = vmatpush.msra.mxu0 %v4608
    %v4610 = vand.u32 %v4588, 4294901760
    %v4611 = vsub.f32 %v4588, %v4610
    %v4612 = vand.u32 %v4611, 4294901760
    %v4613 = vsub.f32 %v4611, %v4612
    %v4614 = vand.u32 %v4613, 4294901760
    %4615 = vmatmul.f32.gmra.mxu0 %v4614
    %v4616 = vpop.f32.mrf.mxu0
    %v4617 = vadd.f32 %v4582, %v4616
    %4618 = vdwg.mxu0
    %4619 = vmatpush.msra.mxu0 0.0
    %4620 = vmatpush.msra.mxu0 0.0
    %4621 = vmatpush.msra.mxu0 0.0
    %4622 = vmatpush.msra.mxu0 0.0
    %4623 = vmatpush.msra.mxu0 0.0
    %4624 = vmatpush.msra.mxu0 0.0
    %4625 = vmatpush.msra.mxu0 0.0
    %4626 = vmatpush.msra.mxu0 0.0
    %4627 = vmatpush.msra.mxu0 0.0
    %4628 = vmatpush.msra.mxu0 0.0
    %4629 = vmatpush.msra.mxu0 0.0
    %4630 = vmatpush.msra.mxu0 0.0
    %v4631 = vand.u32 %v84, 4294901760
    %v4632 = vsub.f32 %v84, %v4631
    %v4633 = vand.u32 %v4632, 4294901760
    %v4634 = vsub.f32 %v4632, %v4633
    %v4635 = vand.u32 %v4634, 4294901760
    %4636 = vmatpush.msra.mxu0 %v4635
    %v4637 = vand.u32 %v83, 4294901760
    %v4638 = vsub.f32 %v83, %v4637
    %v4639 = vand.u32 %v4638, 4294901760
    %v4640 = vsub.f32 %v4638, %v4639
    %v4641 = vand.u32 %v4640, 4294901760
    %4642 = vmatpush.msra.mxu0 %v4641
    %v4643 = vand.u32 %v82, 4294901760
    %v4644 = vsub.f32 %v82, %v4643
    %v4645 = vand.u32 %v4644, 4294901760
    %v4646 = vsub.f32 %v4644, %v4645
    %v4647 = vand.u32 %v4646, 4294901760
    %4648 = vmatpush.msra.mxu0 %v4647
    %v4649 = vand.u32 %v81, 4294901760
    %v4650 = vsub.f32 %v81, %v4649
    %v4651 = vand.u32 %v4650, 4294901760
    %v4652 = vsub.f32 %v4650, %v4651
    %v4653 = vand.u32 %v4652, 4294901760
    %4654 = vmatpush.msra.mxu0 %v4653
    %v4655 = vand.u32 %v4588, 4294901760
    %4656 = vmatmul.f32.gmra.mxu0 %v4655
    %v4657 = vpop.f32.mrf.mxu0
    %v4658 = vadd.f32 %v4617, %v4657
    %4659 = vdwg.mxu0
    %4660 = vmatpush.msra.mxu0 0.0
    %4661 = vmatpush.msra.mxu0 0.0
    %4662 = vmatpush.msra.mxu0 0.0
    %4663 = vmatpush.msra.mxu0 0.0
    %4664 = vmatpush.msra.mxu0 0.0
    %4665 = vmatpush.msra.mxu0 0.0
    %4666 = vmatpush.msra.mxu0 0.0
    %4667 = vmatpush.msra.mxu0 0.0
    %4668 = vmatpush.msra.mxu0 0.0
    %4669 = vmatpush.msra.mxu0 0.0
    %4670 = vmatpush.msra.mxu0 0.0
    %4671 = vmatpush.msra.mxu0 0.0
    %v4672 = vand.u32 %v84, 4294901760
    %v4673 = vsub.f32 %v84, %v4672
    %4674 = vmatpush.msra.mxu0 %v4673
    %v4675 = vand.u32 %v83, 4294901760
    %v4676 = vsub.f32 %v83, %v4675
    %4677 = vmatpush.msra.mxu0 %v4676
    %v4678 = vand.u32 %v82, 4294901760
    %v4679 = vsub.f32 %v82, %v4678
    %4680 = vmatpush.msra.mxu0 %v4679
    %v4681 = vand.u32 %v81, 4294901760
    %v4682 = vsub.f32 %v81, %v4681
    %4683 = vmatpush.msra.mxu0 %v4682
    %v4684 = vand.u32 %v4588, 4294901760
    %v4685 = vsub.f32 %v4588, %v4684
    %4686 = vmatmul.f32.gmra.mxu0 %v4685
    %v4687 = vpop.f32.mrf.mxu0
    %v4688 = vadd.f32 %v4658, %v4687
    %4689 = vdwg.mxu0
    %4690 = vmatpush.msra.mxu0 0.0
    %4691 = vmatpush.msra.mxu0 0.0
    %4692 = vmatpush.msra.mxu0 0.0
    %4693 = vmatpush.msra.mxu0 0.0
    %4694 = vmatpush.msra.mxu0 0.0
    %4695 = vmatpush.msra.mxu0 0.0
    %4696 = vmatpush.msra.mxu0 0.0
    %4697 = vmatpush.msra.mxu0 0.0
    %4698 = vmatpush.msra.mxu0 0.0
    %4699 = vmatpush.msra.mxu0 0.0
    %4700 = vmatpush.msra.mxu0 0.0
    %4701 = vmatpush.msra.mxu0 0.0
    %v4702 = vand.u32 %v84, 4294901760
    %4703 = vmatpush.msra.mxu0 %v4702
    %v4704 = vand.u32 %v83, 4294901760
    %4705 = vmatpush.msra.mxu0 %v4704
    %v4706 = vand.u32 %v82, 4294901760
    %4707 = vmatpush.msra.mxu0 %v4706
    %v4708 = vand.u32 %v81, 4294901760
    %4709 = vmatpush.msra.mxu0 %v4708
    %v4710 = vand.u32 %v4588, 4294901760
    %v4711 = vsub.f32 %v4588, %v4710
    %v4712 = vand.u32 %v4711, 4294901760
    %4713 = vmatmul.f32.gmra.mxu0 %v4712
    %v4714 = vpop.f32.mrf.mxu0
    %v4715 = vadd.f32 %v4688, %v4714
    %4716 = vdwg.mxu0
    %4717 = vmatpush.msra.mxu0 0.0
    %4718 = vmatpush.msra.mxu0 0.0
    %4719 = vmatpush.msra.mxu0 0.0
    %4720 = vmatpush.msra.mxu0 0.0
    %4721 = vmatpush.msra.mxu0 0.0
    %4722 = vmatpush.msra.mxu0 0.0
    %4723 = vmatpush.msra.mxu0 0.0
    %4724 = vmatpush.msra.mxu0 0.0
    %4725 = vmatpush.msra.mxu0 0.0
    %4726 = vmatpush.msra.mxu0 0.0
    %4727 = vmatpush.msra.mxu0 0.0
    %4728 = vmatpush.msra.mxu0 0.0
    %v4729 = vand.u32 %v84, 4294901760
    %v4730 = vsub.f32 %v84, %v4729
    %v4731 = vand.u32 %v4730, 4294901760
    %4732 = vmatpush.msra.mxu0 %v4731
    %v4733 = vand.u32 %v83, 4294901760
    %v4734 = vsub.f32 %v83, %v4733
    %v4735 = vand.u32 %v4734, 4294901760
    %4736 = vmatpush.msra.mxu0 %v4735
    %v4737 = vand.u32 %v82, 4294901760
    %v4738 = vsub.f32 %v82, %v4737
    %v4739 = vand.u32 %v4738, 4294901760
    %4740 = vmatpush.msra.mxu0 %v4739
    %v4741 = vand.u32 %v81, 4294901760
    %v4742 = vsub.f32 %v81, %v4741
    %v4743 = vand.u32 %v4742, 4294901760
    %4744 = vmatpush.msra.mxu0 %v4743
    %v4745 = vand.u32 %v4588, 4294901760
    %4746 = vmatmul.f32.gmra.mxu0 %v4745
    %v4747 = vpop.f32.mrf.mxu0
    %v4748 = vadd.f32 %v4715, %v4747
    %4749 = vdwg.mxu0
    %4750 = vmatpush.msra.mxu0 0.0
    %4751 = vmatpush.msra.mxu0 0.0
    %4752 = vmatpush.msra.mxu0 0.0
    %4753 = vmatpush.msra.mxu0 0.0
    %4754 = vmatpush.msra.mxu0 0.0
    %4755 = vmatpush.msra.mxu0 0.0
    %4756 = vmatpush.msra.mxu0 0.0
    %4757 = vmatpush.msra.mxu0 0.0
    %4758 = vmatpush.msra.mxu0 0.0
    %4759 = vmatpush.msra.mxu0 0.0
    %4760 = vmatpush.msra.mxu0 0.0
    %4761 = vmatpush.msra.mxu0 0.0
    %v4762 = vand.u32 %v84, 4294901760
    %4763 = vmatpush.msra.mxu0 %v4762
    %v4764 = vand.u32 %v83, 4294901760
    %4765 = vmatpush.msra.mxu0 %v4764
    %v4766 = vand.u32 %v82, 4294901760
    %4767 = vmatpush.msra.mxu0 %v4766
    %v4768 = vand.u32 %v81, 4294901760
    %4769 = vmatpush.msra.mxu0 %v4768
    %v4770 = vand.u32 %v4588, 4294901760
    %4771 = vmatmul.f32.gmra.mxu0 %v4770
    %v4772 = vpop.f32.mrf.mxu0
    %v4773 = vadd.f32 %v4748, %v4772
    %4774 = vdwg.mxu0
    %v4775 = vadd.f32 %v4773, %v889
    %v4776 = vxor.u32 %v4775, 2147483648
    %v4777 = vmul.f32 %v4776, 1.442695
    %v4778 = vpow.pop %v4777
    %v4779 = vadd.f32 %v4778, 1.0
    %v4780 = vrcp.pop %v4779
    %v4781 = vmul.f32 %v4779, %v4780
    %v4782 = vsub.f32 1.0, %v4781
    %v4783 = vmul.f32 %v4780, %v4782
    %v4784 = vadd.f32 %v4780, %v4783
    %vm4785 = vweird.f32 %v4779
    %vm4786 = vweird.f32 %v4780
    %vm4787 = vmor %vm4785, %vm4786
    %v4788 = vsel %vm4787, %v4780, %v4784
    %v4789 = vand.u32 2147483647, %v4779
    %vm4790 = vcmp.eq.f32.partialorder %v4789, 8.507059e+37
    %v4791 = vand.u32 %v4779, 2147483648
    %v4792 = vor.u32 1.1754944e-38, %v4791
    %v4793 = vsel %vm4790, %v4792, %v4788
    %v4794 = vmul.f32 1.0, %v4793
    %v4795 = vtanh.pop %v4775
    %v4796 = vmul.f32 %v4794, %v4158
    %4798 = vrot.lane.b32.xlu0 %v4795, 64
    %v4799 = vpop.permute.xlu0 %4798
    %v4801 = vmul.f32 %v4794, %v4799
    %4803 = vrot.lane.b32.xlu0 %v4801, 32
    %v4804 = vpop.permute.xlu0 %4803
    %v4806 = vadd.f32 %v4796, %v4804
    %v4807 = vtanh.pop %v4806
    %4809 = vrot.lane.b32.xlu0 %v4807, 64
    %v4810 = vpop.permute.xlu0 %4809
    %v4812 = vmul.f32 %v4794, %v4810
    %4813 = vmatpush.msra.mxu0 0.0
    %4814 = vmatpush.msra.mxu0 0.0
    %4815 = vmatpush.msra.mxu0 0.0
    %4816 = vmatpush.msra.mxu0 0.0
    %4817 = vmatpush.msra.mxu0 0.0
    %4818 = vmatpush.msra.mxu0 0.0
    %4819 = vmatpush.msra.mxu0 0.0
    %4820 = vmatpush.msra.mxu0 0.0
    %4821 = vmatpush.msra.mxu0 0.0
    %4822 = vmatpush.msra.mxu0 0.0
    %4823 = vmatpush.msra.mxu0 0.0
    %4824 = vmatpush.msra.mxu0 0.0
    %v4825 = vand.u32 %v88, 4294901760
    %4826 = vmatpush.msra.mxu0 %v4825
    %v4827 = vand.u32 %v87, 4294901760
    %4828 = vmatpush.msra.mxu0 %v4827
    %v4829 = vand.u32 %v86, 4294901760
    %4830 = vmatpush.msra.mxu0 %v4829
    %v4831 = vand.u32 %v85, 4294901760
    %4832 = vmatpush.msra.mxu0 %v4831
    %v4833 = vand.u32 %v4588, 4294901760
    %v4834 = vsub.f32 %v4588, %v4833
    %v4835 = vand.u32 %v4834, 4294901760
    %v4836 = vsub.f32 %v4834, %v4835
    %v4837 = vand.u32 %v4836, 4294901760
    %4838 = vmatmul.f32.gmra.mxu0 %v4837
    %v4839 = vpop.f32.mrf.mxu0
    %v4840 = vadd.f32 0.0, %v4839
    %4841 = vdwg.mxu0
    %4842 = vmatpush.msra.mxu0 0.0
    %4843 = vmatpush.msra.mxu0 0.0
    %4844 = vmatpush.msra.mxu0 0.0
    %4845 = vmatpush.msra.mxu0 0.0
    %4846 = vmatpush.msra.mxu0 0.0
    %4847 = vmatpush.msra.mxu0 0.0
    %4848 = vmatpush.msra.mxu0 0.0
    %4849 = vmatpush.msra.mxu0 0.0
    %4850 = vmatpush.msra.mxu0 0.0
    %4851 = vmatpush.msra.mxu0 0.0
    %4852 = vmatpush.msra.mxu0 0.0
    %4853 = vmatpush.msra.mxu0 0.0
    %v4854 = vand.u32 %v88, 4294901760
    %v4855 = vsub.f32 %v88, %v4854
    %v4856 = vand.u32 %v4855, 4294901760
    %v4857 = vsub.f32 %v4855, %v4856
    %v4858 = vand.u32 %v4857, 4294901760
    %4859 = vmatpush.msra.mxu0 %v4858
    %v4860 = vand.u32 %v87, 4294901760
    %v4861 = vsub.f32 %v87, %v4860
    %v4862 = vand.u32 %v4861, 4294901760
    %v4863 = vsub.f32 %v4861, %v4862
    %v4864 = vand.u32 %v4863, 4294901760
    %4865 = vmatpush.msra.mxu0 %v4864
    %v4866 = vand.u32 %v86, 4294901760
    %v4867 = vsub.f32 %v86, %v4866
    %v4868 = vand.u32 %v4867, 4294901760
    %v4869 = vsub.f32 %v4867, %v4868
    %v4870 = vand.u32 %v4869, 4294901760
    %4871 = vmatpush.msra.mxu0 %v4870
    %v4872 = vand.u32 %v85, 4294901760
    %v4873 = vsub.f32 %v85, %v4872
    %v4874 = vand.u32 %v4873, 4294901760
    %v4875 = vsub.f32 %v4873, %v4874
    %v4876 = vand.u32 %v4875, 4294901760
    %4877 = vmatpush.msra.mxu0 %v4876
    %v4878 = vand.u32 %v4588, 4294901760
    %4879 = vmatmul.f32.gmra.mxu0 %v4878
    %v4880 = vpop.f32.mrf.mxu0
    %v4881 = vadd.f32 %v4840, %v4880
    %4882 = vdwg.mxu0
    %4883 = vmatpush.msra.mxu0 0.0
    %4884 = vmatpush.msra.mxu0 0.0
    %4885 = vmatpush.msra.mxu0 0.0
    %4886 = vmatpush.msra.mxu0 0.0
    %4887 = vmatpush.msra.mxu0 0.0
    %4888 = vmatpush.msra.mxu0 0.0
    %4889 = vmatpush.msra.mxu0 0.0
    %4890 = vmatpush.msra.mxu0 0.0
    %4891 = vmatpush.msra.mxu0 0.0
    %4892 = vmatpush.msra.mxu0 0.0
    %4893 = vmatpush.msra.mxu0 0.0
    %4894 = vmatpush.msra.mxu0 0.0
    %v4895 = vand.u32 %v88, 4294901760
    %v4896 = vsub.f32 %v88, %v4895
    %4897 = vmatpush.msra.mxu0 %v4896
    %v4898 = vand.u32 %v87, 4294901760
    %v4899 = vsub.f32 %v87, %v4898
    %4900 = vmatpush.msra.mxu0 %v4899
    %v4901 = vand.u32 %v86, 4294901760
    %v4902 = vsub.f32 %v86, %v4901
    %4903 = vmatpush.msra.mxu0 %v4902
    %v4904 = vand.u32 %v85, 4294901760
    %v4905 = vsub.f32 %v85, %v4904
    %4906 = vmatpush.msra.mxu0 %v4905
    %v4907 = vand.u32 %v4588, 4294901760
    %v4908 = vsub.f32 %v4588, %v4907
    %4909 = vmatmul.f32.gmra.mxu0 %v4908
    %v4910 = vpop.f32.mrf.mxu0
    %v4911 = vadd.f32 %v4881, %v4910
    %4912 = vdwg.mxu0
    %4913 = vmatpush.msra.mxu0 0.0
    %4914 = vmatpush.msra.mxu0 0.0
    %4915 = vmatpush.msra.mxu0 0.0
    %4916 = vmatpush.msra.mxu0 0.0
    %4917 = vmatpush.msra.mxu0 0.0
    %4918 = vmatpush.msra.mxu0 0.0
    %4919 = vmatpush.msra.mxu0 0.0
    %4920 = vmatpush.msra.mxu0 0.0
    %4921 = vmatpush.msra.mxu0 0.0
    %4922 = vmatpush.msra.mxu0 0.0
    %4923 = vmatpush.msra.mxu0 0.0
    %4924 = vmatpush.msra.mxu0 0.0
    %v4925 = vand.u32 %v88, 4294901760
    %4926 = vmatpush.msra.mxu0 %v4925
    %v4927 = vand.u32 %v87, 4294901760
    %4928 = vmatpush.msra.mxu0 %v4927
    %v4929 = vand.u32 %v86, 4294901760
    %4930 = vmatpush.msra.mxu0 %v4929
    %v4931 = vand.u32 %v85, 4294901760
    %4932 = vmatpush.msra.mxu0 %v4931
    %v4933 = vand.u32 %v4588, 4294901760
    %v4934 = vsub.f32 %v4588, %v4933
    %v4935 = vand.u32 %v4934, 4294901760
    %4936 = vmatmul.f32.gmra.mxu0 %v4935
    %v4937 = vpop.f32.mrf.mxu0
    %v4938 = vadd.f32 %v4911, %v4937
    %4939 = vdwg.mxu0
    %4940 = vmatpush.msra.mxu0 0.0
    %4941 = vmatpush.msra.mxu0 0.0
    %4942 = vmatpush.msra.mxu0 0.0
    %4943 = vmatpush.msra.mxu0 0.0
    %4944 = vmatpush.msra.mxu0 0.0
    %4945 = vmatpush.msra.mxu0 0.0
    %4946 = vmatpush.msra.mxu0 0.0
    %4947 = vmatpush.msra.mxu0 0.0
    %4948 = vmatpush.msra.mxu0 0.0
    %4949 = vmatpush.msra.mxu0 0.0
    %4950 = vmatpush.msra.mxu0 0.0
    %4951 = vmatpush.msra.mxu0 0.0
    %v4952 = vand.u32 %v88, 4294901760
    %v4953 = vsub.f32 %v88, %v4952
    %v4954 = vand.u32 %v4953, 4294901760
    %4955 = vmatpush.msra.mxu0 %v4954
    %v4956 = vand.u32 %v87, 4294901760
    %v4957 = vsub.f32 %v87, %v4956
    %v4958 = vand.u32 %v4957, 4294901760
    %4959 = vmatpush.msra.mxu0 %v4958
    %v4960 = vand.u32 %v86, 4294901760
    %v4961 = vsub.f32 %v86, %v4960
    %v4962 = vand.u32 %v4961, 4294901760
    %4963 = vmatpush.msra.mxu0 %v4962
    %v4964 = vand.u32 %v85, 4294901760
    %v4965 = vsub.f32 %v85, %v4964
    %v4966 = vand.u32 %v4965, 4294901760
    %4967 = vmatpush.msra.mxu0 %v4966
    %v4968 = vand.u32 %v4588, 4294901760
    %4969 = vmatmul.f32.gmra.mxu0 %v4968
    %v4970 = vpop.f32.mrf.mxu0
    %v4971 = vadd.f32 %v4938, %v4970
    %4972 = vdwg.mxu0
    %4973 = vmatpush.msra.mxu0 0.0
    %4974 = vmatpush.msra.mxu0 0.0
    %4975 = vmatpush.msra.mxu0 0.0
    %4976 = vmatpush.msra.mxu0 0.0
    %4977 = vmatpush.msra.mxu0 0.0
    %4978 = vmatpush.msra.mxu0 0.0
    %4979 = vmatpush.msra.mxu0 0.0
    %4980 = vmatpush.msra.mxu0 0.0
    %4981 = vmatpush.msra.mxu0 0.0
    %4982 = vmatpush.msra.mxu0 0.0
    %4983 = vmatpush.msra.mxu0 0.0
    %4984 = vmatpush.msra.mxu0 0.0
    %v4985 = vand.u32 %v88, 4294901760
    %4986 = vmatpush.msra.mxu0 %v4985
    %v4987 = vand.u32 %v87, 4294901760
    %4988 = vmatpush.msra.mxu0 %v4987
    %v4989 = vand.u32 %v86, 4294901760
    %4990 = vmatpush.msra.mxu0 %v4989
    %v4991 = vand.u32 %v85, 4294901760
    %4992 = vmatpush.msra.mxu0 %v4991
    %v4993 = vand.u32 %v4588, 4294901760
    %4994 = vmatmul.f32.gmra.mxu0 %v4993
    %v4995 = vpop.f32.mrf.mxu0
    %v4996 = vadd.f32 %v4971, %v4995
    %4997 = vdwg.mxu0
    %v4999 = vrot.slane %v4996, 2
    %v5001 = vadd.f32 %v284, %v4999
    %v5002 = vxor.u32 %v5001, 2147483648
    %v5003 = vmul.f32 %v5002, 1.442695
    %v5004 = vpow.pop %v5003
    %v5005 = vadd.f32 %v5004, 1.0
    %v5006 = vrcp.pop %v5005
    %v5007 = vmul.f32 %v5005, %v5006
    %v5008 = vsub.f32 1.0, %v5007
    %v5009 = vmul.f32 %v5006, %v5008
    %v5010 = vadd.f32 %v5006, %v5009
    %vm5011 = vweird.f32 %v5005
    %vm5012 = vweird.f32 %v5006
    %vm5013 = vmor %vm5011, %vm5012
    %v5014 = vsel %vm5013, %v5006, %v5010
    %v5015 = vand.u32 2147483647, %v5005
    %vm5016 = vcmp.eq.f32.partialorder %v5015, 8.507059e+37
    %v5017 = vand.u32 %v5005, 2147483648
    %v5018 = vor.u32 1.1754944e-38, %v5017
    %v5019 = vsel %vm5016, %v5018, %v5014
    %v5020 = vmul.f32 1.0, %v5019
    %v5021 = vtanh.pop %v5001
    %v5023 = vrot.slane %v4387, 6
    %v5025 = vmul.f32 %v5020, %v5023
    %5027 = vrot.lane.b32.xlu0 %v5021, 64
    %v5028 = vpop.permute.xlu0 %5027
    %v5030 = vmul.f32 %v5020, %v5028
    %5032 = vrot.lane.b32.xlu0 %v5030, 32
    %v5033 = vpop.permute.xlu0 %5032
    %v5035 = vadd.f32 %v5025, %v5033
    %v5036 = vtanh.pop %v5035
    %5038 = vrot.lane.b32.xlu0 %v5036, 64
    %v5039 = vpop.permute.xlu0 %5038
    %v5041 = vmul.f32 %v5020, %v5039
    %5043 = vrot.lane.b32.xlu0 %v4812, 32
    %v5044 = vpop.permute.xlu0 %5043
    %v5045 = vsel %vm286, %v5044, 0
    %5047 = vmatpush.msra.mxu0 0.0
    %5048 = vmatpush.msra.mxu0 0.0
    %5049 = vmatpush.msra.mxu0 0.0
    %5050 = vmatpush.msra.mxu0 0.0
    %5051 = vmatpush.msra.mxu0 0.0
    %5052 = vmatpush.msra.mxu0 0.0
    %5053 = vmatpush.msra.mxu0 0.0
    %5054 = vmatpush.msra.mxu0 0.0
    %5055 = vmatpush.msra.mxu0 0.0
    %5056 = vmatpush.msra.mxu0 0.0
    %5057 = vmatpush.msra.mxu0 0.0
    %5058 = vmatpush.msra.mxu0 0.0
    %v5059 = vand.u32 %v92, 4294901760
    %5060 = vmatpush.msra.mxu0 %v5059
    %v5061 = vand.u32 %v91, 4294901760
    %5062 = vmatpush.msra.mxu0 %v5061
    %v5063 = vand.u32 %v90, 4294901760
    %5064 = vmatpush.msra.mxu0 %v5063
    %v5065 = vand.u32 %v89, 4294901760
    %5066 = vmatpush.msra.mxu0 %v5065
    %v5067 = vand.u32 %v5045, 4294901760
    %v5068 = vsub.f32 %v5045, %v5067
    %v5069 = vand.u32 %v5068, 4294901760
    %v5070 = vsub.f32 %v5068, %v5069
    %v5071 = vand.u32 %v5070, 4294901760
    %5072 = vmatmul.f32.gmra.mxu0 %v5071
    %v5073 = vpop.f32.mrf.mxu0
    %v5074 = vadd.f32 0.0, %v5073
    %5075 = vdwg.mxu0
    %5076 = vmatpush.msra.mxu0 0.0
    %5077 = vmatpush.msra.mxu0 0.0
    %5078 = vmatpush.msra.mxu0 0.0
    %5079 = vmatpush.msra.mxu0 0.0
    %5080 = vmatpush.msra.mxu0 0.0
    %5081 = vmatpush.msra.mxu0 0.0
    %5082 = vmatpush.msra.mxu0 0.0
    %5083 = vmatpush.msra.mxu0 0.0
    %5084 = vmatpush.msra.mxu0 0.0
    %5085 = vmatpush.msra.mxu0 0.0
    %5086 = vmatpush.msra.mxu0 0.0
    %5087 = vmatpush.msra.mxu0 0.0
    %v5088 = vand.u32 %v92, 4294901760
    %v5089 = vsub.f32 %v92, %v5088
    %v5090 = vand.u32 %v5089, 4294901760
    %v5091 = vsub.f32 %v5089, %v5090
    %v5092 = vand.u32 %v5091, 4294901760
    %5093 = vmatpush.msra.mxu0 %v5092
    %v5094 = vand.u32 %v91, 4294901760
    %v5095 = vsub.f32 %v91, %v5094
    %v5096 = vand.u32 %v5095, 4294901760
    %v5097 = vsub.f32 %v5095, %v5096
    %v5098 = vand.u32 %v5097, 4294901760
    %5099 = vmatpush.msra.mxu0 %v5098
    %v5100 = vand.u32 %v90, 4294901760
    %v5101 = vsub.f32 %v90, %v5100
    %v5102 = vand.u32 %v5101, 4294901760
    %v5103 = vsub.f32 %v5101, %v5102
    %v5104 = vand.u32 %v5103, 4294901760
    %5105 = vmatpush.msra.mxu0 %v5104
    %v5106 = vand.u32 %v89, 4294901760
    %v5107 = vsub.f32 %v89, %v5106
    %v5108 = vand.u32 %v5107, 4294901760
    %v5109 = vsub.f32 %v5107, %v5108
    %v5110 = vand.u32 %v5109, 4294901760
    %5111 = vmatpush.msra.mxu0 %v5110
    %v5112 = vand.u32 %v5045, 4294901760
    %5113 = vmatmul.f32.gmra.mxu0 %v5112
    %v5114 = vpop.f32.mrf.mxu0
    %v5115 = vadd.f32 %v5074, %v5114
    %5116 = vdwg.mxu0
    %5117 = vmatpush.msra.mxu0 0.0
    %5118 = vmatpush.msra.mxu0 0.0
    %5119 = vmatpush.msra.mxu0 0.0
    %5120 = vmatpush.msra.mxu0 0.0
    %5121 = vmatpush.msra.mxu0 0.0
    %5122 = vmatpush.msra.mxu0 0.0
    %5123 = vmatpush.msra.mxu0 0.0
    %5124 = vmatpush.msra.mxu0 0.0
    %5125 = vmatpush.msra.mxu0 0.0
    %5126 = vmatpush.msra.mxu0 0.0
    %5127 = vmatpush.msra.mxu0 0.0
    %5128 = vmatpush.msra.mxu0 0.0
    %v5129 = vand.u32 %v92, 4294901760
    %v5130 = vsub.f32 %v92, %v5129
    %5131 = vmatpush.msra.mxu0 %v5130
    %v5132 = vand.u32 %v91, 4294901760
    %v5133 = vsub.f32 %v91, %v5132
    %5134 = vmatpush.msra.mxu0 %v5133
    %v5135 = vand.u32 %v90, 4294901760
    %v5136 = vsub.f32 %v90, %v5135
    %5137 = vmatpush.msra.mxu0 %v5136
    %v5138 = vand.u32 %v89, 4294901760
    %v5139 = vsub.f32 %v89, %v5138
    %5140 = vmatpush.msra.mxu0 %v5139
    %v5141 = vand.u32 %v5045, 4294901760
    %v5142 = vsub.f32 %v5045, %v5141
    %5143 = vmatmul.f32.gmra.mxu0 %v5142
    %v5144 = vpop.f32.mrf.mxu0
    %v5145 = vadd.f32 %v5115, %v5144
    %5146 = vdwg.mxu0
    %5147 = vmatpush.msra.mxu0 0.0
    %5148 = vmatpush.msra.mxu0 0.0
    %5149 = vmatpush.msra.mxu0 0.0
    %5150 = vmatpush.msra.mxu0 0.0
    %5151 = vmatpush.msra.mxu0 0.0
    %5152 = vmatpush.msra.mxu0 0.0
    %5153 = vmatpush.msra.mxu0 0.0
    %5154 = vmatpush.msra.mxu0 0.0
    %5155 = vmatpush.msra.mxu0 0.0
    %5156 = vmatpush.msra.mxu0 0.0
    %5157 = vmatpush.msra.mxu0 0.0
    %5158 = vmatpush.msra.mxu0 0.0
    %v5159 = vand.u32 %v92, 4294901760
    %5160 = vmatpush.msra.mxu0 %v5159
    %v5161 = vand.u32 %v91, 4294901760
    %5162 = vmatpush.msra.mxu0 %v5161
    %v5163 = vand.u32 %v90, 4294901760
    %5164 = vmatpush.msra.mxu0 %v5163
    %v5165 = vand.u32 %v89, 4294901760
    %5166 = vmatpush.msra.mxu0 %v5165
    %v5167 = vand.u32 %v5045, 4294901760
    %v5168 = vsub.f32 %v5045, %v5167
    %v5169 = vand.u32 %v5168, 4294901760
    %5170 = vmatmul.f32.gmra.mxu0 %v5169
    %v5171 = vpop.f32.mrf.mxu0
    %v5172 = vadd.f32 %v5145, %v5171
    %5173 = vdwg.mxu0
    %5174 = vmatpush.msra.mxu0 0.0
    %5175 = vmatpush.msra.mxu0 0.0
    %5176 = vmatpush.msra.mxu0 0.0
    %5177 = vmatpush.msra.mxu0 0.0
    %5178 = vmatpush.msra.mxu0 0.0
    %5179 = vmatpush.msra.mxu0 0.0
    %5180 = vmatpush.msra.mxu0 0.0
    %5181 = vmatpush.msra.mxu0 0.0
    %5182 = vmatpush.msra.mxu0 0.0
    %5183 = vmatpush.msra.mxu0 0.0
    %5184 = vmatpush.msra.mxu0 0.0
    %5185 = vmatpush.msra.mxu0 0.0
    %v5186 = vand.u32 %v92, 4294901760
    %v5187 = vsub.f32 %v92, %v5186
    %v5188 = vand.u32 %v5187, 4294901760
    %5189 = vmatpush.msra.mxu0 %v5188
    %v5190 = vand.u32 %v91, 4294901760
    %v5191 = vsub.f32 %v91, %v5190
    %v5192 = vand.u32 %v5191, 4294901760
    %5193 = vmatpush.msra.mxu0 %v5192
    %v5194 = vand.u32 %v90, 4294901760
    %v5195 = vsub.f32 %v90, %v5194
    %v5196 = vand.u32 %v5195, 4294901760
    %5197 = vmatpush.msra.mxu0 %v5196
    %v5198 = vand.u32 %v89, 4294901760
    %v5199 = vsub.f32 %v89, %v5198
    %v5200 = vand.u32 %v5199, 4294901760
    %5201 = vmatpush.msra.mxu0 %v5200
    %v5202 = vand.u32 %v5045, 4294901760
    %5203 = vmatmul.f32.gmra.mxu0 %v5202
    %v5204 = vpop.f32.mrf.mxu0
    %v5205 = vadd.f32 %v5172, %v5204
    %5206 = vdwg.mxu0
    %5207 = vmatpush.msra.mxu0 0.0
    %5208 = vmatpush.msra.mxu0 0.0
    %5209 = vmatpush.msra.mxu0 0.0
    %5210 = vmatpush.msra.mxu0 0.0
    %5211 = vmatpush.msra.mxu0 0.0
    %5212 = vmatpush.msra.mxu0 0.0
    %5213 = vmatpush.msra.mxu0 0.0
    %5214 = vmatpush.msra.mxu0 0.0
    %5215 = vmatpush.msra.mxu0 0.0
    %5216 = vmatpush.msra.mxu0 0.0
    %5217 = vmatpush.msra.mxu0 0.0
    %5218 = vmatpush.msra.mxu0 0.0
    %v5219 = vand.u32 %v92, 4294901760
    %5220 = vmatpush.msra.mxu0 %v5219
    %v5221 = vand.u32 %v91, 4294901760
    %5222 = vmatpush.msra.mxu0 %v5221
    %v5223 = vand.u32 %v90, 4294901760
    %5224 = vmatpush.msra.mxu0 %v5223
    %v5225 = vand.u32 %v89, 4294901760
    %5226 = vmatpush.msra.mxu0 %v5225
    %v5227 = vand.u32 %v5045, 4294901760
    %5228 = vmatmul.f32.gmra.mxu0 %v5227
    %v5229 = vpop.f32.mrf.mxu0
    %v5230 = vadd.f32 %v5205, %v5229
    %5231 = vdwg.mxu0
    %v5233 = vrot.slane %v5041, 6
    %5234 = vrot.lane.b32.xlu0 %v5233, 32
    %v5235 = vpop.permute.xlu0 %5234
    %v5236 = vsel %vm286, %v5235, 0
    %5238 = vmatpush.msra.mxu0 0.0
    %5239 = vmatpush.msra.mxu0 0.0
    %5240 = vmatpush.msra.mxu0 0.0
    %5241 = vmatpush.msra.mxu0 0.0
    %5242 = vmatpush.msra.mxu0 0.0
    %5243 = vmatpush.msra.mxu0 0.0
    %5244 = vmatpush.msra.mxu0 0.0
    %5245 = vmatpush.msra.mxu0 0.0
    %5246 = vmatpush.msra.mxu0 0.0
    %5247 = vmatpush.msra.mxu0 0.0
    %5248 = vmatpush.msra.mxu0 0.0
    %5249 = vmatpush.msra.mxu0 0.0
    %v5250 = vand.u32 %v84, 4294901760
    %5251 = vmatpush.msra.mxu0 %v5250
    %v5252 = vand.u32 %v83, 4294901760
    %5253 = vmatpush.msra.mxu0 %v5252
    %v5254 = vand.u32 %v82, 4294901760
    %5255 = vmatpush.msra.mxu0 %v5254
    %v5256 = vand.u32 %v81, 4294901760
    %5257 = vmatpush.msra.mxu0 %v5256
    %v5258 = vand.u32 %v5236, 4294901760
    %v5259 = vsub.f32 %v5236, %v5258
    %v5260 = vand.u32 %v5259, 4294901760
    %v5261 = vsub.f32 %v5259, %v5260
    %v5262 = vand.u32 %v5261, 4294901760
    %5263 = vmatmul.f32.gmra.mxu0 %v5262
    %v5264 = vpop.f32.mrf.mxu0
    %v5265 = vadd.f32 %v5230, %v5264
    %5266 = vdwg.mxu0
    %5267 = vmatpush.msra.mxu0 0.0
    %5268 = vmatpush.msra.mxu0 0.0
    %5269 = vmatpush.msra.mxu0 0.0
    %5270 = vmatpush.msra.mxu0 0.0
    %5271 = vmatpush.msra.mxu0 0.0
    %5272 = vmatpush.msra.mxu0 0.0
    %5273 = vmatpush.msra.mxu0 0.0
    %5274 = vmatpush.msra.mxu0 0.0
    %5275 = vmatpush.msra.mxu0 0.0
    %5276 = vmatpush.msra.mxu0 0.0
    %5277 = vmatpush.msra.mxu0 0.0
    %5278 = vmatpush.msra.mxu0 0.0
    %v5279 = vand.u32 %v84, 4294901760
    %v5280 = vsub.f32 %v84, %v5279
    %v5281 = vand.u32 %v5280, 4294901760
    %v5282 = vsub.f32 %v5280, %v5281
    %v5283 = vand.u32 %v5282, 4294901760
    %5284 = vmatpush.msra.mxu0 %v5283
    %v5285 = vand.u32 %v83, 4294901760
    %v5286 = vsub.f32 %v83, %v5285
    %v5287 = vand.u32 %v5286, 4294901760
    %v5288 = vsub.f32 %v5286, %v5287
    %v5289 = vand.u32 %v5288, 4294901760
    %5290 = vmatpush.msra.mxu0 %v5289
    %v5291 = vand.u32 %v82, 4294901760
    %v5292 = vsub.f32 %v82, %v5291
    %v5293 = vand.u32 %v5292, 4294901760
    %v5294 = vsub.f32 %v5292, %v5293
    %v5295 = vand.u32 %v5294, 4294901760
    %5296 = vmatpush.msra.mxu0 %v5295
    %v5297 = vand.u32 %v81, 4294901760
    %v5298 = vsub.f32 %v81, %v5297
    %v5299 = vand.u32 %v5298, 4294901760
    %v5300 = vsub.f32 %v5298, %v5299
    %v5301 = vand.u32 %v5300, 4294901760
    %5302 = vmatpush.msra.mxu0 %v5301
    %v5303 = vand.u32 %v5236, 4294901760
    %5304 = vmatmul.f32.gmra.mxu0 %v5303
    %v5305 = vpop.f32.mrf.mxu0
    %v5306 = vadd.f32 %v5265, %v5305
    %5307 = vdwg.mxu0
    %5308 = vmatpush.msra.mxu0 0.0
    %5309 = vmatpush.msra.mxu0 0.0
    %5310 = vmatpush.msra.mxu0 0.0
    %5311 = vmatpush.msra.mxu0 0.0
    %5312 = vmatpush.msra.mxu0 0.0
    %5313 = vmatpush.msra.mxu0 0.0
    %5314 = vmatpush.msra.mxu0 0.0
    %5315 = vmatpush.msra.mxu0 0.0
    %5316 = vmatpush.msra.mxu0 0.0
    %5317 = vmatpush.msra.mxu0 0.0
    %5318 = vmatpush.msra.mxu0 0.0
    %5319 = vmatpush.msra.mxu0 0.0
    %v5320 = vand.u32 %v84, 4294901760
    %v5321 = vsub.f32 %v84, %v5320
    %5322 = vmatpush.msra.mxu0 %v5321
    %v5323 = vand.u32 %v83, 4294901760
    %v5324 = vsub.f32 %v83, %v5323
    %5325 = vmatpush.msra.mxu0 %v5324
    %v5326 = vand.u32 %v82, 4294901760
    %v5327 = vsub.f32 %v82, %v5326
    %5328 = vmatpush.msra.mxu0 %v5327
    %v5329 = vand.u32 %v81, 4294901760
    %v5330 = vsub.f32 %v81, %v5329
    %5331 = vmatpush.msra.mxu0 %v5330
    %v5332 = vand.u32 %v5236, 4294901760
    %v5333 = vsub.f32 %v5236, %v5332
    %5334 = vmatmul.f32.gmra.mxu0 %v5333
    %v5335 = vpop.f32.mrf.mxu0
    %v5336 = vadd.f32 %v5306, %v5335
    %5337 = vdwg.mxu0
    %5338 = vmatpush.msra.mxu0 0.0
    %5339 = vmatpush.msra.mxu0 0.0
    %5340 = vmatpush.msra.mxu0 0.0
    %5341 = vmatpush.msra.mxu0 0.0
    %5342 = vmatpush.msra.mxu0 0.0
    %5343 = vmatpush.msra.mxu0 0.0
    %5344 = vmatpush.msra.mxu0 0.0
    %5345 = vmatpush.msra.mxu0 0.0
    %5346 = vmatpush.msra.mxu0 0.0
    %5347 = vmatpush.msra.mxu0 0.0
    %5348 = vmatpush.msra.mxu0 0.0
    %5349 = vmatpush.msra.mxu0 0.0
    %v5350 = vand.u32 %v84, 4294901760
    %5351 = vmatpush.msra.mxu0 %v5350
    %v5352 = vand.u32 %v83, 4294901760
    %5353 = vmatpush.msra.mxu0 %v5352
    %v5354 = vand.u32 %v82, 4294901760
    %5355 = vmatpush.msra.mxu0 %v5354
    %v5356 = vand.u32 %v81, 4294901760
    %5357 = vmatpush.msra.mxu0 %v5356
    %v5358 = vand.u32 %v5236, 4294901760
    %v5359 = vsub.f32 %v5236, %v5358
    %v5360 = vand.u32 %v5359, 4294901760
    %5361 = vmatmul.f32.gmra.mxu0 %v5360
    %v5362 = vpop.f32.mrf.mxu0
    %v5363 = vadd.f32 %v5336, %v5362
    %5364 = vdwg.mxu0
    %5365 = vmatpush.msra.mxu0 0.0
    %5366 = vmatpush.msra.mxu0 0.0
    %5367 = vmatpush.msra.mxu0 0.0
    %5368 = vmatpush.msra.mxu0 0.0
    %5369 = vmatpush.msra.mxu0 0.0
    %5370 = vmatpush.msra.mxu0 0.0
    %5371 = vmatpush.msra.mxu0 0.0
    %5372 = vmatpush.msra.mxu0 0.0
    %5373 = vmatpush.msra.mxu0 0.0
    %5374 = vmatpush.msra.mxu0 0.0
    %5375 = vmatpush.msra.mxu0 0.0
    %5376 = vmatpush.msra.mxu0 0.0
    %v5377 = vand.u32 %v84, 4294901760
    %v5378 = vsub.f32 %v84, %v5377
    %v5379 = vand.u32 %v5378, 4294901760
    %5380 = vmatpush.msra.mxu0 %v5379
    %v5381 = vand.u32 %v83, 4294901760
    %v5382 = vsub.f32 %v83, %v5381
    %v5383 = vand.u32 %v5382, 4294901760
    %5384 = vmatpush.msra.mxu0 %v5383
    %v5385 = vand.u32 %v82, 4294901760
    %v5386 = vsub.f32 %v82, %v5385
    %v5387 = vand.u32 %v5386, 4294901760
    %5388 = vmatpush.msra.mxu0 %v5387
    %v5389 = vand.u32 %v81, 4294901760
    %v5390 = vsub.f32 %v81, %v5389
    %v5391 = vand.u32 %v5390, 4294901760
    %5392 = vmatpush.msra.mxu0 %v5391
    %v5393 = vand.u32 %v5236, 4294901760
    %5394 = vmatmul.f32.gmra.mxu0 %v5393
    %v5395 = vpop.f32.mrf.mxu0
    %v5396 = vadd.f32 %v5363, %v5395
    %5397 = vdwg.mxu0
    %5398 = vmatpush.msra.mxu0 0.0
    %5399 = vmatpush.msra.mxu0 0.0
    %5400 = vmatpush.msra.mxu0 0.0
    %5401 = vmatpush.msra.mxu0 0.0
    %5402 = vmatpush.msra.mxu0 0.0
    %5403 = vmatpush.msra.mxu0 0.0
    %5404 = vmatpush.msra.mxu0 0.0
    %5405 = vmatpush.msra.mxu0 0.0
    %5406 = vmatpush.msra.mxu0 0.0
    %5407 = vmatpush.msra.mxu0 0.0
    %5408 = vmatpush.msra.mxu0 0.0
    %5409 = vmatpush.msra.mxu0 0.0
    %v5410 = vand.u32 %v84, 4294901760
    %5411 = vmatpush.msra.mxu0 %v5410
    %v5412 = vand.u32 %v83, 4294901760
    %5413 = vmatpush.msra.mxu0 %v5412
    %v5414 = vand.u32 %v82, 4294901760
    %5415 = vmatpush.msra.mxu0 %v5414
    %v5416 = vand.u32 %v81, 4294901760
    %5417 = vmatpush.msra.mxu0 %v5416
    %v5418 = vand.u32 %v5236, 4294901760
    %5419 = vmatmul.f32.gmra.mxu0 %v5418
    %v5420 = vpop.f32.mrf.mxu0
    %v5421 = vadd.f32 %v5396, %v5420
    %5422 = vdwg.mxu0
    %v5423 = vadd.f32 %v5421, %v889
    %v5424 = vxor.u32 %v5423, 2147483648
    %v5425 = vmul.f32 %v5424, 1.442695
    %v5426 = vpow.pop %v5425
    %v5427 = vadd.f32 %v5426, 1.0
    %v5428 = vrcp.pop %v5427
    %v5429 = vmul.f32 %v5427, %v5428
    %v5430 = vsub.f32 1.0, %v5429
    %v5431 = vmul.f32 %v5428, %v5430
    %v5432 = vadd.f32 %v5428, %v5431
    %vm5433 = vweird.f32 %v5427
    %vm5434 = vweird.f32 %v5428
    %vm5435 = vmor %vm5433, %vm5434
    %v5436 = vsel %vm5435, %v5428, %v5432
    %v5437 = vand.u32 2147483647, %v5427
    %vm5438 = vcmp.eq.f32.partialorder %v5437, 8.507059e+37
    %v5439 = vand.u32 %v5427, 2147483648
    %v5440 = vor.u32 1.1754944e-38, %v5439
    %v5441 = vsel %vm5438, %v5440, %v5436
    %v5442 = vmul.f32 1.0, %v5441
    %v5443 = vtanh.pop %v5423
    %v5444 = vmul.f32 %v5442, %v4806
    %5446 = vrot.lane.b32.xlu0 %v5443, 64
    %v5447 = vpop.permute.xlu0 %5446
    %v5449 = vmul.f32 %v5442, %v5447
    %5451 = vrot.lane.b32.xlu0 %v5449, 32
    %v5452 = vpop.permute.xlu0 %5451
    %v5454 = vadd.f32 %v5444, %v5452
    %v5455 = vtanh.pop %v5454
    %5457 = vrot.lane.b32.xlu0 %v5455, 64
    %v5458 = vpop.permute.xlu0 %5457
    %v5460 = vmul.f32 %v5442, %v5458
    %5462 = vrot.lane.b32.xlu0 %v1576, 64
    %v5463 = vpop.permute.xlu0 %5462
    %5465 = vrot.lane.b32.xlu0 %v2224, 96
    %v5466 = vpop.permute.xlu0 %5465
    %5469 = vrot.lane.b32.xlu0 %v4164, 64
    %v5470 = vpop.permute.xlu0 %5469
    %5472 = vrot.lane.b32.xlu0 %v4812, 96
    %v5473 = vpop.permute.xlu0 %5472
    %v5475 = vsel %vm286, %v1160, %v5463
    %vm5476 = vcmask 523264
    %v5477 = vsel %vm5476, %v5475, %v5466
    %vm5478 = vcmask 785408
    %v5479 = vsel %vm5478, %v5477, %v2872
    %v5480 = vsel %vm286, %v3748, %v5470
    %v5481 = vsel %vm5476, %v5480, %v5473
    %v5482 = vsel %vm5478, %v5481, %v5460
    %v5485 = vrot.slane %v5482, 6
    %vm5486 = vcmask 1041408
    %v5487 = vsel %vm5486, %v5479, %v5485
    %5489 = vst [vmem:[#allocation8] sm:$0xf] %v5487
    %v5491 = vrot.slane %v5460, 2
    %5492 = vrot.lane.b32.xlu0 %v5041, 32
    %v5493 = vpop.permute.xlu0 %5492
    %5494 = vrot.lane.b32.xlu0 %v5491, 32
    %v5495 = vpop.permute.xlu0 %5494
    %vm5498 = vcmask 261126
    %5499 = vst.msk [vmem:[#allocation9 - $0x6] sm:$0xc0] %vm5498, %v5493
    %5500 = vst.msk [vmem:[#allocation9 - $0x4] sm:$0xc0] %vm5498, %v5495
    %v5502 = vrot.slane %v5454, 2
    %5504 = vrot.lane.b32.xlu0 %v5035, 96
    %v5505 = vpop.permute.xlu0 %5504
    %5506 = vrot.lane.b32.xlu0 %v5502, 96
    %v5507 = vpop.permute.xlu0 %5506
    %5510 = vst.msk [vmem:[#allocation11 - $0x6] sm:$0xc0] %vm5498, %v5505
    %5511 = vst.msk [vmem:[#allocation11 - $0x4] sm:$0xc0] %vm5498, %v5507
    // Predicated region
    $region42: #{tpu_custom_call.1} parent=1 // pred_check
      _
    $region43: #{tpu_custom_call.1} parent=1 // pred_check_branch
      %5513 = sbr.rel (0) target = $region45
    $region44: #{tpu_custom_call.1} parent=1 // pred_region
      %5515 = vsyncadd [#allocation4], 0
      %s5517 = sshll.u32 [#allocation8], 4
      %s5518 = int_to_ptr.vmem [resolvable:$true] %s5517
      %s5519 = sshll.u32 %s7, 4
      %s5520 = int_to_ptr.hbm [resolvable:$true] %s5519
      %5522 = dma.vmem_to_hbm [thread:$0]  %s5518, 64, %s5520, [#allocation4]
    $region45: #{tpu_custom_call.1} parent=1 // pred_fallthru
      _
    // Predicated region
    $region46: #{tpu_custom_call.1} parent=1 // pred_check
      _
    $region47: #{tpu_custom_call.1} parent=1 // pred_check_branch
      %5524 = sbr.rel (0) target = $region49
    $region48: #{tpu_custom_call.1} parent=1 // pred_region
      %5526 = vsyncadd [#allocation10], 0
      %s5527 = sshll.u32 [#allocation9], 4
      %s5528 = int_to_ptr.vmem [resolvable:$true] %s5527
      %s5529 = sshll.u32 %s8, 4
      %s5530 = int_to_ptr.hbm [resolvable:$true] %s5529
      %5535 = dma.vmem_to_hbm [thread:$0]  %s5528, 64, %s5530, [#allocation10], 32, 32, 2
    $region49: #{tpu_custom_call.1} parent=1 // pred_fallthru
      _
    // Predicated region
    $region50: #{tpu_custom_call.1} parent=1 // pred_check
      _
    $region51: #{tpu_custom_call.1} parent=1 // pred_check_branch
      %5537 = sbr.rel (0) target = $region53
    $region52: #{tpu_custom_call.1} parent=1 // pred_region
      %5539 = vsyncadd [#allocation10], 0
      %s5540 = sshll.u32 [#allocation11], 4
      %s5541 = int_to_ptr.vmem [resolvable:$true] %s5540
      %s5542 = sshll.u32 %s9, 4
      %s5543 = int_to_ptr.hbm [resolvable:$true] %s5542
      %5548 = dma.vmem_to_hbm [thread:$0]  %s5541, 64, %s5543, [#allocation10], 32, 32, 2
    $region53: #{tpu_custom_call.1} parent=1 // pred_fallthru
      _
    // Predicated region
    $region54: #{tpu_custom_call.1} parent=1 // pred_check
      _
    $region55: #{tpu_custom_call.1} parent=1 // pred_check_branch
      %5550 = sbr.rel (0) target = $region57
    $region56: #{tpu_custom_call.1} parent=1 // pred_region
      %5552 = dma.done [#allocation4], 64
    $region57: #{tpu_custom_call.1} parent=1 // pred_fallthru
      _
    // Predicated region
    $region58: #{tpu_custom_call.1} parent=1 // pred_check
      _
    $region59: #{tpu_custom_call.1} parent=1 // pred_check_branch
      %5554 = sbr.rel (0) target = $region61
    $region60: #{tpu_custom_call.1} parent=1 // pred_region
      %5556 = dma.done [#allocation10], 64
    $region61: #{tpu_custom_call.1} parent=1 // pred_fallthru
      _
    // Predicated region
    $region62: #{tpu_custom_call.1} parent=1 // pred_check
      _
    $region63: #{tpu_custom_call.1} parent=1 // pred_check_branch
      %5558 = sbr.rel (0) target = $region65
    $region64: #{tpu_custom_call.1} parent=1 // pred_region
      %5560 = dma.done [#allocation10], 64
    $region65: #{tpu_custom_call.1} parent=1 // pred_fallthru
      _
    %5561 = vsyncpa [#allocation3], 1
    %5562 = vsyncpa [#allocation6], 1
    %5563 = vsyncpa [#allocation4], 1
    %5564 = vsyncpa [#allocation10], 1

</llo_original>
